<compile_context>
chip_gen: v5e
topology: v5e:2x2
jax: 0.10.0
libtpu: 0.0.40
codegen_flags: <defaults>
</compile_context>

<pallas_src>
import functools
import math

import jax
import jax.numpy as jnp
from jax.experimental import pallas as pl
from jax.experimental.pallas import tpu as pltpu

_LANE = 128
_VMEM_LIMIT = 32 * 1024 * 1024     # safe scoped-VMEM cap on v5e / v6e / v7x


def _round_up(x, m):
    return (x + m - 1) // m * m


def _apply_act(y, activation):
    if activation == "tanh":
        return jnp.tanh(y)
    if activation == "relu":
        return jnp.maximum(y, 0.0)
    return y


# ---------------------------------------------------------------------------
# Kernel 1: tiled  Y = act(X @ W + b)   (bf16 MXU, f32 accumulate/epilogue)
# ---------------------------------------------------------------------------
def _dense_kernel(x_ref, w_ref, b_ref, o_ref, acc_ref, *, activation):
    @pl.when(pl.program_id(2) == 0)
    def _():
        acc_ref[...] = jnp.zeros_like(acc_ref)

    acc_ref[...] += jnp.dot(x_ref[...], w_ref[...],
                            preferred_element_type=jnp.float32)

    @pl.when(pl.program_id(2) == pl.num_programs(2) - 1)
    def _():
        y = _apply_act(acc_ref[...] + b_ref[...], activation)
        o_ref[...] = y.astype(o_ref.dtype)


def dense_pallas(x, w, b, activation="none", out_dtype=jnp.float32,
                 max_tm=256, max_tn=256, max_tk=1024):
    """x: (M, K), w: (K, N) bf16 with N % 128 == 0, b: (1, N) f32 -> (M, N)."""
    M, K = x.shape
    Kw, N = w.shape
    assert K == Kw and b.shape == (1, N) and N % _LANE == 0

    if M <= max_tm:                       # single full-M block, no padding
        tm, M_pad = M, M
    else:                                 # tile M (pad, slice at the end)
        tm, M_pad = max_tm, _round_up(M, max_tm)
    tn = max_tn if N % max_tn == 0 else _LANE
    if K <= max_tk:                       # single full-K block
        tk, K_pad = K, K
    else:                                 # tile the reduction dim
        tk, K_pad = 512, _round_up(K, 512)

    if (M_pad, K_pad) != (M, K):
        x = jnp.pad(x, ((0, M_pad - M), (0, K_pad - K)))
    if K_pad != K:
        w = jnp.pad(w, ((0, K_pad - K), (0, 0)))

    out = pl.pallas_call(
        functools.partial(_dense_kernel, activation=activation),
        out_shape=jax.ShapeDtypeStruct((M_pad, N), out_dtype),
        grid_spec=pltpu.PrefetchScalarGridSpec(
            num_scalar_prefetch=0,
            grid=(M_pad // tm, N // tn, K_pad // tk),
            in_specs=[
                pl.BlockSpec((tm, tk), lambda i, j, k: (i, k)),
                pl.BlockSpec((tk, tn), lambda i, j, k: (k, j)),
                pl.BlockSpec((1, tn), lambda i, j, k: (0, j)),
            ],
            out_specs=pl.BlockSpec((tm, tn), lambda i, j, k: (i, j)),
            scratch_shapes=[pltpu.VMEM((tm, tn), jnp.float32)],
        ),
        compiler_params=pltpu.CompilerParams(
            dimension_semantics=("parallel", "parallel", "arbitrary"),
            vmem_limit_bytes=_VMEM_LIMIT,
        ),
    )(x, w, b)
    return out if M_pad == M else out[:M]


# ---------------------------------------------------------------------------
# Kernel 2: fused FC stack  (all weights resident in VMEM, tiled over M only)
# ---------------------------------------------------------------------------
def _fused_mlp_kernel(*refs, activation, n_layers):
    x_ref, o_ref = refs[0], refs[-1]
    y = x_ref[...]                                      # bf16 activations
    for layer in range(n_layers):
        w = refs[1 + 2 * layer][...]
        b = refs[2 + 2 * layer][...]
        z = jnp.dot(y, w, preferred_element_type=jnp.float32) + b
        if layer < n_layers - 1:
            y = _apply_act(z, activation).astype(jnp.bfloat16)
        else:
            o_ref[...] = z.astype(o_ref.dtype)          # final layer: linear


def fused_mlp_pallas(x, weights, biases, activation, max_tm=256):
    M, K0 = x.shape
    n_layers = len(weights)
    if M <= max_tm:
        tm, M_pad = M, M
    else:
        tm, M_pad = max_tm, _round_up(M, max_tm)
        x = jnp.pad(x, ((0, M_pad - M), (0, 0)))
    n_out = weights[-1].shape[1]

    in_specs = [pl.BlockSpec((tm, K0), lambda i: (i, 0))]
    operands = [x]
    for w, b in zip(weights, biases):
        in_specs.append(pl.BlockSpec(w.shape, lambda i: (0, 0)))  # resident
        in_specs.append(pl.BlockSpec(b.shape, lambda i: (0, 0)))
        operands += [w, b]

    out = pl.pallas_call(
        functools.partial(_fused_mlp_kernel, activation=activation,
                          n_layers=n_layers),
        out_shape=jax.ShapeDtypeStruct((M_pad, n_out), jnp.float32),
        grid_spec=pltpu.PrefetchScalarGridSpec(
            num_scalar_prefetch=0,
            grid=(M_pad // tm,),
            in_specs=in_specs,
            out_specs=pl.BlockSpec((tm, n_out), lambda i: (i, 0)),
        ),
        compiler_params=pltpu.CompilerParams(
            dimension_semantics=("parallel",),
            vmem_limit_bytes=_VMEM_LIMIT,
        ),
    )(*operands)
    return out if M_pad == M else out[:M]


# ---------------------------------------------------------------------------
# Model (forward only; training/use() are host-side PyTorch utilities)
# ---------------------------------------------------------------------------
class NeuralNetworkClassifierPallas:
    def __init__(self, n_inputs, n_hiddens_by_layer, n_outputs, relu=False,
                 n_conv_layers=0, windows=(), strides=(),
                 input_height_width=None, key=None):
        if not (n_conv_layers == len(windows) == len(strides)):
            raise Exception("NeuralNetworkClassifierPallas: n_conv_layers, "
                            "len(windows) and len(strides) must all match")
        self.activation = "relu" if relu else "tanh"
        self.n_outputs = n_outputs
        key = jax.random.PRNGKey(0) if key is None else key

        # Raw (PyTorch-equivalent) parameters, kept in f32 for the reference.
        self.conv_raw = []          # (w (Cout,Cin,KH,KW), b (Cout,), stride)
        cin, hw = n_inputs, input_height_width
        for n_units, window, stride in zip(n_hiddens_by_layer[:n_conv_layers],
                                           windows, strides):
            key, kw_, kb_ = jax.random.split(key, 3)
            bound = 1.0 / math.sqrt(cin * window * window)
            w = jax.random.uniform(kw_, (n_units, cin, window, window),
                                   jnp.float32, -bound, bound)
            b = jax.random.uniform(kb_, (n_units,), jnp.float32, -bound, bound)
            self.conv_raw.append((w, b, stride))
            cin = n_units
            hw = (hw - window) // stride + 1
        self.final_hw = hw

        self.fc_raw = []            # (w (in, out), b (out,))
        n_in = hw * hw * cin if n_conv_layers > 0 else n_inputs
        for n_units in list(n_hiddens_by_layer[n_conv_layers:]) + [n_outputs]:
            key, kw_, kb_ = jax.random.split(key, 3)
            bound = 1.0 / math.sqrt(n_in)
            w = jax.random.uniform(kw_, (n_in, n_units), jnp.float32,
                                   -bound, bound)
            b = jax.random.uniform(kb_, (n_units,), jnp.float32, -bound, bound)
            self.fc_raw.append((w, b))
            n_in = n_units

        self._prepare_kernel_params()

    # One-time weight preprocessing (hoisted out of the per-forward hot path).
    def _prepare_kernel_params(self):
        self.conv_kp = []
        cout_pad_prev = None
        for li, (w, b, stride) in enumerate(self.conv_raw):
            cout, cin, kh, kw = w.shape
            cin_phys = cin if li == 0 else cout_pad_prev   # padded input chans
            cout_pad = _round_up(cout, _LANE)              # lane-dense output
            wp = jnp.zeros((cout, cin_phys, kh, kw), jnp.float32)
            wp = wp.at[:, :cin].set(w)
            wflat = wp.reshape(cout, cin_phys * kh * kw).T          # (K, Cout)
            wflat = jnp.pad(wflat, ((0, 0), (0, cout_pad - cout)))
            bpad = jnp.pad(b, (0, cout_pad - cout)).reshape(1, cout_pad)
            self.conv_kp.append(dict(
                w=wflat.astype(jnp.bfloat16), b=bpad.astype(jnp.float32),
                window=kh, stride=stride, cout=cout, cout_pad=cout_pad))
            cout_pad_prev = cout_pad

        self.fc_w, self.fc_b = [], []
        for li, (w, b) in enumerate(self.fc_raw):
            n_in, n_out = w.shape
            if li == 0 and self.conv_kp:
                # Fold PyTorch's NCHW flatten into a row permutation of the
                # first FC weight: kernel keeps the conv output in
                # (n, oh, ow, cout_pad) order (padded channels are exact 0).
                cout = self.conv_kp[-1]["cout"]
                cout_pad = self.conv_kp[-1]["cout_pad"]
                hw = self.final_hw
                w = w.reshape(cout, hw, hw, n_out).transpose(1, 2, 0, 3)
                w = jnp.pad(w, ((0, 0), (0, 0), (0, cout_pad - cout), (0, 0)))
                w = w.reshape(hw * hw * cout_pad, n_out)
            elif li > 0:
                prev_pad = self.fc_w[-1].shape[1]
                w = jnp.pad(w, ((0, prev_pad - n_in), (0, 0)))
            n_out_pad = _round_up(n_out, _LANE)
            w = jnp.pad(w, ((0, 0), (0, n_out_pad - n_out)))
            b = jnp.pad(b, (0, n_out_pad - n_out)).reshape(1, n_out_pad)
            self.fc_w.append(w.astype(jnp.bfloat16))
            self.fc_b.append(b.astype(jnp.float32))

        # Fuse the whole FC stack in one kernel if weights fit VMEM-resident.
        fc_bytes = sum(int(w.size) * 2 for w in self.fc_w)      # bf16 bytes
        self.fuse_fc = 2 * fc_bytes < 20 * 1024 * 1024

    def forward(self, X):
        """X: (N, C, H, W) NCHW float -> logits (N, n_outputs)."""
        n = X.shape[0]
        act = self.activation
        Y = X.astype(jnp.bfloat16)
        lhs_spec = "NCHW"
        for kp in self.conv_kp:
            win, stride = kp["window"], kp["stride"]
            rhs_spec = "OIHW" if lhs_spec == "NCHW" else "HWIO"
            # XLA's fused patch extraction; feature order (Cin, kh, kw)
            # matches the flattened PyTorch weight.
            patches = jax.lax.conv_general_dilated_patches(
                Y, (win, win), (stride, stride), "VALID",
                dimension_numbers=(lhs_spec, rhs_spec, "NHWC"))
            _, oh, ow, k = patches.shape
            y = dense_pallas(patches.reshape(n * oh * ow, k), kp["w"],
                             kp["b"], activation=act, out_dtype=jnp.bfloat16)
            Y = y.reshape(n, oh, ow, kp["cout_pad"])
            lhs_spec = "NHWC"

        if self.conv_kp:
            Yflat = Y.reshape(n, -1)
        else:
            Yflat = X.reshape(n, -1).astype(jnp.bfloat16)

        if self.fuse_fc:
            out = fused_mlp_pallas(Yflat, self.fc_w, self.fc_b, act)
        else:
            out = Yflat
            for li, (w, b) in enumerate(zip(self.fc_w, self.fc_b)):
                last = li == len(self.fc_w) - 1
                out = dense_pallas(
                    out, w, b, activation="none" if last else act,
                    out_dtype=jnp.float32 if last else jnp.bfloat16)
        return out[:, :self.n_outputs]

    # Pure-JAX reference with matching bf16-in / f32-accumulate numerics.
    def forward_ref(self, X):
        n = X.shape[0]
        act = (lambda v: jnp.maximum(v, 0.0)) if self.activation == "relu" \
            else jnp.tanh
        Y = X.astype(jnp.bfloat16)
        for (w, b, stride) in self.conv_raw:
            Y = jax.lax.conv_general_dilated(
                Y, w.astype(jnp.bfloat16), (stride, stride), "VALID",
                dimension_numbers=("NCHW", "OIHW", "NCHW"),
                preferred_element_type=jnp.float32)
            Y = act(Y + b.reshape(1, -1, 1, 1)).astype(jnp.bfloat16)
        Y = Y.reshape(n, -1)
        out = None
        for li, (w, b) in enumerate(self.fc_raw):
            z = jnp.dot(Y, w.astype(jnp.bfloat16),
                        preferred_element_type=jnp.float32) + b
            if li < len(self.fc_raw) - 1:
                Y = act(z).astype(jnp.bfloat16)
            else:
                out = z
        return out


if __name__ == "__main__":
    # conv(4 -> 8, window 3, stride 2) on 16x16 -> 7x7 -> flatten 392
    # fc 392 -> 32 (tanh) -> 10 logits
    key = jax.random.PRNGKey(0)
    kx, kparams = jax.random.split(key)
    X = jax.random.normal(kx, (2, 4, 16, 16), jnp.float32)    # NCHW

    model = NeuralNetworkClassifierPallas(
        n_inputs=4, n_hiddens_by_layer=[8, 32], n_outputs=10, relu=False,
        n_conv_layers=1, windows=[3], strides=[2], input_height_width=16,
        key=kparams)

    logits = jax.block_until_ready(jax.jit(model.forward)(X))
    assert logits.shape == (2, 10)

    ref = jax.block_until_ready(model.forward_ref(X))
    err = float(jnp.max(jnp.abs(logits - ref)))
    assert jnp.allclose(logits, ref, atol=2e-2, rtol=2e-2), \
        f"mismatch vs reference (max abs err {err})"

    # TODO(synk): train()/use() (CrossEntropyLoss, Adam, numpy softmax/argmax)
    # are host-side training utilities, not part of the forward-pass kernels.
    print("KERNEL_OK")
</pallas_src>

<mosaic_0001>
module attributes {stable_mosaic.version = 11 : i64} {
  func.func @_dense_kernel(%arg0: i32, %arg1: i32, %arg2: i32, %arg3: memref<98x36xbf16, #tpu.memory_space<vmem>>, %arg4: memref<36x128xbf16, #tpu.memory_space<vmem>>, %arg5: memref<1x128xf32, #tpu.memory_space<vmem>>, %arg6: memref<98x128xbf16, #tpu.memory_space<vmem>>, %arg7: memref<98x128xf32, #tpu.memory_space<vmem>>) attributes {dimension_semantics = [#tpu.dimension_semantics<parallel>, #tpu.dimension_semantics<parallel>, #tpu.dimension_semantics<arbitrary>], iteration_bounds = array<i64: 1, 1, 1>, scalar_prefetch = 0 : i64, scratch_operands = 1 : i64, tpu.core_type = #tpu.core_type<tc>, window_params = [{transform_indices = @transform_0, window_bounds = array<i64: 98, 36>}, {transform_indices = @transform_1, window_bounds = array<i64: 36, 128>}, {transform_indices = @transform_2, window_bounds = array<i64: 1, 128>}, {transform_indices = @transform_3, window_bounds = array<i64: 98, 128>}]} {
    %c0_i32 = arith.constant 0 : i32
    %0 = arith.cmpi eq, %arg2, %c0_i32 : i32
    %1 = arith.extui %0 : i1 to i32
    %c0_i32_0 = arith.constant 0 : i32
    %2 = arith.cmpi ne, %1, %c0_i32_0 : i32
    scf.if %2 {
      %cst_10 = arith.constant 0.000000e+00 : f32
      %12 = vector.broadcast %cst_10 : f32 to vector<98x128xf32>
      %c0_11 = arith.constant 0 : index
      %c0_12 = arith.constant 0 : index
      %13 = vector.load %arg7[%c0_11, %c0_12] : memref<98x128xf32, #tpu.memory_space<vmem>>, vector<98x128xf32>
      tpu.vector_store %arg7[%c0_11, %c0_12], %12 {strides = array<i32>} : memref<98x128xf32, #tpu.memory_space<vmem>>, vector<98x128xf32>,
    } else {
    }
    %c0 = arith.constant 0 : index
    %c0_1 = arith.constant 0 : index
    %3 = vector.load %arg7[%c0, %c0_1] : memref<98x128xf32, #tpu.memory_space<vmem>>, vector<98x128xf32>
    %c0_2 = arith.constant 0 : index
    %c0_3 = arith.constant 0 : index
    %4 = vector.load %arg3[%c0_2, %c0_3] : memref<98x36xbf16, #tpu.memory_space<vmem>>, vector<98x36xbf16>
    %c0_4 = arith.constant 0 : index
    %c0_5 = arith.constant 0 : index
    %5 = vector.load %arg4[%c0_4, %c0_5] : memref<36x128xbf16, #tpu.memory_space<vmem>>, vector<36x128xbf16>
    %cst = arith.constant dense<0.000000e+00> : vector<98x128xf32>
    %6 = tpu.matmul %4, %5, %cst {dimension_numbers = #tpu.dot_dimension_numbers<[1], [0], [0], [1], [0, 0, 1, 1], [], []>} : vector<98x36xbf16>, vector<36x128xbf16>, vector<98x128xf32> -> vector<98x128xf32>
    %7 = arith.addf %3, %6 : vector<98x128xf32>
    %c0_6 = arith.constant 0 : index
    %c0_7 = arith.constant 0 : index
    %8 = vector.load %arg7[%c0_6, %c0_7] : memref<98x128xf32, #tpu.memory_space<vmem>>, vector<98x128xf32>
    tpu.vector_store %arg7[%c0_6, %c0_7], %7 {strides = array<i32>} : memref<98x128xf32, #tpu.memory_space<vmem>>, vector<98x128xf32>,
    %c0_i32_8 = arith.constant 0 : i32
    %9 = arith.cmpi eq, %arg2, %c0_i32_8 : i32
    %10 = arith.extui %9 : i1 to i32
    %c0_i32_9 = arith.constant 0 : i32
    %11 = arith.cmpi ne, %10, %c0_i32_9 : i32
    scf.if %11 {
      %c0_10 = arith.constant 0 : index
      %c0_11 = arith.constant 0 : index
      %12 = vector.load %arg7[%c0_10, %c0_11] : memref<98x128xf32, #tpu.memory_space<vmem>>, vector<98x128xf32>
      %c0_12 = arith.constant 0 : index
      %c0_13 = arith.constant 0 : index
      %13 = vector.load %arg5[%c0_12, %c0_13] : memref<1x128xf32, #tpu.memory_space<vmem>>, vector<1x128xf32>
      %14 = vector.broadcast %13 : vector<1x128xf32> to vector<98x128xf32>
      %15 = arith.addf %12, %14 : vector<98x128xf32>
      %16 = math.tanh %15 : vector<98x128xf32>
      %17 = arith.truncf %16 : vector<98x128xf32> to vector<98x128xbf16>
      %c0_14 = arith.constant 0 : index
      %c0_15 = arith.constant 0 : index
      %18 = vector.load %arg6[%c0_14, %c0_15] : memref<98x128xbf16, #tpu.memory_space<vmem>>, vector<98x128xbf16>
      tpu.vector_store %arg6[%c0_14, %c0_15], %17 {strides = array<i32>} : memref<98x128xbf16, #tpu.memory_space<vmem>>, vector<98x128xbf16>,
    } else {
    }
    return
  }
  func.func @transform_0(%arg0: i32, %arg1: i32, %arg2: i32) -> (i32, i32) {
    %c0_i32 = arith.constant 0 : i32
    return %arg0, %arg2 : i32, i32
  }
  func.func @transform_1(%arg0: i32, %arg1: i32, %arg2: i32) -> (i32, i32) {
    %c0_i32 = arith.constant 0 : i32
    return %arg2, %arg1 : i32, i32
  }
  func.func @transform_2(%arg0: i32, %arg1: i32, %arg2: i32) -> (i32, i32) {
    %c0_i32 = arith.constant 0 : i32
    %c0_i32_0 = arith.constant 0 : i32
    return %c0_i32, %arg1 : i32, i32
  }
  func.func @transform_3(%arg0: i32, %arg1: i32, %arg2: i32) -> (i32, i32) {
    %c0_i32 = arith.constant 0 : i32
    return %arg0, %arg1 : i32, i32
  }
}

module attributes {stable_mosaic.version = 11 : i64} {
  func.func @_fused_mlp_kernel(%arg0: i32, %arg1: memref<2x6272xbf16, #tpu.memory_space<vmem>>, %arg2: memref<6272x128xbf16, #tpu.memory_space<vmem>>, %arg3: memref<1x128xf32, #tpu.memory_space<vmem>>, %arg4: memref<128x128xbf16, #tpu.memory_space<vmem>>, %arg5: memref<1x128xf32, #tpu.memory_space<vmem>>, %arg6: memref<2x128xf32, #tpu.memory_space<vmem>>) attributes {dimension_semantics = [#tpu.dimension_semantics<parallel>], iteration_bounds = array<i64: 1>, scalar_prefetch = 0 : i64, scratch_operands = 0 : i64, tpu.core_type = #tpu.core_type<tc>, window_params = [{transform_indices = @transform_0, window_bounds = array<i64: 2, 6272>}, {pipeline_mode = #tpu.pipeline_mode<synchronous>, transform_indices = @transform_1, window_bounds = array<i64: 6272, 128>}, {pipeline_mode = #tpu.pipeline_mode<synchronous>, transform_indices = @transform_2, window_bounds = array<i64: 1, 128>}, {pipeline_mode = #tpu.pipeline_mode<synchronous>, transform_indices = @transform_3, window_bounds = array<i64: 128, 128>}, {pipeline_mode = #tpu.pipeline_mode<synchronous>, transform_indices = @transform_4, window_bounds = array<i64: 1, 128>}, {transform_indices = @transform_5, window_bounds = array<i64: 2, 128>}]} {
    %c0 = arith.constant 0 : index
    %c0_0 = arith.constant 0 : index
    %0 = vector.load %arg1[%c0, %c0_0] : memref<2x6272xbf16, #tpu.memory_space<vmem>>, vector<2x6272xbf16>
    %c0_1 = arith.constant 0 : index
    %c0_2 = arith.constant 0 : index
    %1 = vector.load %arg2[%c0_1, %c0_2] : memref<6272x128xbf16, #tpu.memory_space<vmem>>, vector<6272x128xbf16>
    %c0_3 = arith.constant 0 : index
    %c0_4 = arith.constant 0 : index
    %2 = vector.load %arg3[%c0_3, %c0_4] : memref<1x128xf32, #tpu.memory_space<vmem>>, vector<1x128xf32>
    %cst = arith.constant dense<0.000000e+00> : vector<2x128xf32>
    %3 = tpu.matmul %0, %1, %cst {dimension_numbers = #tpu.dot_dimension_numbers<[1], [0], [0], [1], [0, 0, 1, 1], [], []>} : vector<2x6272xbf16>, vector<6272x128xbf16>, vector<2x128xf32> -> vector<2x128xf32>
    %4 = vector.broadcast %2 : vector<1x128xf32> to vector<2x128xf32>
    %5 = arith.addf %3, %4 : vector<2x128xf32>
    %6 = math.tanh %5 : vector<2x128xf32>
    %7 = arith.truncf %6 : vector<2x128xf32> to vector<2x128xbf16>
    %c0_5 = arith.constant 0 : index
    %c0_6 = arith.constant 0 : index
    %8 = vector.load %arg4[%c0_5, %c0_6] : memref<128x128xbf16, #tpu.memory_space<vmem>>, vector<128x128xbf16>
    %c0_7 = arith.constant 0 : index
    %c0_8 = arith.constant 0 : index
    %9 = vector.load %arg5[%c0_7, %c0_8] : memref<1x128xf32, #tpu.memory_space<vmem>>, vector<1x128xf32>
    %cst_9 = arith.constant dense<0.000000e+00> : vector<2x128xf32>
    %10 = tpu.matmul %7, %8, %cst_9 {dimension_numbers = #tpu.dot_dimension_numbers<[1], [0], [0], [1], [0, 0, 1, 1], [], []>} : vector<2x128xbf16>, vector<128x128xbf16>, vector<2x128xf32> -> vector<2x128xf32>
    %11 = vector.broadcast %9 : vector<1x128xf32> to vector<2x128xf32>
    %12 = arith.addf %10, %11 : vector<2x128xf32>
    %c0_10 = arith.constant 0 : index
    %c0_11 = arith.constant 0 : index
    %13 = vector.load %arg6[%c0_10, %c0_11] : memref<2x128xf32, #tpu.memory_space<vmem>>, vector<2x128xf32>
    tpu.vector_store %arg6[%c0_10, %c0_11], %12 {strides = array<i32>} : memref<2x128xf32, #tpu.memory_space<vmem>>, vector<2x128xf32>,
    return
  }
  func.func @transform_0(%arg0: i32) -> (i32, i32) {
    %c0_i32 = arith.constant 0 : i32
    %c0_i32_0 = arith.constant 0 : i32
    return %arg0, %c0_i32 : i32, i32
  }
  func.func @transform_1(%arg0: i32) -> (i32, i32) {
    %c0_i32 = arith.constant 0 : i32
    %c0_i32_0 = arith.constant 0 : i32
    %c0_i32_1 = arith.constant 0 : i32
    return %c0_i32, %c0_i32_0 : i32, i32
  }
  func.func @transform_2(%arg0: i32) -> (i32, i32) {
    %c0_i32 = arith.constant 0 : i32
    %c0_i32_0 = arith.constant 0 : i32
    %c0_i32_1 = arith.constant 0 : i32
    return %c0_i32, %c0_i32_0 : i32, i32
  }
  func.func @transform_3(%arg0: i32) -> (i32, i32) {
    %c0_i32 = arith.constant 0 : i32
    %c0_i32_0 = arith.constant 0 : i32
    %c0_i32_1 = arith.constant 0 : i32
    return %c0_i32, %c0_i32_0 : i32, i32
  }
  func.func @transform_4(%arg0: i32) -> (i32, i32) {
    %c0_i32 = arith.constant 0 : i32
    %c0_i32_0 = arith.constant 0 : i32
    %c0_i32_1 = arith.constant 0 : i32
    return %c0_i32, %c0_i32_0 : i32, i32
  }
  func.func @transform_5(%arg0: i32) -> (i32, i32) {
    %c0_i32 = arith.constant 0 : i32
    %c0_i32_0 = arith.constant 0 : i32
    return %arg0, %c0_i32 : i32, i32
  }
}

</mosaic_0001>

<llo_original>
// kernel: forward.2
$region0: #{forward.2}
  #allocation0 [shape = 'u32[]', space=smem, size = 0x4, offset = 0x4, fixed_abs, tag = 'smem constant byte address 0x4 - core index']
  #allocation1 [shape = 'u32[72,128]{1,0:T(1,128)}', space=vmem, size = 0x9000, scoped, tag = 'internal scratch']
  #allocation2 [shape = 'f32[98,128]{1,0:T(8,128)}', space=vmem, size = 0xd000, scoped, tag = 'scratch operand']
  %s0 = inlined_call_operand.vmem [shape: bf16[98,36], index: 0, kind: input, shape index: {}]
  %s1 = inlined_call_operand.hbm [shape: bf16[36,128], index: 1, kind: input, shape index: {}]
  %s2 = inlined_call_operand.hbm [shape: f32[1,128], index: 2, kind: input, shape index: {}]
  %s3 = inlined_call_operand.vmem [shape: bf16[98,128], index: 3, kind: output, shape index: {}]
  %s4 = sld [smem:[#allocation0]]
  $region38: #{forward.2} parent=0
    _
  %s6 = ssub.s32 1, %s4
  %s7 = scalar_select 0, %s6, %s4
  $region1: #{forward.2} parent=0
    #allocation3 [shape = 'u8[10240]{0}', space=vmem, size = 0x2800, scoped, tag = 'input window, operand 1, single buffered']
    #allocation4 [shape = 's32[1]{0}', space=sflag, size = 0x4, scoped, tag = 'scoped memory for forward.2']
    #allocation5 [shape = 'u8[512]{0}', space=vmem, size = 0x400, scoped, tag = 'input window, operand 2, single buffered']
    #allocation6 [shape = 's32[1]{0}', space=sflag, size = 0x4, scoped, tag = 'scoped memory for forward.2']
    %8 = vsyncpa [#allocation4], 0
    %9 = vsyncpa [#allocation6], 0
    // Predicated region
    $region2: #{forward.2} parent=1 // pred_check
      _
    $region3: #{forward.2} parent=1 // pred_check_branch
      %11 = sbr.rel (0) target = $region5
    $region4: #{forward.2} parent=1 // pred_region
      _
    $region5: #{forward.2} parent=1 // pred_fallthru
      _
    // Predicated region
    $region6: #{forward.2} parent=1 // pred_check
      _
    $region7: #{forward.2} parent=1 // pred_check_branch
      %13 = sbr.rel (0) target = $region9
    $region8: #{forward.2} parent=1 // pred_region
      %15 = vsyncadd [#allocation4], 0
      %s16 = sshll.u32 %s1, 4
      %s17 = int_to_ptr.hbm [resolvable:$true] %s16
      %s18 = sshll.u32 [#allocation3], 4
      %s19 = int_to_ptr.vmem [resolvable:$true] %s18
      %24 = dma.hbm_to_vmem [thread:$0]  %s17, 320, %s19, [#allocation4], 64, 64, 4
    $region9: #{forward.2} parent=1 // pred_fallthru
      _
    // Predicated region
    $region10: #{forward.2} parent=1 // pred_check
      _
    $region11: #{forward.2} parent=1 // pred_check_branch
      %26 = sbr.rel (0) target = $region13
    $region12: #{forward.2} parent=1 // pred_region
      %28 = vsyncadd [#allocation6], 0
      %s30 = sshll.u32 %s2, 4
      %s31 = int_to_ptr.hbm [resolvable:$true] %s30
      %s32 = sshll.u32 [#allocation5], 4
      %s33 = int_to_ptr.vmem [resolvable:$true] %s32
      %35 = dma.hbm_to_vmem [thread:$0]  %s31, 16, %s33, [#allocation6]
    $region13: #{forward.2} parent=1 // pred_fallthru
      _
    // Predicated region
    $region14: #{forward.2} parent=1 // pred_check
      _
    $region15: #{forward.2} parent=1 // pred_check_branch
      %37 = sbr.rel (0) target = $region17
    $region16: #{forward.2} parent=1 // pred_region
      %39 = dma.done [#allocation4], 320
    $region17: #{forward.2} parent=1 // pred_fallthru
      _
    // Predicated region
    $region18: #{forward.2} parent=1 // pred_check
      _
    $region19: #{forward.2} parent=1 // pred_check_branch
      %41 = sbr.rel (0) target = $region21
    $region20: #{forward.2} parent=1 // pred_region
      %43 = dma.done [#allocation6], 16
    $region21: #{forward.2} parent=1 // pred_fallthru
      _
    %p45 = scmp.eq.s32.totalorder 0, 0
    // Predicated region
    $region22: #{forward.2} parent=1 // pred_check
      %p46 = pneg %p45
    $region23: #{forward.2} parent=1 // pred_check_branch
      %48 = sbr.rel (%p46) target = $region25
    $region24: #{forward.2} parent=1 // pred_region
      %49 = vst [vmem:[#allocation2] sm:$0xff] 0.0
      %50 = vst [vmem:[#allocation2 + $0x8] sm:$0xff] 0.0
      %51 = vst [vmem:[#allocation2 + $0x10] sm:$0xff] 0.0
      %52 = vst [vmem:[#allocation2 + $0x18] sm:$0xff] 0.0
      %53 = vst [vmem:[#allocation2 + $0x20] sm:$0xff] 0.0
      %54 = vst [vmem:[#allocation2 + $0x28] sm:$0xff] 0.0
      %55 = vst [vmem:[#allocation2 + $0x30] sm:$0xff] 0.0
      %56 = vst [vmem:[#allocation2 + $0x38] sm:$0xff] 0.0
      %57 = vst [vmem:[#allocation2 + $0x40] sm:$0xff] 0.0
      %58 = vst [vmem:[#allocation2 + $0x48] sm:$0xff] 0.0
      %59 = vst [vmem:[#allocation2 + $0x50] sm:$0xff] 0.0
      %60 = vst [vmem:[#allocation2 + $0x58] sm:$0xff] 0.0
      %61 = vst [vmem:[#allocation2 + $0x60] sm:$0x3] 0.0
    $region25: #{forward.2} parent=1 // pred_fallthru
      _
    %v62 = vld [vmem:[#allocation2] sm:$0xff]
    %v63 = vld [vmem:[#allocation2 + $0x8] sm:$0xff]
    %v64 = vld [vmem:[#allocation2 + $0x10] sm:$0xff]
    %v65 = vld [vmem:[#allocation2 + $0x18] sm:$0xff]
    %v66 = vld [vmem:[#allocation2 + $0x20] sm:$0xff]
    %v67 = vld [vmem:[#allocation2 + $0x28] sm:$0xff]
    %v68 = vld [vmem:[#allocation2 + $0x30] sm:$0xff]
    %v69 = vld [vmem:[#allocation2 + $0x38] sm:$0xff]
    %v70 = vld [vmem:[#allocation2 + $0x40] sm:$0xff]
    %v71 = vld [vmem:[#allocation2 + $0x48] sm:$0xff]
    %v72 = vld [vmem:[#allocation2 + $0x50] sm:$0xff]
    %v73 = vld [vmem:[#allocation2 + $0x58] sm:$0xff]
    %v74 = vld [vmem:[#allocation2 + $0x60] sm:$0x3]
    %v75 = vld [vmem:[%s0] sm:$0xf]
    %v76 = vld [vmem:[%s0 + $0x4] sm:$0xf]
    %v77 = vld [vmem:[%s0 + $0x8] sm:$0xf]
    %v78 = vld [vmem:[%s0 + $0xc] sm:$0xf]
    %v79 = vld [vmem:[%s0 + $0x10] sm:$0xf]
    %v80 = vld [vmem:[%s0 + $0x14] sm:$0xf]
    %v81 = vld [vmem:[%s0 + $0x18] sm:$0xf]
    %v82 = vld [vmem:[%s0 + $0x1c] sm:$0xf]
    %v83 = vld [vmem:[%s0 + $0x20] sm:$0xf]
    %v84 = vld [vmem:[%s0 + $0x24] sm:$0xf]
    %v85 = vld [vmem:[%s0 + $0x28] sm:$0xf]
    %v86 = vld [vmem:[%s0 + $0x2c] sm:$0xf]
    %v87 = vld [vmem:[%s0 + $0x30] sm:$0x1]
    %v88 = vld [vmem:[#allocation3] sm:$0xf]
    %v89 = vld [vmem:[#allocation3 + $0x4] sm:$0xf]
    %v90 = vld [vmem:[#allocation3 + $0x8] sm:$0xf]
    %v91 = vld [vmem:[#allocation3 + $0xc] sm:$0xf]
    %v92 = vld [vmem:[#allocation3 + $0x10] sm:$0x3]
    %v106 = vunpack.c.l.b16 %v75
    %v107 = vunpack.c.l.b16 %v76
    %v108 = vunpack.c.l.b16 %v77
    %v109 = vunpack.c.l.b16 %v78
    %v110 = vunpack.c.l.b16 %v79
    %v111 = vunpack.c.l.b16 %v80
    %v112 = vunpack.c.l.b16 %v81
    %v113 = vunpack.c.l.b16 %v82
    %v114 = vunpack.c.l.b16 %v83
    %v115 = vunpack.c.l.b16 %v84
    %v116 = vunpack.c.l.b16 %v85
    %v117 = vunpack.c.l.b16 %v86
    %v118 = vunpack.c.l.b16 %v87
    %v119 = vpack.c.b16 %v107, %v106
    %v120 = vpack.c.b16 %v109, %v108
    %v121 = vpack.c.b16 %v111, %v110
    %v122 = vpack.c.b16 %v113, %v112
    %v123 = vpack.c.b16 %v115, %v114
    %v124 = vpack.c.b16 %v117, %v116
    %v125 = vpack.c.b16 %v118, %v118
    %v131 = vunpack.c.l.b16 %v88
    %v132 = vunpack.c.l.b16 %v89
    %v133 = vunpack.c.l.b16 %v90
    %v134 = vunpack.c.l.b16 %v91
    %v135 = vunpack.c.l.b16 %v92
    %v136 = vpack.c.b16 %v132, %v131
    %v137 = vpack.c.b16 %v134, %v133
    %v138 = vpack.c.b16 %v135, %v135
    %vm141 = vcmask 293888
    %v143 = vsel %vm141, %v119, 0
    %v146 = vsel %vm141, %v120, 0
    %v149 = vsel %vm141, %v121, 0
    %v152 = vsel %vm141, %v122, 0
    %v155 = vsel %vm141, %v123, 0
    %v158 = vsel %vm141, %v124, 0
    %v161 = vsel %vm141, %v125, 0
    %vm163 = vcmask 1041408
    %v165 = vsel %vm163, %v138, 0
    %167 = vmatpush.bf16.msra.mxu0 0
    %168 = vmatpush.bf16.msra.mxu0 0
    %169 = vmatpush.bf16.msra.mxu0 0
    %170 = vmatpush.bf16.msra.mxu0 0
    %171 = vmatpush.bf16.msra.mxu0 0
    %172 = vmatpush.bf16.msra.mxu0 %v165
    %173 = vmatpush.bf16.msra.mxu0 %v137
    %174 = vmatpush.bf16.msra.mxu0 %v136
    %175 = vmatmul.bf16.gmra.mxu0 %v143
    %v176 = vpop.f32.mrf.mxu0
    %v177 = vadd.f32 0.0, %v176
    %v178 = vpop.f32.mrf.mxu0
    %v179 = vadd.f32 0.0, %v178
    %180 = vmatmul.bf16.gmra.mxu0 %v146
    %v181 = vpop.f32.mrf.mxu0
    %v182 = vadd.f32 0.0, %v181
    %v183 = vpop.f32.mrf.mxu0
    %v184 = vadd.f32 0.0, %v183
    %185 = vmatmul.bf16.gmra.mxu0 %v149
    %v186 = vpop.f32.mrf.mxu0
    %v187 = vadd.f32 0.0, %v186
    %v188 = vpop.f32.mrf.mxu0
    %v189 = vadd.f32 0.0, %v188
    %190 = vmatmul.bf16.gmra.mxu0 %v152
    %v191 = vpop.f32.mrf.mxu0
    %v192 = vadd.f32 0.0, %v191
    %v193 = vpop.f32.mrf.mxu0
    %v194 = vadd.f32 0.0, %v193
    %195 = vmatmul.bf16.gmra.mxu0 %v155
    %v196 = vpop.f32.mrf.mxu0
    %v197 = vadd.f32 0.0, %v196
    %v198 = vpop.f32.mrf.mxu0
    %v199 = vadd.f32 0.0, %v198
    %200 = vmatmul.bf16.gmra.mxu0 %v158
    %v201 = vpop.f32.mrf.mxu0
    %v202 = vadd.f32 0.0, %v201
    %v203 = vpop.f32.mrf.mxu0
    %v204 = vadd.f32 0.0, %v203
    %205 = vmatmul.bf16.gmra.mxu0 %v161
    %v206 = vpop.f32.mrf.mxu0
    %v207 = vadd.f32 0.0, %v206
    %v208 = vpop.f32.mrf.mxu0
    %209 = vdwg.mxu0
    %v210 = vadd.f32 %v62, %v177
    %v211 = vadd.f32 %v63, %v179
    %v212 = vadd.f32 %v64, %v182
    %v213 = vadd.f32 %v65, %v184
    %v214 = vadd.f32 %v66, %v187
    %v215 = vadd.f32 %v67, %v189
    %v216 = vadd.f32 %v68, %v192
    %v217 = vadd.f32 %v69, %v194
    %v218 = vadd.f32 %v70, %v197
    %v219 = vadd.f32 %v71, %v199
    %v220 = vadd.f32 %v72, %v202
    %v221 = vadd.f32 %v73, %v204
    %v222 = vadd.f32 %v74, %v207
    %223 = vst [vmem:[#allocation2] sm:$0xff] %v210
    %224 = vst [vmem:[#allocation2 + $0x8] sm:$0xff] %v211
    %225 = vst [vmem:[#allocation2 + $0x10] sm:$0xff] %v212
    %226 = vst [vmem:[#allocation2 + $0x18] sm:$0xff] %v213
    %227 = vst [vmem:[#allocation2 + $0x20] sm:$0xff] %v214
    %228 = vst [vmem:[#allocation2 + $0x28] sm:$0xff] %v215
    %229 = vst [vmem:[#allocation2 + $0x30] sm:$0xff] %v216
    %230 = vst [vmem:[#allocation2 + $0x38] sm:$0xff] %v217
    %231 = vst [vmem:[#allocation2 + $0x40] sm:$0xff] %v218
    %232 = vst [vmem:[#allocation2 + $0x48] sm:$0xff] %v219
    %233 = vst [vmem:[#allocation2 + $0x50] sm:$0xff] %v220
    %234 = vst [vmem:[#allocation2 + $0x58] sm:$0xff] %v221
    %235 = vst [vmem:[#allocation2 + $0x60] sm:$0x3] %v222
    // Predicated region
    $region26: #{forward.2} parent=1 // pred_check
      %p236 = pneg %p45
    $region27: #{forward.2} parent=1 // pred_check_branch
      %238 = sbr.rel (%p236) target = $region29
    $region28: #{forward.2} parent=1 // pred_region
      %v239 = vld [vmem:[#allocation2] sm:$0xff]
      %v240 = vld [vmem:[#allocation2 + $0x8] sm:$0xff]
      %v241 = vld [vmem:[#allocation2 + $0x10] sm:$0xff]
      %v242 = vld [vmem:[#allocation2 + $0x18] sm:$0xff]
      %v243 = vld [vmem:[#allocation2 + $0x20] sm:$0xff]
      %v244 = vld [vmem:[#allocation2 + $0x28] sm:$0xff]
      %v245 = vld [vmem:[#allocation2 + $0x30] sm:$0xff]
      %v246 = vld [vmem:[#allocation2 + $0x38] sm:$0xff]
      %v247 = vld [vmem:[#allocation2 + $0x40] sm:$0xff]
      %v248 = vld [vmem:[#allocation2 + $0x48] sm:$0xff]
      %v249 = vld [vmem:[#allocation2 + $0x50] sm:$0xff]
      %v250 = vld [vmem:[#allocation2 + $0x58] sm:$0xff]
      %v251 = vld [vmem:[#allocation2 + $0x60] sm:$0x3]
      %v252 = vld [vmem:[#allocation5] sm:$0x1]
      %v254 = vperm.slane %v252, 0
      %v256 = vadd.f32 %v239, %v254
      %v257 = vadd.f32 %v240, %v254
      %v258 = vadd.f32 %v241, %v254
      %v259 = vadd.f32 %v242, %v254
      %v260 = vadd.f32 %v243, %v254
      %v261 = vadd.f32 %v244, %v254
      %v262 = vadd.f32 %v245, %v254
      %v263 = vadd.f32 %v246, %v254
      %v264 = vadd.f32 %v247, %v254
      %v265 = vadd.f32 %v248, %v254
      %v266 = vadd.f32 %v249, %v254
      %v267 = vadd.f32 %v250, %v254
      %v268 = vadd.f32 %v251, %v254
      %v269 = vtanh.pop %v256
      %v270 = vtanh.pop %v257
      %v271 = vtanh.pop %v258
      %v272 = vtanh.pop %v259
      %v273 = vtanh.pop %v260
      %v274 = vtanh.pop %v261
      %v275 = vtanh.pop %v262
      %v276 = vtanh.pop %v263
      %v277 = vtanh.pop %v264
      %v278 = vtanh.pop %v265
      %v279 = vtanh.pop %v266
      %v280 = vtanh.pop %v267
      %v281 = vtanh.pop %v268
      %v282 = vpack.c.bf16 %v269, %v269
      %v283 = vpack.c.bf16 %v270, %v270
      %v284 = vpack.c.bf16 %v271, %v271
      %v285 = vpack.c.bf16 %v272, %v272
      %v286 = vpack.c.bf16 %v273, %v273
      %v287 = vpack.c.bf16 %v274, %v274
      %v288 = vpack.c.bf16 %v275, %v275
      %v289 = vpack.c.bf16 %v276, %v276
      %v290 = vpack.c.bf16 %v277, %v277
      %v291 = vpack.c.bf16 %v278, %v278
      %v292 = vpack.c.bf16 %v279, %v279
      %v293 = vpack.c.bf16 %v280, %v280
      %v294 = vpack.c.bf16 %v281, %v281
      %295 = vst [vmem:[%s3] sm:$0xf] %v282
      %296 = vst [vmem:[%s3 + $0x4] sm:$0xf] %v283
      %297 = vst [vmem:[%s3 + $0x8] sm:$0xf] %v284
      %298 = vst [vmem:[%s3 + $0xc] sm:$0xf] %v285
      %299 = vst [vmem:[%s3 + $0x10] sm:$0xf] %v286
      %300 = vst [vmem:[%s3 + $0x14] sm:$0xf] %v287
      %301 = vst [vmem:[%s3 + $0x18] sm:$0xf] %v288
      %302 = vst [vmem:[%s3 + $0x1c] sm:$0xf] %v289
      %303 = vst [vmem:[%s3 + $0x20] sm:$0xf] %v290
      %304 = vst [vmem:[%s3 + $0x24] sm:$0xf] %v291
      %305 = vst [vmem:[%s3 + $0x28] sm:$0xf] %v292
      %306 = vst [vmem:[%s3 + $0x2c] sm:$0xf] %v293
      %307 = vst [vmem:[%s3 + $0x30] sm:$0x1] %v294
    $region29: #{forward.2} parent=1 // pred_fallthru
      _
    // Predicated region
    $region30: #{forward.2} parent=1 // pred_check
      _
    $region31: #{forward.2} parent=1 // pred_check_branch
      %309 = sbr.rel (0) target = $region33
    $region32: #{forward.2} parent=1 // pred_region
      _
    $region33: #{forward.2} parent=1 // pred_fallthru
      _
    // Predicated region
    $region34: #{forward.2} parent=1 // pred_check
      _
    $region35: #{forward.2} parent=1 // pred_check_branch
      %311 = sbr.rel (0) target = $region37
    $region36: #{forward.2} parent=1 // pred_region
      _
    $region37: #{forward.2} parent=1 // pred_fallthru
      _
    %312 = vsyncpa [#allocation4], 1
    %313 = vsyncpa [#allocation6], 1

// kernel: forward.3
$region0: #{forward.3}
  #allocation0 [shape = 'u32[]', space=smem, size = 0x4, offset = 0x4, fixed_abs, tag = 'smem constant byte address 0x4 - core index']
  #allocation1 [shape = 'u32[72,128]{1,0:T(1,128)}', space=vmem, size = 0x9000, scoped, tag = 'internal scratch']
  %s0 = inlined_call_operand.vmem [shape: bf16[2,6272], index: 0, kind: input, shape index: {}]
  %s1 = inlined_call_operand.hbm [shape: bf16[6272,128], index: 1, kind: input, shape index: {}]
  %s2 = inlined_call_operand.hbm [shape: f32[1,128], index: 2, kind: input, shape index: {}]
  %s3 = inlined_call_operand.hbm [shape: bf16[128,128], index: 3, kind: input, shape index: {}]
  %s4 = inlined_call_operand.hbm [shape: f32[1,128], index: 4, kind: input, shape index: {}]
  %s5 = inlined_call_operand.hbm [shape: f32[2,128], index: 5, kind: output, shape index: {}]
  %s6 = sld [smem:[#allocation0]]
  $region46: #{forward.3} parent=0
    _
  %s8 = ssub.s32 1, %s6
  %s9 = scalar_select 0, %s8, %s6
  $region1: #{forward.3} parent=0
    #allocation2 [shape = 'u8[1605632]{0}', space=vmem, size = 0x188000, scoped, tag = 'input window, operand 1, single buffered']
    #allocation3 [shape = 's32[1]{0}', space=sflag, size = 0x4, scoped, tag = 'scoped memory for forward.3']
    #allocation4 [shape = 's32[1]{0}', space=sflag, size = 0x4, scoped, tag = 'scoped memory for forward.3']
    #allocation5 [shape = 'u8[512]{0}', space=vmem, size = 0x400, scoped, tag = 'input window, operand 2, single buffered']
    #allocation6 [shape = 's32[1]{0}', space=sflag, size = 0x4, scoped, tag = 'scoped memory for forward.3']
    #allocation7 [shape = 'u8[32768]{0}', space=vmem, size = 0x8000, scoped, tag = 'input window, operand 3, single buffered']
    #allocation8 [shape = 'u8[512]{0}', space=vmem, size = 0x400, scoped, tag = 'input window, operand 4, single buffered']
    #allocation9 [shape = 's32[1]{0}', space=sflag, size = 0x4, scoped, tag = 'scoped memory for forward.3']
    #allocation10 [shape = 'u8[1024]{0}', space=vmem, size = 0x400, scoped, tag = 'output window, operand 0, single buffered']
    %10 = vsyncpa [#allocation3], 0
    %11 = vsyncpa [#allocation6], 0
    %12 = vsyncpa [#allocation9], 0
    %13 = vsyncpa [#allocation4], 0
    // Predicated region
    $region2: #{forward.3} parent=1 // pred_check
      _
    $region3: #{forward.3} parent=1 // pred_check_branch
      %15 = sbr.rel (0) target = $region5
    $region4: #{forward.3} parent=1 // pred_region
      _
    $region5: #{forward.3} parent=1 // pred_fallthru
      _
    // Predicated region
    $region6: #{forward.3} parent=1 // pred_check
      _
    $region7: #{forward.3} parent=1 // pred_check_branch
      %17 = sbr.rel (0) target = $region9
    $region8: #{forward.3} parent=1 // pred_region
      %19 = vsyncadd [#allocation3], 0
      %s20 = sshll.u32 %s1, 4
      %s21 = int_to_ptr.hbm [resolvable:$true] %s20
      %s22 = sshll.u32 [#allocation2], 4
      %s23 = int_to_ptr.vmem [resolvable:$true] %s22
      %28 = dma.hbm_to_vmem [thread:$0]  %s21, 50176, %s23, [#allocation3], 64, 64, 4
    $region9: #{forward.3} parent=1 // pred_fallthru
      _
    // Predicated region
    $region10: #{forward.3} parent=1 // pred_check
      _
    $region11: #{forward.3} parent=1 // pred_check_branch
      %30 = sbr.rel (0) target = $region13
    $region12: #{forward.3} parent=1 // pred_region
      %32 = vsyncadd [#allocation6], 0
      %s34 = sshll.u32 %s2, 4
      %s35 = int_to_ptr.hbm [resolvable:$true] %s34
      %s36 = sshll.u32 [#allocation5], 4
      %s37 = int_to_ptr.vmem [resolvable:$true] %s36
      %39 = dma.hbm_to_vmem [thread:$0]  %s35, 16, %s37, [#allocation6]
    $region13: #{forward.3} parent=1 // pred_fallthru
      _
    // Predicated region
    $region14: #{forward.3} parent=1 // pred_check
      _
    $region15: #{forward.3} parent=1 // pred_check_branch
      %41 = sbr.rel (0) target = $region17
    $region16: #{forward.3} parent=1 // pred_region
      %43 = vsyncadd [#allocation6], 0
      %s44 = sshll.u32 %s3, 4
      %s45 = int_to_ptr.hbm [resolvable:$true] %s44
      %s46 = sshll.u32 [#allocation7], 4
      %s47 = int_to_ptr.vmem [resolvable:$true] %s46
      %52 = dma.hbm_to_vmem [thread:$0]  %s45, 1024, %s47, [#allocation6], 64, 64, 4
    $region17: #{forward.3} parent=1 // pred_fallthru
      _
    // Predicated region
    $region18: #{forward.3} parent=1 // pred_check
      _
    $region19: #{forward.3} parent=1 // pred_check_branch
      %54 = sbr.rel (0) target = $region21
    $region20: #{forward.3} parent=1 // pred_region
      %56 = vsyncadd [#allocation9], 0
      %s58 = sshll.u32 %s4, 4
      %s59 = int_to_ptr.hbm [resolvable:$true] %s58
      %s60 = sshll.u32 [#allocation8], 4
      %s61 = int_to_ptr.vmem [resolvable:$true] %s60
      %63 = dma.hbm_to_vmem [thread:$0]  %s59, 16, %s61, [#allocation9]
    $region21: #{forward.3} parent=1 // pred_fallthru
      _
    // Predicated region
    $region22: #{forward.3} parent=1 // pred_check
      _
    $region23: #{forward.3} parent=1 // pred_check_branch
      %65 = sbr.rel (0) target = $region25
    $region24: #{forward.3} parent=1 // pred_region
      %67 = dma.done [#allocation3], 50176
    $region25: #{forward.3} parent=1 // pred_fallthru
      _
    // Predicated region
    $region26: #{forward.3} parent=1 // pred_check
      _
    $region27: #{forward.3} parent=1 // pred_check_branch
      %69 = sbr.rel (0) target = $region29
    $region28: #{forward.3} parent=1 // pred_region
      %71 = dma.done [#allocation6], 16
    $region29: #{forward.3} parent=1 // pred_fallthru
      _
    // Predicated region
    $region30: #{forward.3} parent=1 // pred_check
      _
    $region31: #{forward.3} parent=1 // pred_check_branch
      %73 = sbr.rel (0) target = $region33
    $region32: #{forward.3} parent=1 // pred_region
      %75 = dma.done [#allocation6], 1024
    $region33: #{forward.3} parent=1 // pred_fallthru
      _
    // Predicated region
    $region34: #{forward.3} parent=1 // pred_check
      _
    $region35: #{forward.3} parent=1 // pred_check_branch
      %77 = sbr.rel (0) target = $region37
    $region36: #{forward.3} parent=1 // pred_region
      %79 = dma.done [#allocation9], 16
    $region37: #{forward.3} parent=1 // pred_fallthru
      _
    %v80 = vld [vmem:[%s0] sm:$0xff]
    %v81 = vld [vmem:[%s0 + $0x8] sm:$0xff]
    %v82 = vld [vmem:[%s0 + $0x10] sm:$0xff]
    %v83 = vld [vmem:[%s0 + $0x18] sm:$0xff]
    %v84 = vld [vmem:[%s0 + $0x20] sm:$0xff]
    %v85 = vld [vmem:[%s0 + $0x28] sm:$0xff]
    %v86 = vld [vmem:[%s0 + $0x30] sm:$0x1]
    %v87 = vld [vmem:[#allocation2] sm:$0xf]
    %v88 = vld [vmem:[#allocation2 + $0x4] sm:$0xf]
    %v89 = vld [vmem:[#allocation2 + $0x8] sm:$0xf]
    %v90 = vld [vmem:[#allocation2 + $0xc] sm:$0xf]
    %v91 = vld [vmem:[#allocation2 + $0x10] sm:$0xf]
    %v92 = vld [vmem:[#allocation2 + $0x14] sm:$0xf]
    %v93 = vld [vmem:[#allocation2 + $0x18] sm:$0xf]
    %v94 = vld [vmem:[#allocation2 + $0x1c] sm:$0xf]
    %v95 = vld [vmem:[#allocation2 + $0x20] sm:$0xf]
    %v96 = vld [vmem:[#allocation2 + $0x24] sm:$0xf]
    %v97 = vld [vmem:[#allocation2 + $0x28] sm:$0xf]
    %v98 = vld [vmem:[#allocation2 + $0x2c] sm:$0xf]
    %v99 = vld [vmem:[#allocation2 + $0x30] sm:$0xf]
    %v100 = vld [vmem:[#allocation2 + $0x34] sm:$0xf]
    %v101 = vld [vmem:[#allocation2 + $0x38] sm:$0xf]
    %v102 = vld [vmem:[#allocation2 + $0x3c] sm:$0xf]
    %v103 = vld [vmem:[#allocation2 + $0x40] sm:$0xf]
    %v104 = vld [vmem:[#allocation2 + $0x44] sm:$0xf]
    %v105 = vld [vmem:[#allocation2 + $0x48] sm:$0xf]
    %v106 = vld [vmem:[#allocation2 + $0x4c] sm:$0xf]
    %v107 = vld [vmem:[#allocation2 + $0x50] sm:$0xf]
    %v108 = vld [vmem:[#allocation2 + $0x54] sm:$0xf]
    %v109 = vld [vmem:[#allocation2 + $0x58] sm:$0xf]
    %v110 = vld [vmem:[#allocation2 + $0x5c] sm:$0xf]
    %v111 = vld [vmem:[#allocation2 + $0x60] sm:$0xf]
    %v112 = vld [vmem:[#allocation2 + $0x64] sm:$0xf]
    %v113 = vld [vmem:[#allocation2 + $0x68] sm:$0xf]
    %v114 = vld [vmem:[#allocation2 + $0x6c] sm:$0xf]
    %v115 = vld [vmem:[#allocation2 + $0x70] sm:$0xf]
    %v116 = vld [vmem:[#allocation2 + $0x74] sm:$0xf]
    %v117 = vld [vmem:[#allocation2 + $0x78] sm:$0xf]
    %v118 = vld [vmem:[#allocation2 + $0x7c] sm:$0xf]
    %v119 = vld [vmem:[#allocation2 + $0x80] sm:$0xf]
    %v120 = vld [vmem:[#allocation2 + $0x84] sm:$0xf]
    %v121 = vld [vmem:[#allocation2 + $0x88] sm:$0xf]
    %v122 = vld [vmem:[#allocation2 + $0x8c] sm:$0xf]
    %v123 = vld [vmem:[#allocation2 + $0x90] sm:$0xf]
    %v124 = vld [vmem:[#allocation2 + $0x94] sm:$0xf]
    %v125 = vld [vmem:[#allocation2 + $0x98] sm:$0xf]
    %v126 = vld [vmem:[#allocation2 + $0x9c] sm:$0xf]
    %v127 = vld [vmem:[#allocation2 + $0xa0] sm:$0xf]
    %v128 = vld [vmem:[#allocation2 + $0xa4] sm:$0xf]
    %v129 = vld [vmem:[#allocation2 + $0xa8] sm:$0xf]
    %v130 = vld [vmem:[#allocation2 + $0xac] sm:$0xf]
    %v131 = vld [vmem:[#allocation2 + $0xb0] sm:$0xf]
    %v132 = vld [vmem:[#allocation2 + $0xb4] sm:$0xf]
    %v133 = vld [vmem:[#allocation2 + $0xb8] sm:$0xf]
    %v134 = vld [vmem:[#allocation2 + $0xbc] sm:$0xf]
    %v135 = vld [vmem:[#allocation2 + $0xc0] sm:$0xf]
    %v136 = vld [vmem:[#allocation2 + $0xc4] sm:$0xf]
    %v137 = vld [vmem:[#allocation2 + $0xc8] sm:$0xf]
    %v138 = vld [vmem:[#allocation2 + $0xcc] sm:$0xf]
    %v139 = vld [vmem:[#allocation2 + $0xd0] sm:$0xf]
    %v140 = vld [vmem:[#allocation2 + $0xd4] sm:$0xf]
    %v141 = vld [vmem:[#allocation2 + $0xd8] sm:$0xf]
    %v142 = vld [vmem:[#allocation2 + $0xdc] sm:$0xf]
    %v143 = vld [vmem:[#allocation2 + $0xe0] sm:$0xf]
    %v144 = vld [vmem:[#allocation2 + $0xe4] sm:$0xf]
    %v145 = vld [vmem:[#allocation2 + $0xe8] sm:$0xf]
    %v146 = vld [vmem:[#allocation2 + $0xec] sm:$0xf]
    %v147 = vld [vmem:[#allocation2 + $0xf0] sm:$0xf]
    %v148 = vld [vmem:[#allocation2 + $0xf4] sm:$0xf]
    %v149 = vld [vmem:[#allocation2 + $0xf8] sm:$0xf]
    %v150 = vld [vmem:[#allocation2 + $0xfc] sm:$0xf]
    %v151 = vld [vmem:[#allocation2 + $0x100] sm:$0xf]
    %v152 = vld [vmem:[#allocation2 + $0x104] sm:$0xf]
    %v153 = vld [vmem:[#allocation2 + $0x108] sm:$0xf]
    %v154 = vld [vmem:[#allocation2 + $0x10c] sm:$0xf]
    %v155 = vld [vmem:[#allocation2 + $0x110] sm:$0xf]
    %v156 = vld [vmem:[#allocation2 + $0x114] sm:$0xf]
    %v157 = vld [vmem:[#allocation2 + $0x118] sm:$0xf]
    %v158 = vld [vmem:[#allocation2 + $0x11c] sm:$0xf]
    %v159 = vld [vmem:[#allocation2 + $0x120] sm:$0xf]
    %v160 = vld [vmem:[#allocation2 + $0x124] sm:$0xf]
    %v161 = vld [vmem:[#allocation2 + $0x128] sm:$0xf]
    %v162 = vld [vmem:[#allocation2 + $0x12c] sm:$0xf]
    %v163 = vld [vmem:[#allocation2 + $0x130] sm:$0xf]
    %v164 = vld [vmem:[#allocation2 + $0x134] sm:$0xf]
    %v165 = vld [vmem:[#allocation2 + $0x138] sm:$0xf]
    %v166 = vld [vmem:[#allocation2 + $0x13c] sm:$0xf]
    %v167 = vld [vmem:[#allocation2 + $0x140] sm:$0xf]
    %v168 = vld [vmem:[#allocation2 + $0x144] sm:$0xf]
    %v169 = vld [vmem:[#allocation2 + $0x148] sm:$0xf]
    %v170 = vld [vmem:[#allocation2 + $0x14c] sm:$0xf]
    %v171 = vld [vmem:[#allocation2 + $0x150] sm:$0xf]
    %v172 = vld [vmem:[#allocation2 + $0x154] sm:$0xf]
    %v173 = vld [vmem:[#allocation2 + $0x158] sm:$0xf]
    %v174 = vld [vmem:[#allocation2 + $0x15c] sm:$0xf]
    %v175 = vld [vmem:[#allocation2 + $0x160] sm:$0xf]
    %v176 = vld [vmem:[#allocation2 + $0x164] sm:$0xf]
    %v177 = vld [vmem:[#allocation2 + $0x168] sm:$0xf]
    %v178 = vld [vmem:[#allocation2 + $0x16c] sm:$0xf]
    %v179 = vld [vmem:[#allocation2 + $0x170] sm:$0xf]
    %v180 = vld [vmem:[#allocation2 + $0x174] sm:$0xf]
    %v181 = vld [vmem:[#allocation2 + $0x178] sm:$0xf]
    %v182 = vld [vmem:[#allocation2 + $0x17c] sm:$0xf]
    %v183 = vld [vmem:[#allocation2 + $0x180] sm:$0xf]
    %v184 = vld [vmem:[#allocation2 + $0x184] sm:$0xf]
    %v185 = vld [vmem:[#allocation2 + $0x188] sm:$0xf]
    %v186 = vld [vmem:[#allocation2 + $0x18c] sm:$0xf]
    %v187 = vld [vmem:[#allocation2 + $0x190] sm:$0xf]
    %v188 = vld [vmem:[#allocation2 + $0x194] sm:$0xf]
    %v189 = vld [vmem:[#allocation2 + $0x198] sm:$0xf]
    %v190 = vld [vmem:[#allocation2 + $0x19c] sm:$0xf]
    %v191 = vld [vmem:[#allocation2 + $0x1a0] sm:$0xf]
    %v192 = vld [vmem:[#allocation2 + $0x1a4] sm:$0xf]
    %v193 = vld [vmem:[#allocation2 + $0x1a8] sm:$0xf]
    %v194 = vld [vmem:[#allocation2 + $0x1ac] sm:$0xf]
    %v195 = vld [vmem:[#allocation2 + $0x1b0] sm:$0xf]
    %v196 = vld [vmem:[#allocation2 + $0x1b4] sm:$0xf]
    %v197 = vld [vmem:[#allocation2 + $0x1b8] sm:$0xf]
    %v198 = vld [vmem:[#allocation2 + $0x1bc] sm:$0xf]
    %v199 = vld [vmem:[#allocation2 + $0x1c0] sm:$0xf]
    %v200 = vld [vmem:[#allocation2 + $0x1c4] sm:$0xf]
    %v201 = vld [vmem:[#allocation2 + $0x1c8] sm:$0xf]
    %v202 = vld [vmem:[#allocation2 + $0x1cc] sm:$0xf]
    %v203 = vld [vmem:[#allocation2 + $0x1d0] sm:$0xf]
    %v204 = vld [vmem:[#allocation2 + $0x1d4] sm:$0xf]
    %v205 = vld [vmem:[#allocation2 + $0x1d8] sm:$0xf]
    %v206 = vld [vmem:[#allocation2 + $0x1dc] sm:$0xf]
    %v207 = vld [vmem:[#allocation2 + $0x1e0] sm:$0xf]
    %v208 = vld [vmem:[#allocation2 + $0x1e4] sm:$0xf]
    %v209 = vld [vmem:[#allocation2 + $0x1e8] sm:$0xf]
    %v210 = vld [vmem:[#allocation2 + $0x1ec] sm:$0xf]
    %v211 = vld [vmem:[#allocation2 + $0x1f0] sm:$0xf]
    %v212 = vld [vmem:[#allocation2 + $0x1f4] sm:$0xf]
    %v213 = vld [vmem:[#allocation2 + $0x1f8] sm:$0xf]
    %v214 = vld [vmem:[#allocation2 + $0x1fc] sm:$0xf]
    %v215 = vld [vmem:[#allocation2 + $0x200] sm:$0xf]
    %v216 = vld [vmem:[#allocation2 + $0x204] sm:$0xf]
    %v217 = vld [vmem:[#allocation2 + $0x208] sm:$0xf]
    %v218 = vld [vmem:[#allocation2 + $0x20c] sm:$0xf]
    %v219 = vld [vmem:[#allocation2 + $0x210] sm:$0xf]
    %v220 = vld [vmem:[#allocation2 + $0x214] sm:$0xf]
    %v221 = vld [vmem:[#allocation2 + $0x218] sm:$0xf]
    %v222 = vld [vmem:[#allocation2 + $0x21c] sm:$0xf]
    %v223 = vld [vmem:[#allocation2 + $0x220] sm:$0xf]
    %v224 = vld [vmem:[#allocation2 + $0x224] sm:$0xf]
    %v225 = vld [vmem:[#allocation2 + $0x228] sm:$0xf]
    %v226 = vld [vmem:[#allocation2 + $0x22c] sm:$0xf]
    %v227 = vld [vmem:[#allocation2 + $0x230] sm:$0xf]
    %v228 = vld [vmem:[#allocation2 + $0x234] sm:$0xf]
    %v229 = vld [vmem:[#allocation2 + $0x238] sm:$0xf]
    %v230 = vld [vmem:[#allocation2 + $0x23c] sm:$0xf]
    %v231 = vld [vmem:[#allocation2 + $0x240] sm:$0xf]
    %v232 = vld [vmem:[#allocation2 + $0x244] sm:$0xf]
    %v233 = vld [vmem:[#allocation2 + $0x248] sm:$0xf]
    %v234 = vld [vmem:[#allocation2 + $0x24c] sm:$0xf]
    %v235 = vld [vmem:[#allocation2 + $0x250] sm:$0xf]
    %v236 = vld [vmem:[#allocation2 + $0x254] sm:$0xf]
    %v237 = vld [vmem:[#allocation2 + $0x258] sm:$0xf]
    %v238 = vld [vmem:[#allocation2 + $0x25c] sm:$0xf]
    %v239 = vld [vmem:[#allocation2 + $0x260] sm:$0xf]
    %v240 = vld [vmem:[#allocation2 + $0x264] sm:$0xf]
    %v241 = vld [vmem:[#allocation2 + $0x268] sm:$0xf]
    %v242 = vld [vmem:[#allocation2 + $0x26c] sm:$0xf]
    %v243 = vld [vmem:[#allocation2 + $0x270] sm:$0xf]
    %v244 = vld [vmem:[#allocation2 + $0x274] sm:$0xf]
    %v245 = vld [vmem:[#allocation2 + $0x278] sm:$0xf]
    %v246 = vld [vmem:[#allocation2 + $0x27c] sm:$0xf]
    %v247 = vld [vmem:[#allocation2 + $0x280] sm:$0xf]
    %v248 = vld [vmem:[#allocation2 + $0x284] sm:$0xf]
    %v249 = vld [vmem:[#allocation2 + $0x288] sm:$0xf]
    %v250 = vld [vmem:[#allocation2 + $0x28c] sm:$0xf]
    %v251 = vld [vmem:[#allocation2 + $0x290] sm:$0xf]
    %v252 = vld [vmem:[#allocation2 + $0x294] sm:$0xf]
    %v253 = vld [vmem:[#allocation2 + $0x298] sm:$0xf]
    %v254 = vld [vmem:[#allocation2 + $0x29c] sm:$0xf]
    %v255 = vld [vmem:[#allocation2 + $0x2a0] sm:$0xf]
    %v256 = vld [vmem:[#allocation2 + $0x2a4] sm:$0xf]
    %v257 = vld [vmem:[#allocation2 + $0x2a8] sm:$0xf]
    %v258 = vld [vmem:[#allocation2 + $0x2ac] sm:$0xf]
    %v259 = vld [vmem:[#allocation2 + $0x2b0] sm:$0xf]
    %v260 = vld [vmem:[#allocation2 + $0x2b4] sm:$0xf]
    %v261 = vld [vmem:[#allocation2 + $0x2b8] sm:$0xf]
    %v262 = vld [vmem:[#allocation2 + $0x2bc] sm:$0xf]
    %v263 = vld [vmem:[#allocation2 + $0x2c0] sm:$0xf]
    %v264 = vld [vmem:[#allocation2 + $0x2c4] sm:$0xf]
    %v265 = vld [vmem:[#allocation2 + $0x2c8] sm:$0xf]
    %v266 = vld [vmem:[#allocation2 + $0x2cc] sm:$0xf]
    %v267 = vld [vmem:[#allocation2 + $0x2d0] sm:$0xf]
    %v268 = vld [vmem:[#allocation2 + $0x2d4] sm:$0xf]
    %v269 = vld [vmem:[#allocation2 + $0x2d8] sm:$0xf]
    %v270 = vld [vmem:[#allocation2 + $0x2dc] sm:$0xf]
    %v271 = vld [vmem:[#allocation2 + $0x2e0] sm:$0xf]
    %v272 = vld [vmem:[#allocation2 + $0x2e4] sm:$0xf]
    %v273 = vld [vmem:[#allocation2 + $0x2e8] sm:$0xf]
    %v274 = vld [vmem:[#allocation2 + $0x2ec] sm:$0xf]
    %v275 = vld [vmem:[#allocation2 + $0x2f0] sm:$0xf]
    %v276 = vld [vmem:[#allocation2 + $0x2f4] sm:$0xf]
    %v277 = vld [vmem:[#allocation2 + $0x2f8] sm:$0xf]
    %v278 = vld [vmem:[#allocation2 + $0x2fc] sm:$0xf]
    %v279 = vld [vmem:[#allocation2 + $0x300] sm:$0xf]
    %v280 = vld [vmem:[#allocation2 + $0x304] sm:$0xf]
    %v281 = vld [vmem:[#allocation2 + $0x308] sm:$0xf]
    %v282 = vld [vmem:[#allocation2 + $0x30c] sm:$0xf]
    %v283 = vld [vmem:[#allocation2 + $0x310] sm:$0xf]
    %v284 = vld [vmem:[#allocation2 + $0x314] sm:$0xf]
    %v285 = vld [vmem:[#allocation2 + $0x318] sm:$0xf]
    %v286 = vld [vmem:[#allocation2 + $0x31c] sm:$0xf]
    %v287 = vld [vmem:[#allocation2 + $0x320] sm:$0xf]
    %v288 = vld [vmem:[#allocation2 + $0x324] sm:$0xf]
    %v289 = vld [vmem:[#allocation2 + $0x328] sm:$0xf]
    %v290 = vld [vmem:[#allocation2 + $0x32c] sm:$0xf]
    %v291 = vld [vmem:[#allocation2 + $0x330] sm:$0xf]
    %v292 = vld [vmem:[#allocation2 + $0x334] sm:$0xf]
    %v293 = vld [vmem:[#allocation2 + $0x338] sm:$0xf]
    %v294 = vld [vmem:[#allocation2 + $0x33c] sm:$0xf]
    %v295 = vld [vmem:[#allocation2 + $0x340] sm:$0xf]
    %v296 = vld [vmem:[#allocation2 + $0x344] sm:$0xf]
    %v297 = vld [vmem:[#allocation2 + $0x348] sm:$0xf]
    %v298 = vld [vmem:[#allocation2 + $0x34c] sm:$0xf]
    %v299 = vld [vmem:[#allocation2 + $0x350] sm:$0xf]
    %v300 = vld [vmem:[#allocation2 + $0x354] sm:$0xf]
    %v301 = vld [vmem:[#allocation2 + $0x358] sm:$0xf]
    %v302 = vld [vmem:[#allocation2 + $0x35c] sm:$0xf]
    %v303 = vld [vmem:[#allocation2 + $0x360] sm:$0xf]
    %v304 = vld [vmem:[#allocation2 + $0x364] sm:$0xf]
    %v305 = vld [vmem:[#allocation2 + $0x368] sm:$0xf]
    %v306 = vld [vmem:[#allocation2 + $0x36c] sm:$0xf]
    %v307 = vld [vmem:[#allocation2 + $0x370] sm:$0xf]
    %v308 = vld [vmem:[#allocation2 + $0x374] sm:$0xf]
    %v309 = vld [vmem:[#allocation2 + $0x378] sm:$0xf]
    %v310 = vld [vmem:[#allocation2 + $0x37c] sm:$0xf]
    %v311 = vld [vmem:[#allocation2 + $0x380] sm:$0xf]
    %v312 = vld [vmem:[#allocation2 + $0x384] sm:$0xf]
    %v313 = vld [vmem:[#allocation2 + $0x388] sm:$0xf]
    %v314 = vld [vmem:[#allocation2 + $0x38c] sm:$0xf]
    %v315 = vld [vmem:[#allocation2 + $0x390] sm:$0xf]
    %v316 = vld [vmem:[#allocation2 + $0x394] sm:$0xf]
    %v317 = vld [vmem:[#allocation2 + $0x398] sm:$0xf]
    %v318 = vld [vmem:[#allocation2 + $0x39c] sm:$0xf]
    %v319 = vld [vmem:[#allocation2 + $0x3a0] sm:$0xf]
    %v320 = vld [vmem:[#allocation2 + $0x3a4] sm:$0xf]
    %v321 = vld [vmem:[#allocation2 + $0x3a8] sm:$0xf]
    %v322 = vld [vmem:[#allocation2 + $0x3ac] sm:$0xf]
    %v323 = vld [vmem:[#allocation2 + $0x3b0] sm:$0xf]
    %v324 = vld [vmem:[#allocation2 + $0x3b4] sm:$0xf]
    %v325 = vld [vmem:[#allocation2 + $0x3b8] sm:$0xf]
    %v326 = vld [vmem:[#allocation2 + $0x3bc] sm:$0xf]
    %v327 = vld [vmem:[#allocation2 + $0x3c0] sm:$0xf]
    %v328 = vld [vmem:[#allocation2 + $0x3c4] sm:$0xf]
    %v329 = vld [vmem:[#allocation2 + $0x3c8] sm:$0xf]
    %v330 = vld [vmem:[#allocation2 + $0x3cc] sm:$0xf]
    %v331 = vld [vmem:[#allocation2 + $0x3d0] sm:$0xf]
    %v332 = vld [vmem:[#allocation2 + $0x3d4] sm:$0xf]
    %v333 = vld [vmem:[#allocation2 + $0x3d8] sm:$0xf]
    %v334 = vld [vmem:[#allocation2 + $0x3dc] sm:$0xf]
    %v335 = vld [vmem:[#allocation2 + $0x3e0] sm:$0xf]
    %v336 = vld [vmem:[#allocation2 + $0x3e4] sm:$0xf]
    %v337 = vld [vmem:[#allocation2 + $0x3e8] sm:$0xf]
    %v338 = vld [vmem:[#allocation2 + $0x3ec] sm:$0xf]
    %v339 = vld [vmem:[#allocation2 + $0x3f0] sm:$0xf]
    %v340 = vld [vmem:[#allocation2 + $0x3f4] sm:$0xf]
    %v341 = vld [vmem:[#allocation2 + $0x3f8] sm:$0xf]
    %v342 = vld [vmem:[#allocation2 + $0x3fc] sm:$0xf]
    %v343 = vld [vmem:[#allocation2 + $0x400] sm:$0xf]
    %v344 = vld [vmem:[#allocation2 + $0x404] sm:$0xf]
    %v345 = vld [vmem:[#allocation2 + $0x408] sm:$0xf]
    %v346 = vld [vmem:[#allocation2 + $0x40c] sm:$0xf]
    %v347 = vld [vmem:[#allocation2 + $0x410] sm:$0xf]
    %v348 = vld [vmem:[#allocation2 + $0x414] sm:$0xf]
    %v349 = vld [vmem:[#allocation2 + $0x418] sm:$0xf]
    %v350 = vld [vmem:[#allocation2 + $0x41c] sm:$0xf]
    %v351 = vld [vmem:[#allocation2 + $0x420] sm:$0xf]
    %v352 = vld [vmem:[#allocation2 + $0x424] sm:$0xf]
    %v353 = vld [vmem:[#allocation2 + $0x428] sm:$0xf]
    %v354 = vld [vmem:[#allocation2 + $0x42c] sm:$0xf]
    %v355 = vld [vmem:[#allocation2 + $0x430] sm:$0xf]
    %v356 = vld [vmem:[#allocation2 + $0x434] sm:$0xf]
    %v357 = vld [vmem:[#allocation2 + $0x438] sm:$0xf]
    %v358 = vld [vmem:[#allocation2 + $0x43c] sm:$0xf]
    %v359 = vld [vmem:[#allocation2 + $0x440] sm:$0xf]
    %v360 = vld [vmem:[#allocation2 + $0x444] sm:$0xf]
    %v361 = vld [vmem:[#allocation2 + $0x448] sm:$0xf]
    %v362 = vld [vmem:[#allocation2 + $0x44c] sm:$0xf]
    %v363 = vld [vmem:[#allocation2 + $0x450] sm:$0xf]
    %v364 = vld [vmem:[#allocation2 + $0x454] sm:$0xf]
    %v365 = vld [vmem:[#allocation2 + $0x458] sm:$0xf]
    %v366 = vld [vmem:[#allocation2 + $0x45c] sm:$0xf]
    %v367 = vld [vmem:[#allocation2 + $0x460] sm:$0xf]
    %v368 = vld [vmem:[#allocation2 + $0x464] sm:$0xf]
    %v369 = vld [vmem:[#allocation2 + $0x468] sm:$0xf]
    %v370 = vld [vmem:[#allocation2 + $0x46c] sm:$0xf]
    %v371 = vld [vmem:[#allocation2 + $0x470] sm:$0xf]
    %v372 = vld [vmem:[#allocation2 + $0x474] sm:$0xf]
    %v373 = vld [vmem:[#allocation2 + $0x478] sm:$0xf]
    %v374 = vld [vmem:[#allocation2 + $0x47c] sm:$0xf]
    %v375 = vld [vmem:[#allocation2 + $0x480] sm:$0xf]
    %v376 = vld [vmem:[#allocation2 + $0x484] sm:$0xf]
    %v377 = vld [vmem:[#allocation2 + $0x488] sm:$0xf]
    %v378 = vld [vmem:[#allocation2 + $0x48c] sm:$0xf]
    %v379 = vld [vmem:[#allocation2 + $0x490] sm:$0xf]
    %v380 = vld [vmem:[#allocation2 + $0x494] sm:$0xf]
    %v381 = vld [vmem:[#allocation2 + $0x498] sm:$0xf]
    %v382 = vld [vmem:[#allocation2 + $0x49c] sm:$0xf]
    %v383 = vld [vmem:[#allocation2 + $0x4a0] sm:$0xf]
    %v384 = vld [vmem:[#allocation2 + $0x4a4] sm:$0xf]
    %v385 = vld [vmem:[#allocation2 + $0x4a8] sm:$0xf]
    %v386 = vld [vmem:[#allocation2 + $0x4ac] sm:$0xf]
    %v387 = vld [vmem:[#allocation2 + $0x4b0] sm:$0xf]
    %v388 = vld [vmem:[#allocation2 + $0x4b4] sm:$0xf]
    %v389 = vld [vmem:[#allocation2 + $0x4b8] sm:$0xf]
    %v390 = vld [vmem:[#allocation2 + $0x4bc] sm:$0xf]
    %v391 = vld [vmem:[#allocation2 + $0x4c0] sm:$0xf]
    %v392 = vld [vmem:[#allocation2 + $0x4c4] sm:$0xf]
    %v393 = vld [vmem:[#allocation2 + $0x4c8] sm:$0xf]
    %v394 = vld [vmem:[#allocation2 + $0x4cc] sm:$0xf]
    %v395 = vld [vmem:[#allocation2 + $0x4d0] sm:$0xf]
    %v396 = vld [vmem:[#allocation2 + $0x4d4] sm:$0xf]
    %v397 = vld [vmem:[#allocation2 + $0x4d8] sm:$0xf]
    %v398 = vld [vmem:[#allocation2 + $0x4dc] sm:$0xf]
    %v399 = vld [vmem:[#allocation2 + $0x4e0] sm:$0xf]
    %v400 = vld [vmem:[#allocation2 + $0x4e4] sm:$0xf]
    %v401 = vld [vmem:[#allocation2 + $0x4e8] sm:$0xf]
    %v402 = vld [vmem:[#allocation2 + $0x4ec] sm:$0xf]
    %v403 = vld [vmem:[#allocation2 + $0x4f0] sm:$0xf]
    %v404 = vld [vmem:[#allocation2 + $0x4f4] sm:$0xf]
    %v405 = vld [vmem:[#allocation2 + $0x4f8] sm:$0xf]
    %v406 = vld [vmem:[#allocation2 + $0x4fc] sm:$0xf]
    %v407 = vld [vmem:[#allocation2 + $0x500] sm:$0xf]
    %v408 = vld [vmem:[#allocation2 + $0x504] sm:$0xf]
    %v409 = vld [vmem:[#allocation2 + $0x508] sm:$0xf]
    %v410 = vld [vmem:[#allocation2 + $0x50c] sm:$0xf]
    %v411 = vld [vmem:[#allocation2 + $0x510] sm:$0xf]
    %v412 = vld [vmem:[#allocation2 + $0x514] sm:$0xf]
    %v413 = vld [vmem:[#allocation2 + $0x518] sm:$0xf]
    %v414 = vld [vmem:[#allocation2 + $0x51c] sm:$0xf]
    %v415 = vld [vmem:[#allocation2 + $0x520] sm:$0xf]
    %v416 = vld [vmem:[#allocation2 + $0x524] sm:$0xf]
    %v417 = vld [vmem:[#allocation2 + $0x528] sm:$0xf]
    %v418 = vld [vmem:[#allocation2 + $0x52c] sm:$0xf]
    %v419 = vld [vmem:[#allocation2 + $0x530] sm:$0xf]
    %v420 = vld [vmem:[#allocation2 + $0x534] sm:$0xf]
    %v421 = vld [vmem:[#allocation2 + $0x538] sm:$0xf]
    %v422 = vld [vmem:[#allocation2 + $0x53c] sm:$0xf]
    %v423 = vld [vmem:[#allocation2 + $0x540] sm:$0xf]
    %v424 = vld [vmem:[#allocation2 + $0x544] sm:$0xf]
    %v425 = vld [vmem:[#allocation2 + $0x548] sm:$0xf]
    %v426 = vld [vmem:[#allocation2 + $0x54c] sm:$0xf]
    %v427 = vld [vmem:[#allocation2 + $0x550] sm:$0xf]
    %v428 = vld [vmem:[#allocation2 + $0x554] sm:$0xf]
    %v429 = vld [vmem:[#allocation2 + $0x558] sm:$0xf]
    %v430 = vld [vmem:[#allocation2 + $0x55c] sm:$0xf]
    %v431 = vld [vmem:[#allocation2 + $0x560] sm:$0xf]
    %v432 = vld [vmem:[#allocation2 + $0x564] sm:$0xf]
    %v433 = vld [vmem:[#allocation2 + $0x568] sm:$0xf]
    %v434 = vld [vmem:[#allocation2 + $0x56c] sm:$0xf]
    %v435 = vld [vmem:[#allocation2 + $0x570] sm:$0xf]
    %v436 = vld [vmem:[#allocation2 + $0x574] sm:$0xf]
    %v437 = vld [vmem:[#allocation2 + $0x578] sm:$0xf]
    %v438 = vld [vmem:[#allocation2 + $0x57c] sm:$0xf]
    %v439 = vld [vmem:[#allocation2 + $0x580] sm:$0xf]
    %v440 = vld [vmem:[#allocation2 + $0x584] sm:$0xf]
    %v441 = vld [vmem:[#allocation2 + $0x588] sm:$0xf]
    %v442 = vld [vmem:[#allocation2 + $0x58c] sm:$0xf]
    %v443 = vld [vmem:[#allocation2 + $0x590] sm:$0xf]
    %v444 = vld [vmem:[#allocation2 + $0x594] sm:$0xf]
    %v445 = vld [vmem:[#allocation2 + $0x598] sm:$0xf]
    %v446 = vld [vmem:[#allocation2 + $0x59c] sm:$0xf]
    %v447 = vld [vmem:[#allocation2 + $0x5a0] sm:$0xf]
    %v448 = vld [vmem:[#allocation2 + $0x5a4] sm:$0xf]
    %v449 = vld [vmem:[#allocation2 + $0x5a8] sm:$0xf]
    %v450 = vld [vmem:[#allocation2 + $0x5ac] sm:$0xf]
    %v451 = vld [vmem:[#allocation2 + $0x5b0] sm:$0xf]
    %v452 = vld [vmem:[#allocation2 + $0x5b4] sm:$0xf]
    %v453 = vld [vmem:[#allocation2 + $0x5b8] sm:$0xf]
    %v454 = vld [vmem:[#allocation2 + $0x5bc] sm:$0xf]
    %v455 = vld [vmem:[#allocation2 + $0x5c0] sm:$0xf]
    %v456 = vld [vmem:[#allocation2 + $0x5c4] sm:$0xf]
    %v457 = vld [vmem:[#allocation2 + $0x5c8] sm:$0xf]
    %v458 = vld [vmem:[#allocation2 + $0x5cc] sm:$0xf]
    %v459 = vld [vmem:[#allocation2 + $0x5d0] sm:$0xf]
    %v460 = vld [vmem:[#allocation2 + $0x5d4] sm:$0xf]
    %v461 = vld [vmem:[#allocation2 + $0x5d8] sm:$0xf]
    %v462 = vld [vmem:[#allocation2 + $0x5dc] sm:$0xf]
    %v463 = vld [vmem:[#allocation2 + $0x5e0] sm:$0xf]
    %v464 = vld [vmem:[#allocation2 + $0x5e4] sm:$0xf]
    %v465 = vld [vmem:[#allocation2 + $0x5e8] sm:$0xf]
    %v466 = vld [vmem:[#allocation2 + $0x5ec] sm:$0xf]
    %v467 = vld [vmem:[#allocation2 + $0x5f0] sm:$0xf]
    %v468 = vld [vmem:[#allocation2 + $0x5f4] sm:$0xf]
    %v469 = vld [vmem:[#allocation2 + $0x5f8] sm:$0xf]
    %v470 = vld [vmem:[#allocation2 + $0x5fc] sm:$0xf]
    %v471 = vld [vmem:[#allocation2 + $0x600] sm:$0xf]
    %v472 = vld [vmem:[#allocation2 + $0x604] sm:$0xf]
    %v473 = vld [vmem:[#allocation2 + $0x608] sm:$0xf]
    %v474 = vld [vmem:[#allocation2 + $0x60c] sm:$0xf]
    %v475 = vld [vmem:[#allocation2 + $0x610] sm:$0xf]
    %v476 = vld [vmem:[#allocation2 + $0x614] sm:$0xf]
    %v477 = vld [vmem:[#allocation2 + $0x618] sm:$0xf]
    %v478 = vld [vmem:[#allocation2 + $0x61c] sm:$0xf]
    %v479 = vld [vmem:[#allocation2 + $0x620] sm:$0xf]
    %v480 = vld [vmem:[#allocation2 + $0x624] sm:$0xf]
    %v481 = vld [vmem:[#allocation2 + $0x628] sm:$0xf]
    %v482 = vld [vmem:[#allocation2 + $0x62c] sm:$0xf]
    %v483 = vld [vmem:[#allocation2 + $0x630] sm:$0xf]
    %v484 = vld [vmem:[#allocation2 + $0x634] sm:$0xf]
    %v485 = vld [vmem:[#allocation2 + $0x638] sm:$0xf]
    %v486 = vld [vmem:[#allocation2 + $0x63c] sm:$0xf]
    %v487 = vld [vmem:[#allocation2 + $0x640] sm:$0xf]
    %v488 = vld [vmem:[#allocation2 + $0x644] sm:$0xf]
    %v489 = vld [vmem:[#allocation2 + $0x648] sm:$0xf]
    %v490 = vld [vmem:[#allocation2 + $0x64c] sm:$0xf]
    %v491 = vld [vmem:[#allocation2 + $0x650] sm:$0xf]
    %v492 = vld [vmem:[#allocation2 + $0x654] sm:$0xf]
    %v493 = vld [vmem:[#allocation2 + $0x658] sm:$0xf]
    %v494 = vld [vmem:[#allocation2 + $0x65c] sm:$0xf]
    %v495 = vld [vmem:[#allocation2 + $0x660] sm:$0xf]
    %v496 = vld [vmem:[#allocation2 + $0x664] sm:$0xf]
    %v497 = vld [vmem:[#allocation2 + $0x668] sm:$0xf]
    %v498 = vld [vmem:[#allocation2 + $0x66c] sm:$0xf]
    %v499 = vld [vmem:[#allocation2 + $0x670] sm:$0xf]
    %v500 = vld [vmem:[#allocation2 + $0x674] sm:$0xf]
    %v501 = vld [vmem:[#allocation2 + $0x678] sm:$0xf]
    %v502 = vld [vmem:[#allocation2 + $0x67c] sm:$0xf]
    %v503 = vld [vmem:[#allocation2 + $0x680] sm:$0xf]
    %v504 = vld [vmem:[#allocation2 + $0x684] sm:$0xf]
    %v505 = vld [vmem:[#allocation2 + $0x688] sm:$0xf]
    %v506 = vld [vmem:[#allocation2 + $0x68c] sm:$0xf]
    %v507 = vld [vmem:[#allocation2 + $0x690] sm:$0xf]
    %v508 = vld [vmem:[#allocation2 + $0x694] sm:$0xf]
    %v509 = vld [vmem:[#allocation2 + $0x698] sm:$0xf]
    %v510 = vld [vmem:[#allocation2 + $0x69c] sm:$0xf]
    %v511 = vld [vmem:[#allocation2 + $0x6a0] sm:$0xf]
    %v512 = vld [vmem:[#allocation2 + $0x6a4] sm:$0xf]
    %v513 = vld [vmem:[#allocation2 + $0x6a8] sm:$0xf]
    %v514 = vld [vmem:[#allocation2 + $0x6ac] sm:$0xf]
    %v515 = vld [vmem:[#allocation2 + $0x6b0] sm:$0xf]
    %v516 = vld [vmem:[#allocation2 + $0x6b4] sm:$0xf]
    %v517 = vld [vmem:[#allocation2 + $0x6b8] sm:$0xf]
    %v518 = vld [vmem:[#allocation2 + $0x6bc] sm:$0xf]
    %v519 = vld [vmem:[#allocation2 + $0x6c0] sm:$0xf]
    %v520 = vld [vmem:[#allocation2 + $0x6c4] sm:$0xf]
    %v521 = vld [vmem:[#allocation2 + $0x6c8] sm:$0xf]
    %v522 = vld [vmem:[#allocation2 + $0x6cc] sm:$0xf]
    %v523 = vld [vmem:[#allocation2 + $0x6d0] sm:$0xf]
    %v524 = vld [vmem:[#allocation2 + $0x6d4] sm:$0xf]
    %v525 = vld [vmem:[#allocation2 + $0x6d8] sm:$0xf]
    %v526 = vld [vmem:[#allocation2 + $0x6dc] sm:$0xf]
    %v527 = vld [vmem:[#allocation2 + $0x6e0] sm:$0xf]
    %v528 = vld [vmem:[#allocation2 + $0x6e4] sm:$0xf]
    %v529 = vld [vmem:[#allocation2 + $0x6e8] sm:$0xf]
    %v530 = vld [vmem:[#allocation2 + $0x6ec] sm:$0xf]
    %v531 = vld [vmem:[#allocation2 + $0x6f0] sm:$0xf]
    %v532 = vld [vmem:[#allocation2 + $0x6f4] sm:$0xf]
    %v533 = vld [vmem:[#allocation2 + $0x6f8] sm:$0xf]
    %v534 = vld [vmem:[#allocation2 + $0x6fc] sm:$0xf]
    %v535 = vld [vmem:[#allocation2 + $0x700] sm:$0xf]
    %v536 = vld [vmem:[#allocation2 + $0x704] sm:$0xf]
    %v537 = vld [vmem:[#allocation2 + $0x708] sm:$0xf]
    %v538 = vld [vmem:[#allocation2 + $0x70c] sm:$0xf]
    %v539 = vld [vmem:[#allocation2 + $0x710] sm:$0xf]
    %v540 = vld [vmem:[#allocation2 + $0x714] sm:$0xf]
    %v541 = vld [vmem:[#allocation2 + $0x718] sm:$0xf]
    %v542 = vld [vmem:[#allocation2 + $0x71c] sm:$0xf]
    %v543 = vld [vmem:[#allocation2 + $0x720] sm:$0xf]
    %v544 = vld [vmem:[#allocation2 + $0x724] sm:$0xf]
    %v545 = vld [vmem:[#allocation2 + $0x728] sm:$0xf]
    %v546 = vld [vmem:[#allocation2 + $0x72c] sm:$0xf]
    %v547 = vld [vmem:[#allocation2 + $0x730] sm:$0xf]
    %v548 = vld [vmem:[#allocation2 + $0x734] sm:$0xf]
    %v549 = vld [vmem:[#allocation2 + $0x738] sm:$0xf]
    %v550 = vld [vmem:[#allocation2 + $0x73c] sm:$0xf]
    %v551 = vld [vmem:[#allocation2 + $0x740] sm:$0xf]
    %v552 = vld [vmem:[#allocation2 + $0x744] sm:$0xf]
    %v553 = vld [vmem:[#allocation2 + $0x748] sm:$0xf]
    %v554 = vld [vmem:[#allocation2 + $0x74c] sm:$0xf]
    %v555 = vld [vmem:[#allocation2 + $0x750] sm:$0xf]
    %v556 = vld [vmem:[#allocation2 + $0x754] sm:$0xf]
    %v557 = vld [vmem:[#allocation2 + $0x758] sm:$0xf]
    %v558 = vld [vmem:[#allocation2 + $0x75c] sm:$0xf]
    %v559 = vld [vmem:[#allocation2 + $0x760] sm:$0xf]
    %v560 = vld [vmem:[#allocation2 + $0x764] sm:$0xf]
    %v561 = vld [vmem:[#allocation2 + $0x768] sm:$0xf]
    %v562 = vld [vmem:[#allocation2 + $0x76c] sm:$0xf]
    %v563 = vld [vmem:[#allocation2 + $0x770] sm:$0xf]
    %v564 = vld [vmem:[#allocation2 + $0x774] sm:$0xf]
    %v565 = vld [vmem:[#allocation2 + $0x778] sm:$0xf]
    %v566 = vld [vmem:[#allocation2 + $0x77c] sm:$0xf]
    %v567 = vld [vmem:[#allocation2 + $0x780] sm:$0xf]
    %v568 = vld [vmem:[#allocation2 + $0x784] sm:$0xf]
    %v569 = vld [vmem:[#allocation2 + $0x788] sm:$0xf]
    %v570 = vld [vmem:[#allocation2 + $0x78c] sm:$0xf]
    %v571 = vld [vmem:[#allocation2 + $0x790] sm:$0xf]
    %v572 = vld [vmem:[#allocation2 + $0x794] sm:$0xf]
    %v573 = vld [vmem:[#allocation2 + $0x798] sm:$0xf]
    %v574 = vld [vmem:[#allocation2 + $0x79c] sm:$0xf]
    %v575 = vld [vmem:[#allocation2 + $0x7a0] sm:$0xf]
    %v576 = vld [vmem:[#allocation2 + $0x7a4] sm:$0xf]
    %v577 = vld [vmem:[#allocation2 + $0x7a8] sm:$0xf]
    %v578 = vld [vmem:[#allocation2 + $0x7ac] sm:$0xf]
    %v579 = vld [vmem:[#allocation2 + $0x7b0] sm:$0xf]
    %v580 = vld [vmem:[#allocation2 + $0x7b4] sm:$0xf]
    %v581 = vld [vmem:[#allocation2 + $0x7b8] sm:$0xf]
    %v582 = vld [vmem:[#allocation2 + $0x7bc] sm:$0xf]
    %v583 = vld [vmem:[#allocation2 + $0x7c0] sm:$0xf]
    %v584 = vld [vmem:[#allocation2 + $0x7c4] sm:$0xf]
    %v585 = vld [vmem:[#allocation2 + $0x7c8] sm:$0xf]
    %v586 = vld [vmem:[#allocation2 + $0x7cc] sm:$0xf]
    %v587 = vld [vmem:[#allocation2 + $0x7d0] sm:$0xf]
    %v588 = vld [vmem:[#allocation2 + $0x7d4] sm:$0xf]
    %v589 = vld [vmem:[#allocation2 + $0x7d8] sm:$0xf]
    %v590 = vld [vmem:[#allocation2 + $0x7dc] sm:$0xf]
    %v591 = vld [vmem:[#allocation2 + $0x7e0] sm:$0xf]
    %v592 = vld [vmem:[#allocation2 + $0x7e4] sm:$0xf]
    %v593 = vld [vmem:[#allocation2 + $0x7e8] sm:$0xf]
    %v594 = vld [vmem:[#allocation2 + $0x7ec] sm:$0xf]
    %v595 = vld [vmem:[#allocation2 + $0x7f0] sm:$0xf]
    %v596 = vld [vmem:[#allocation2 + $0x7f4] sm:$0xf]
    %v597 = vld [vmem:[#allocation2 + $0x7f8] sm:$0xf]
    %v598 = vld [vmem:[#allocation2 + $0x7fc] sm:$0xf]
    %v599 = vld [vmem:[#allocation2 + $0x800] sm:$0xf]
    %v600 = vld [vmem:[#allocation2 + $0x804] sm:$0xf]
    %v601 = vld [vmem:[#allocation2 + $0x808] sm:$0xf]
    %v602 = vld [vmem:[#allocation2 + $0x80c] sm:$0xf]
    %v603 = vld [vmem:[#allocation2 + $0x810] sm:$0xf]
    %v604 = vld [vmem:[#allocation2 + $0x814] sm:$0xf]
    %v605 = vld [vmem:[#allocation2 + $0x818] sm:$0xf]
    %v606 = vld [vmem:[#allocation2 + $0x81c] sm:$0xf]
    %v607 = vld [vmem:[#allocation2 + $0x820] sm:$0xf]
    %v608 = vld [vmem:[#allocation2 + $0x824] sm:$0xf]
    %v609 = vld [vmem:[#allocation2 + $0x828] sm:$0xf]
    %v610 = vld [vmem:[#allocation2 + $0x82c] sm:$0xf]
    %v611 = vld [vmem:[#allocation2 + $0x830] sm:$0xf]
    %v612 = vld [vmem:[#allocation2 + $0x834] sm:$0xf]
    %v613 = vld [vmem:[#allocation2 + $0x838] sm:$0xf]
    %v614 = vld [vmem:[#allocation2 + $0x83c] sm:$0xf]
    %v615 = vld [vmem:[#allocation2 + $0x840] sm:$0xf]
    %v616 = vld [vmem:[#allocation2 + $0x844] sm:$0xf]
    %v617 = vld [vmem:[#allocation2 + $0x848] sm:$0xf]
    %v618 = vld [vmem:[#allocation2 + $0x84c] sm:$0xf]
    %v619 = vld [vmem:[#allocation2 + $0x850] sm:$0xf]
    %v620 = vld [vmem:[#allocation2 + $0x854] sm:$0xf]
    %v621 = vld [vmem:[#allocation2 + $0x858] sm:$0xf]
    %v622 = vld [vmem:[#allocation2 + $0x85c] sm:$0xf]
    %v623 = vld [vmem:[#allocation2 + $0x860] sm:$0xf]
    %v624 = vld [vmem:[#allocation2 + $0x864] sm:$0xf]
    %v625 = vld [vmem:[#allocation2 + $0x868] sm:$0xf]
    %v626 = vld [vmem:[#allocation2 + $0x86c] sm:$0xf]
    %v627 = vld [vmem:[#allocation2 + $0x870] sm:$0xf]
    %v628 = vld [vmem:[#allocation2 + $0x874] sm:$0xf]
    %v629 = vld [vmem:[#allocation2 + $0x878] sm:$0xf]
    %v630 = vld [vmem:[#allocation2 + $0x87c] sm:$0xf]
    %v631 = vld [vmem:[#allocation2 + $0x880] sm:$0xf]
    %v632 = vld [vmem:[#allocation2 + $0x884] sm:$0xf]
    %v633 = vld [vmem:[#allocation2 + $0x888] sm:$0xf]
    %v634 = vld [vmem:[#allocation2 + $0x88c] sm:$0xf]
    %v635 = vld [vmem:[#allocation2 + $0x890] sm:$0xf]
    %v636 = vld [vmem:[#allocation2 + $0x894] sm:$0xf]
    %v637 = vld [vmem:[#allocation2 + $0x898] sm:$0xf]
    %v638 = vld [vmem:[#allocation2 + $0x89c] sm:$0xf]
    %v639 = vld [vmem:[#allocation2 + $0x8a0] sm:$0xf]
    %v640 = vld [vmem:[#allocation2 + $0x8a4] sm:$0xf]
    %v641 = vld [vmem:[#allocation2 + $0x8a8] sm:$0xf]
    %v642 = vld [vmem:[#allocation2 + $0x8ac] sm:$0xf]
    %v643 = vld [vmem:[#allocation2 + $0x8b0] sm:$0xf]
    %v644 = vld [vmem:[#allocation2 + $0x8b4] sm:$0xf]
    %v645 = vld [vmem:[#allocation2 + $0x8b8] sm:$0xf]
    %v646 = vld [vmem:[#allocation2 + $0x8bc] sm:$0xf]
    %v647 = vld [vmem:[#allocation2 + $0x8c0] sm:$0xf]
    %v648 = vld [vmem:[#allocation2 + $0x8c4] sm:$0xf]
    %v649 = vld [vmem:[#allocation2 + $0x8c8] sm:$0xf]
    %v650 = vld [vmem:[#allocation2 + $0x8cc] sm:$0xf]
    %v651 = vld [vmem:[#allocation2 + $0x8d0] sm:$0xf]
    %v652 = vld [vmem:[#allocation2 + $0x8d4] sm:$0xf]
    %v653 = vld [vmem:[#allocation2 + $0x8d8] sm:$0xf]
    %v654 = vld [vmem:[#allocation2 + $0x8dc] sm:$0xf]
    %v655 = vld [vmem:[#allocation2 + $0x8e0] sm:$0xf]
    %v656 = vld [vmem:[#allocation2 + $0x8e4] sm:$0xf]
    %v657 = vld [vmem:[#allocation2 + $0x8e8] sm:$0xf]
    %v658 = vld [vmem:[#allocation2 + $0x8ec] sm:$0xf]
    %v659 = vld [vmem:[#allocation2 + $0x8f0] sm:$0xf]
    %v660 = vld [vmem:[#allocation2 + $0x8f4] sm:$0xf]
    %v661 = vld [vmem:[#allocation2 + $0x8f8] sm:$0xf]
    %v662 = vld [vmem:[#allocation2 + $0x8fc] sm:$0xf]
    %v663 = vld [vmem:[#allocation2 + $0x900] sm:$0xf]
    %v664 = vld [vmem:[#allocation2 + $0x904] sm:$0xf]
    %v665 = vld [vmem:[#allocation2 + $0x908] sm:$0xf]
    %v666 = vld [vmem:[#allocation2 + $0x90c] sm:$0xf]
    %v667 = vld [vmem:[#allocation2 + $0x910] sm:$0xf]
    %v668 = vld [vmem:[#allocation2 + $0x914] sm:$0xf]
    %v669 = vld [vmem:[#allocation2 + $0x918] sm:$0xf]
    %v670 = vld [vmem:[#allocation2 + $0x91c] sm:$0xf]
    %v671 = vld [vmem:[#allocation2 + $0x920] sm:$0xf]
    %v672 = vld [vmem:[#allocation2 + $0x924] sm:$0xf]
    %v673 = vld [vmem:[#allocation2 + $0x928] sm:$0xf]
    %v674 = vld [vmem:[#allocation2 + $0x92c] sm:$0xf]
    %v675 = vld [vmem:[#allocation2 + $0x930] sm:$0xf]
    %v676 = vld [vmem:[#allocation2 + $0x934] sm:$0xf]
    %v677 = vld [vmem:[#allocation2 + $0x938] sm:$0xf]
    %v678 = vld [vmem:[#allocation2 + $0x93c] sm:$0xf]
    %v679 = vld [vmem:[#allocation2 + $0x940] sm:$0xf]
    %v680 = vld [vmem:[#allocation2 + $0x944] sm:$0xf]
    %v681 = vld [vmem:[#allocation2 + $0x948] sm:$0xf]
    %v682 = vld [vmem:[#allocation2 + $0x94c] sm:$0xf]
    %v683 = vld [vmem:[#allocation2 + $0x950] sm:$0xf]
    %v684 = vld [vmem:[#allocation2 + $0x954] sm:$0xf]
    %v685 = vld [vmem:[#allocation2 + $0x958] sm:$0xf]
    %v686 = vld [vmem:[#allocation2 + $0x95c] sm:$0xf]
    %v687 = vld [vmem:[#allocation2 + $0x960] sm:$0xf]
    %v688 = vld [vmem:[#allocation2 + $0x964] sm:$0xf]
    %v689 = vld [vmem:[#allocation2 + $0x968] sm:$0xf]
    %v690 = vld [vmem:[#allocation2 + $0x96c] sm:$0xf]
    %v691 = vld [vmem:[#allocation2 + $0x970] sm:$0xf]
    %v692 = vld [vmem:[#allocation2 + $0x974] sm:$0xf]
    %v693 = vld [vmem:[#allocation2 + $0x978] sm:$0xf]
    %v694 = vld [vmem:[#allocation2 + $0x97c] sm:$0xf]
    %v695 = vld [vmem:[#allocation2 + $0x980] sm:$0xf]
    %v696 = vld [vmem:[#allocation2 + $0x984] sm:$0xf]
    %v697 = vld [vmem:[#allocation2 + $0x988] sm:$0xf]
    %v698 = vld [vmem:[#allocation2 + $0x98c] sm:$0xf]
    %v699 = vld [vmem:[#allocation2 + $0x990] sm:$0xf]
    %v700 = vld [vmem:[#allocation2 + $0x994] sm:$0xf]
    %v701 = vld [vmem:[#allocation2 + $0x998] sm:$0xf]
    %v702 = vld [vmem:[#allocation2 + $0x99c] sm:$0xf]
    %v703 = vld [vmem:[#allocation2 + $0x9a0] sm:$0xf]
    %v704 = vld [vmem:[#allocation2 + $0x9a4] sm:$0xf]
    %v705 = vld [vmem:[#allocation2 + $0x9a8] sm:$0xf]
    %v706 = vld [vmem:[#allocation2 + $0x9ac] sm:$0xf]
    %v707 = vld [vmem:[#allocation2 + $0x9b0] sm:$0xf]
    %v708 = vld [vmem:[#allocation2 + $0x9b4] sm:$0xf]
    %v709 = vld [vmem:[#allocation2 + $0x9b8] sm:$0xf]
    %v710 = vld [vmem:[#allocation2 + $0x9bc] sm:$0xf]
    %v711 = vld [vmem:[#allocation2 + $0x9c0] sm:$0xf]
    %v712 = vld [vmem:[#allocation2 + $0x9c4] sm:$0xf]
    %v713 = vld [vmem:[#allocation2 + $0x9c8] sm:$0xf]
    %v714 = vld [vmem:[#allocation2 + $0x9cc] sm:$0xf]
    %v715 = vld [vmem:[#allocation2 + $0x9d0] sm:$0xf]
    %v716 = vld [vmem:[#allocation2 + $0x9d4] sm:$0xf]
    %v717 = vld [vmem:[#allocation2 + $0x9d8] sm:$0xf]
    %v718 = vld [vmem:[#allocation2 + $0x9dc] sm:$0xf]
    %v719 = vld [vmem:[#allocation2 + $0x9e0] sm:$0xf]
    %v720 = vld [vmem:[#allocation2 + $0x9e4] sm:$0xf]
    %v721 = vld [vmem:[#allocation2 + $0x9e8] sm:$0xf]
    %v722 = vld [vmem:[#allocation2 + $0x9ec] sm:$0xf]
    %v723 = vld [vmem:[#allocation2 + $0x9f0] sm:$0xf]
    %v724 = vld [vmem:[#allocation2 + $0x9f4] sm:$0xf]
    %v725 = vld [vmem:[#allocation2 + $0x9f8] sm:$0xf]
    %v726 = vld [vmem:[#allocation2 + $0x9fc] sm:$0xf]
    %v727 = vld [vmem:[#allocation2 + $0xa00] sm:$0xf]
    %v728 = vld [vmem:[#allocation2 + $0xa04] sm:$0xf]
    %v729 = vld [vmem:[#allocation2 + $0xa08] sm:$0xf]
    %v730 = vld [vmem:[#allocation2 + $0xa0c] sm:$0xf]
    %v731 = vld [vmem:[#allocation2 + $0xa10] sm:$0xf]
    %v732 = vld [vmem:[#allocation2 + $0xa14] sm:$0xf]
    %v733 = vld [vmem:[#allocation2 + $0xa18] sm:$0xf]
    %v734 = vld [vmem:[#allocation2 + $0xa1c] sm:$0xf]
    %v735 = vld [vmem:[#allocation2 + $0xa20] sm:$0xf]
    %v736 = vld [vmem:[#allocation2 + $0xa24] sm:$0xf]
    %v737 = vld [vmem:[#allocation2 + $0xa28] sm:$0xf]
    %v738 = vld [vmem:[#allocation2 + $0xa2c] sm:$0xf]
    %v739 = vld [vmem:[#allocation2 + $0xa30] sm:$0xf]
    %v740 = vld [vmem:[#allocation2 + $0xa34] sm:$0xf]
    %v741 = vld [vmem:[#allocation2 + $0xa38] sm:$0xf]
    %v742 = vld [vmem:[#allocation2 + $0xa3c] sm:$0xf]
    %v743 = vld [vmem:[#allocation2 + $0xa40] sm:$0xf]
    %v744 = vld [vmem:[#allocation2 + $0xa44] sm:$0xf]
    %v745 = vld [vmem:[#allocation2 + $0xa48] sm:$0xf]
    %v746 = vld [vmem:[#allocation2 + $0xa4c] sm:$0xf]
    %v747 = vld [vmem:[#allocation2 + $0xa50] sm:$0xf]
    %v748 = vld [vmem:[#allocation2 + $0xa54] sm:$0xf]
    %v749 = vld [vmem:[#allocation2 + $0xa58] sm:$0xf]
    %v750 = vld [vmem:[#allocation2 + $0xa5c] sm:$0xf]
    %v751 = vld [vmem:[#allocation2 + $0xa60] sm:$0xf]
    %v752 = vld [vmem:[#allocation2 + $0xa64] sm:$0xf]
    %v753 = vld [vmem:[#allocation2 + $0xa68] sm:$0xf]
    %v754 = vld [vmem:[#allocation2 + $0xa6c] sm:$0xf]
    %v755 = vld [vmem:[#allocation2 + $0xa70] sm:$0xf]
    %v756 = vld [vmem:[#allocation2 + $0xa74] sm:$0xf]
    %v757 = vld [vmem:[#allocation2 + $0xa78] sm:$0xf]
    %v758 = vld [vmem:[#allocation2 + $0xa7c] sm:$0xf]
    %v759 = vld [vmem:[#allocation2 + $0xa80] sm:$0xf]
    %v760 = vld [vmem:[#allocation2 + $0xa84] sm:$0xf]
    %v761 = vld [vmem:[#allocation2 + $0xa88] sm:$0xf]
    %v762 = vld [vmem:[#allocation2 + $0xa8c] sm:$0xf]
    %v763 = vld [vmem:[#allocation2 + $0xa90] sm:$0xf]
    %v764 = vld [vmem:[#allocation2 + $0xa94] sm:$0xf]
    %v765 = vld [vmem:[#allocation2 + $0xa98] sm:$0xf]
    %v766 = vld [vmem:[#allocation2 + $0xa9c] sm:$0xf]
    %v767 = vld [vmem:[#allocation2 + $0xaa0] sm:$0xf]
    %v768 = vld [vmem:[#allocation2 + $0xaa4] sm:$0xf]
    %v769 = vld [vmem:[#allocation2 + $0xaa8] sm:$0xf]
    %v770 = vld [vmem:[#allocation2 + $0xaac] sm:$0xf]
    %v771 = vld [vmem:[#allocation2 + $0xab0] sm:$0xf]
    %v772 = vld [vmem:[#allocation2 + $0xab4] sm:$0xf]
    %v773 = vld [vmem:[#allocation2 + $0xab8] sm:$0xf]
    %v774 = vld [vmem:[#allocation2 + $0xabc] sm:$0xf]
    %v775 = vld [vmem:[#allocation2 + $0xac0] sm:$0xf]
    %v776 = vld [vmem:[#allocation2 + $0xac4] sm:$0xf]
    %v777 = vld [vmem:[#allocation2 + $0xac8] sm:$0xf]
    %v778 = vld [vmem:[#allocation2 + $0xacc] sm:$0xf]
    %v779 = vld [vmem:[#allocation2 + $0xad0] sm:$0xf]
    %v780 = vld [vmem:[#allocation2 + $0xad4] sm:$0xf]
    %v781 = vld [vmem:[#allocation2 + $0xad8] sm:$0xf]
    %v782 = vld [vmem:[#allocation2 + $0xadc] sm:$0xf]
    %v783 = vld [vmem:[#allocation2 + $0xae0] sm:$0xf]
    %v784 = vld [vmem:[#allocation2 + $0xae4] sm:$0xf]
    %v785 = vld [vmem:[#allocation2 + $0xae8] sm:$0xf]
    %v786 = vld [vmem:[#allocation2 + $0xaec] sm:$0xf]
    %v787 = vld [vmem:[#allocation2 + $0xaf0] sm:$0xf]
    %v788 = vld [vmem:[#allocation2 + $0xaf4] sm:$0xf]
    %v789 = vld [vmem:[#allocation2 + $0xaf8] sm:$0xf]
    %v790 = vld [vmem:[#allocation2 + $0xafc] sm:$0xf]
    %v791 = vld [vmem:[#allocation2 + $0xb00] sm:$0xf]
    %v792 = vld [vmem:[#allocation2 + $0xb04] sm:$0xf]
    %v793 = vld [vmem:[#allocation2 + $0xb08] sm:$0xf]
    %v794 = vld [vmem:[#allocation2 + $0xb0c] sm:$0xf]
    %v795 = vld [vmem:[#allocation2 + $0xb10] sm:$0xf]
    %v796 = vld [vmem:[#allocation2 + $0xb14] sm:$0xf]
    %v797 = vld [vmem:[#allocation2 + $0xb18] sm:$0xf]
    %v798 = vld [vmem:[#allocation2 + $0xb1c] sm:$0xf]
    %v799 = vld [vmem:[#allocation2 + $0xb20] sm:$0xf]
    %v800 = vld [vmem:[#allocation2 + $0xb24] sm:$0xf]
    %v801 = vld [vmem:[#allocation2 + $0xb28] sm:$0xf]
    %v802 = vld [vmem:[#allocation2 + $0xb2c] sm:$0xf]
    %v803 = vld [vmem:[#allocation2 + $0xb30] sm:$0xf]
    %v804 = vld [vmem:[#allocation2 + $0xb34] sm:$0xf]
    %v805 = vld [vmem:[#allocation2 + $0xb38] sm:$0xf]
    %v806 = vld [vmem:[#allocation2 + $0xb3c] sm:$0xf]
    %v807 = vld [vmem:[#allocation2 + $0xb40] sm:$0xf]
    %v808 = vld [vmem:[#allocation2 + $0xb44] sm:$0xf]
    %v809 = vld [vmem:[#allocation2 + $0xb48] sm:$0xf]
    %v810 = vld [vmem:[#allocation2 + $0xb4c] sm:$0xf]
    %v811 = vld [vmem:[#allocation2 + $0xb50] sm:$0xf]
    %v812 = vld [vmem:[#allocation2 + $0xb54] sm:$0xf]
    %v813 = vld [vmem:[#allocation2 + $0xb58] sm:$0xf]
    %v814 = vld [vmem:[#allocation2 + $0xb5c] sm:$0xf]
    %v815 = vld [vmem:[#allocation2 + $0xb60] sm:$0xf]
    %v816 = vld [vmem:[#allocation2 + $0xb64] sm:$0xf]
    %v817 = vld [vmem:[#allocation2 + $0xb68] sm:$0xf]
    %v818 = vld [vmem:[#allocation2 + $0xb6c] sm:$0xf]
    %v819 = vld [vmem:[#allocation2 + $0xb70] sm:$0xf]
    %v820 = vld [vmem:[#allocation2 + $0xb74] sm:$0xf]
    %v821 = vld [vmem:[#allocation2 + $0xb78] sm:$0xf]
    %v822 = vld [vmem:[#allocation2 + $0xb7c] sm:$0xf]
    %v823 = vld [vmem:[#allocation2 + $0xb80] sm:$0xf]
    %v824 = vld [vmem:[#allocation2 + $0xb84] sm:$0xf]
    %v825 = vld [vmem:[#allocation2 + $0xb88] sm:$0xf]
    %v826 = vld [vmem:[#allocation2 + $0xb8c] sm:$0xf]
    %v827 = vld [vmem:[#allocation2 + $0xb90] sm:$0xf]
    %v828 = vld [vmem:[#allocation2 + $0xb94] sm:$0xf]
    %v829 = vld [vmem:[#allocation2 + $0xb98] sm:$0xf]
    %v830 = vld [vmem:[#allocation2 + $0xb9c] sm:$0xf]
    %v831 = vld [vmem:[#allocation2 + $0xba0] sm:$0xf]
    %v832 = vld [vmem:[#allocation2 + $0xba4] sm:$0xf]
    %v833 = vld [vmem:[#allocation2 + $0xba8] sm:$0xf]
    %v834 = vld [vmem:[#allocation2 + $0xbac] sm:$0xf]
    %v835 = vld [vmem:[#allocation2 + $0xbb0] sm:$0xf]
    %v836 = vld [vmem:[#allocation2 + $0xbb4] sm:$0xf]
    %v837 = vld [vmem:[#allocation2 + $0xbb8] sm:$0xf]
    %v838 = vld [vmem:[#allocation2 + $0xbbc] sm:$0xf]
    %v839 = vld [vmem:[#allocation2 + $0xbc0] sm:$0xf]
    %v840 = vld [vmem:[#allocation2 + $0xbc4] sm:$0xf]
    %v841 = vld [vmem:[#allocation2 + $0xbc8] sm:$0xf]
    %v842 = vld [vmem:[#allocation2 + $0xbcc] sm:$0xf]
    %v843 = vld [vmem:[#allocation2 + $0xbd0] sm:$0xf]
    %v844 = vld [vmem:[#allocation2 + $0xbd4] sm:$0xf]
    %v845 = vld [vmem:[#allocation2 + $0xbd8] sm:$0xf]
    %v846 = vld [vmem:[#allocation2 + $0xbdc] sm:$0xf]
    %v847 = vld [vmem:[#allocation2 + $0xbe0] sm:$0xf]
    %v848 = vld [vmem:[#allocation2 + $0xbe4] sm:$0xf]
    %v849 = vld [vmem:[#allocation2 + $0xbe8] sm:$0xf]
    %v850 = vld [vmem:[#allocation2 + $0xbec] sm:$0xf]
    %v851 = vld [vmem:[#allocation2 + $0xbf0] sm:$0xf]
    %v852 = vld [vmem:[#allocation2 + $0xbf4] sm:$0xf]
    %v853 = vld [vmem:[#allocation2 + $0xbf8] sm:$0xf]
    %v854 = vld [vmem:[#allocation2 + $0xbfc] sm:$0xf]
    %v855 = vld [vmem:[#allocation2 + $0xc00] sm:$0xf]
    %v856 = vld [vmem:[#allocation2 + $0xc04] sm:$0xf]
    %v857 = vld [vmem:[#allocation2 + $0xc08] sm:$0xf]
    %v858 = vld [vmem:[#allocation2 + $0xc0c] sm:$0xf]
    %v859 = vld [vmem:[#allocation2 + $0xc10] sm:$0xf]
    %v860 = vld [vmem:[#allocation2 + $0xc14] sm:$0xf]
    %v861 = vld [vmem:[#allocation2 + $0xc18] sm:$0xf]
    %v862 = vld [vmem:[#allocation2 + $0xc1c] sm:$0xf]
    %v863 = vld [vmem:[#allocation2 + $0xc20] sm:$0xf]
    %v864 = vld [vmem:[#allocation2 + $0xc24] sm:$0xf]
    %v865 = vld [vmem:[#allocation2 + $0xc28] sm:$0xf]
    %v866 = vld [vmem:[#allocation2 + $0xc2c] sm:$0xf]
    %v867 = vld [vmem:[#allocation2 + $0xc30] sm:$0xf]
    %v868 = vld [vmem:[#allocation2 + $0xc34] sm:$0xf]
    %v869 = vld [vmem:[#allocation2 + $0xc38] sm:$0xf]
    %v870 = vld [vmem:[#allocation2 + $0xc3c] sm:$0xf]
    %v871 = vld [vmem:[#allocation5] sm:$0x1]
    %v873 = vperm.slane %v871, 0
    %876 = vst [vmem:[#allocation1] ss:$9 sm:$0xff] %v80
    %v877 = vld [vmem:[#allocation1] sm:$0xff]
    %v878 = vld [vmem:[#allocation1 + $0x9] sm:$0xff]
    %v879 = vld [vmem:[#allocation1 + $0x12] sm:$0xff]
    %v880 = vld [vmem:[#allocation1 + $0x1b] sm:$0xff]
    %v881 = vld [vmem:[#allocation1 + $0x24] sm:$0xff]
    %v882 = vld [vmem:[#allocation1 + $0x2d] sm:$0xff]
    %v883 = vld [vmem:[#allocation1 + $0x36] sm:$0xff]
    %v884 = vld [vmem:[#allocation1 + $0x3f] sm:$0xff]
    %886 = vst [vmem:[#allocation1] ss:$9 sm:$0xff] %v81
    %v887 = vld [vmem:[#allocation1] sm:$0xff]
    %v888 = vld [vmem:[#allocation1 + $0x9] sm:$0xff]
    %v889 = vld [vmem:[#allocation1 + $0x12] sm:$0xff]
    %v890 = vld [vmem:[#allocation1 + $0x1b] sm:$0xff]
    %v891 = vld [vmem:[#allocation1 + $0x24] sm:$0xff]
    %v892 = vld [vmem:[#allocation1 + $0x2d] sm:$0xff]
    %v893 = vld [vmem:[#allocation1 + $0x36] sm:$0xff]
    %v894 = vld [vmem:[#allocation1 + $0x3f] sm:$0xff]
    %896 = vst [vmem:[#allocation1] ss:$9 sm:$0xff] %v82
    %v897 = vld [vmem:[#allocation1] sm:$0xff]
    %v898 = vld [vmem:[#allocation1 + $0x9] sm:$0xff]
    %v899 = vld [vmem:[#allocation1 + $0x12] sm:$0xff]
    %v900 = vld [vmem:[#allocation1 + $0x1b] sm:$0xff]
    %v901 = vld [vmem:[#allocation1 + $0x24] sm:$0xff]
    %v902 = vld [vmem:[#allocation1 + $0x2d] sm:$0xff]
    %v903 = vld [vmem:[#allocation1 + $0x36] sm:$0xff]
    %v904 = vld [vmem:[#allocation1 + $0x3f] sm:$0xff]
    %906 = vst [vmem:[#allocation1] ss:$9 sm:$0xff] %v83
    %v907 = vld [vmem:[#allocation1] sm:$0xff]
    %v908 = vld [vmem:[#allocation1 + $0x9] sm:$0xff]
    %v909 = vld [vmem:[#allocation1 + $0x12] sm:$0xff]
    %v910 = vld [vmem:[#allocation1 + $0x1b] sm:$0xff]
    %v911 = vld [vmem:[#allocation1 + $0x24] sm:$0xff]
    %v912 = vld [vmem:[#allocation1 + $0x2d] sm:$0xff]
    %v913 = vld [vmem:[#allocation1 + $0x36] sm:$0xff]
    %v914 = vld [vmem:[#allocation1 + $0x3f] sm:$0xff]
    %916 = vst [vmem:[#allocation1] ss:$9 sm:$0xff] %v84
    %v917 = vld [vmem:[#allocation1] sm:$0xff]
    %v918 = vld [vmem:[#allocation1 + $0x9] sm:$0xff]
    %v919 = vld [vmem:[#allocation1 + $0x12] sm:$0xff]
    %v920 = vld [vmem:[#allocation1 + $0x1b] sm:$0xff]
    %v921 = vld [vmem:[#allocation1 + $0x24] sm:$0xff]
    %v922 = vld [vmem:[#allocation1 + $0x2d] sm:$0xff]
    %v923 = vld [vmem:[#allocation1 + $0x36] sm:$0xff]
    %v924 = vld [vmem:[#allocation1 + $0x3f] sm:$0xff]
    %926 = vst [vmem:[#allocation1] ss:$9 sm:$0xff] %v85
    %v927 = vld [vmem:[#allocation1] sm:$0xff]
    %v928 = vld [vmem:[#allocation1 + $0x9] sm:$0xff]
    %v929 = vld [vmem:[#allocation1 + $0x12] sm:$0xff]
    %v930 = vld [vmem:[#allocation1 + $0x1b] sm:$0xff]
    %v931 = vld [vmem:[#allocation1 + $0x24] sm:$0xff]
    %v932 = vld [vmem:[#allocation1 + $0x2d] sm:$0xff]
    %v933 = vld [vmem:[#allocation1 + $0x36] sm:$0xff]
    %v934 = vld [vmem:[#allocation1 + $0x3f] sm:$0xff]
    %936 = vst [vmem:[#allocation1] ss:$9 sm:$0xff] %v86
    %v937 = vld [vmem:[#allocation1] sm:$0xff]
    %v1771 = vunpack.c.l.b16 %v87
    %v1772 = vunpack.c.l.b16 %v88
    %v1773 = vunpack.c.l.b16 %v89
    %v1774 = vunpack.c.l.b16 %v90
    %v1775 = vunpack.c.l.b16 %v91
    %v1776 = vunpack.c.l.b16 %v92
    %v1777 = vunpack.c.l.b16 %v93
    %v1778 = vunpack.c.l.b16 %v94
    %v1779 = vunpack.c.l.b16 %v95
    %v1780 = vunpack.c.l.b16 %v96
    %v1781 = vunpack.c.l.b16 %v97
    %v1782 = vunpack.c.l.b16 %v98
    %v1783 = vunpack.c.l.b16 %v99
    %v1784 = vunpack.c.l.b16 %v100
    %v1785 = vunpack.c.l.b16 %v101
    %v1786 = vunpack.c.l.b16 %v102
    %v1787 = vunpack.c.l.b16 %v103
    %v1788 = vunpack.c.l.b16 %v104
    %v1789 = vunpack.c.l.b16 %v105
    %v1790 = vunpack.c.l.b16 %v106
    %v1791 = vunpack.c.l.b16 %v107
    %v1792 = vunpack.c.l.b16 %v108
    %v1793 = vunpack.c.l.b16 %v109
    %v1794 = vunpack.c.l.b16 %v110
    %v1795 = vunpack.c.l.b16 %v111
    %v1796 = vunpack.c.l.b16 %v112
    %v1797 = vunpack.c.l.b16 %v113
    %v1798 = vunpack.c.l.b16 %v114
    %v1799 = vunpack.c.l.b16 %v115
    %v1800 = vunpack.c.l.b16 %v116
    %v1801 = vunpack.c.l.b16 %v117
    %v1802 = vunpack.c.l.b16 %v118
    %v1803 = vunpack.c.l.b16 %v119
    %v1804 = vunpack.c.l.b16 %v120
    %v1805 = vunpack.c.l.b16 %v121
    %v1806 = vunpack.c.l.b16 %v122
    %v1807 = vunpack.c.l.b16 %v123
    %v1808 = vunpack.c.l.b16 %v124
    %v1809 = vunpack.c.l.b16 %v125
    %v1810 = vunpack.c.l.b16 %v126
    %v1811 = vunpack.c.l.b16 %v127
    %v1812 = vunpack.c.l.b16 %v128
    %v1813 = vunpack.c.l.b16 %v129
    %v1814 = vunpack.c.l.b16 %v130
    %v1815 = vunpack.c.l.b16 %v131
    %v1816 = vunpack.c.l.b16 %v132
    %v1817 = vunpack.c.l.b16 %v133
    %v1818 = vunpack.c.l.b16 %v134
    %v1819 = vunpack.c.l.b16 %v135
    %v1820 = vunpack.c.l.b16 %v136
    %v1821 = vunpack.c.l.b16 %v137
    %v1822 = vunpack.c.l.b16 %v138
    %v1823 = vunpack.c.l.b16 %v139
    %v1824 = vunpack.c.l.b16 %v140
    %v1825 = vunpack.c.l.b16 %v141
    %v1826 = vunpack.c.l.b16 %v142
    %v1827 = vunpack.c.l.b16 %v143
    %v1828 = vunpack.c.l.b16 %v144
    %v1829 = vunpack.c.l.b16 %v145
    %v1830 = vunpack.c.l.b16 %v146
    %v1831 = vunpack.c.l.b16 %v147
    %v1832 = vunpack.c.l.b16 %v148
    %v1833 = vunpack.c.l.b16 %v149
    %v1834 = vunpack.c.l.b16 %v150
    %v1835 = vunpack.c.l.b16 %v151
    %v1836 = vunpack.c.l.b16 %v152
    %v1837 = vunpack.c.l.b16 %v153
    %v1838 = vunpack.c.l.b16 %v154
    %v1839 = vunpack.c.l.b16 %v155
    %v1840 = vunpack.c.l.b16 %v156
    %v1841 = vunpack.c.l.b16 %v157
    %v1842 = vunpack.c.l.b16 %v158
    %v1843 = vunpack.c.l.b16 %v159
    %v1844 = vunpack.c.l.b16 %v160
    %v1845 = vunpack.c.l.b16 %v161
    %v1846 = vunpack.c.l.b16 %v162
    %v1847 = vunpack.c.l.b16 %v163
    %v1848 = vunpack.c.l.b16 %v164
    %v1849 = vunpack.c.l.b16 %v165
    %v1850 = vunpack.c.l.b16 %v166
    %v1851 = vunpack.c.l.b16 %v167
    %v1852 = vunpack.c.l.b16 %v168
    %v1853 = vunpack.c.l.b16 %v169
    %v1854 = vunpack.c.l.b16 %v170
    %v1855 = vunpack.c.l.b16 %v171
    %v1856 = vunpack.c.l.b16 %v172
    %v1857 = vunpack.c.l.b16 %v173
    %v1858 = vunpack.c.l.b16 %v174
    %v1859 = vunpack.c.l.b16 %v175
    %v1860 = vunpack.c.l.b16 %v176
    %v1861 = vunpack.c.l.b16 %v177
    %v1862 = vunpack.c.l.b16 %v178
    %v1863 = vunpack.c.l.b16 %v179
    %v1864 = vunpack.c.l.b16 %v180
    %v1865 = vunpack.c.l.b16 %v181
    %v1866 = vunpack.c.l.b16 %v182
    %v1867 = vunpack.c.l.b16 %v183
    %v1868 = vunpack.c.l.b16 %v184
    %v1869 = vunpack.c.l.b16 %v185
    %v1870 = vunpack.c.l.b16 %v186
    %v1871 = vunpack.c.l.b16 %v187
    %v1872 = vunpack.c.l.b16 %v188
    %v1873 = vunpack.c.l.b16 %v189
    %v1874 = vunpack.c.l.b16 %v190
    %v1875 = vunpack.c.l.b16 %v191
    %v1876 = vunpack.c.l.b16 %v192
    %v1877 = vunpack.c.l.b16 %v193
    %v1878 = vunpack.c.l.b16 %v194
    %v1879 = vunpack.c.l.b16 %v195
    %v1880 = vunpack.c.l.b16 %v196
    %v1881 = vunpack.c.l.b16 %v197
    %v1882 = vunpack.c.l.b16 %v198
    %v1883 = vunpack.c.l.b16 %v199
    %v1884 = vunpack.c.l.b16 %v200
    %v1885 = vunpack.c.l.b16 %v201
    %v1886 = vunpack.c.l.b16 %v202
    %v1887 = vunpack.c.l.b16 %v203
    %v1888 = vunpack.c.l.b16 %v204
    %v1889 = vunpack.c.l.b16 %v205
    %v1890 = vunpack.c.l.b16 %v206
    %v1891 = vunpack.c.l.b16 %v207
    %v1892 = vunpack.c.l.b16 %v208
    %v1893 = vunpack.c.l.b16 %v209
    %v1894 = vunpack.c.l.b16 %v210
    %v1895 = vunpack.c.l.b16 %v211
    %v1896 = vunpack.c.l.b16 %v212
    %v1897 = vunpack.c.l.b16 %v213
    %v1898 = vunpack.c.l.b16 %v214
    %v1899 = vunpack.c.l.b16 %v215
    %v1900 = vunpack.c.l.b16 %v216
    %v1901 = vunpack.c.l.b16 %v217
    %v1902 = vunpack.c.l.b16 %v218
    %v1903 = vunpack.c.l.b16 %v219
    %v1904 = vunpack.c.l.b16 %v220
    %v1905 = vunpack.c.l.b16 %v221
    %v1906 = vunpack.c.l.b16 %v222
    %v1907 = vunpack.c.l.b16 %v223
    %v1908 = vunpack.c.l.b16 %v224
    %v1909 = vunpack.c.l.b16 %v225
    %v1910 = vunpack.c.l.b16 %v226
    %v1911 = vunpack.c.l.b16 %v227
    %v1912 = vunpack.c.l.b16 %v228
    %v1913 = vunpack.c.l.b16 %v229
    %v1914 = vunpack.c.l.b16 %v230
    %v1915 = vunpack.c.l.b16 %v231
    %v1916 = vunpack.c.l.b16 %v232
    %v1917 = vunpack.c.l.b16 %v233
    %v1918 = vunpack.c.l.b16 %v234
    %v1919 = vunpack.c.l.b16 %v235
    %v1920 = vunpack.c.l.b16 %v236
    %v1921 = vunpack.c.l.b16 %v237
    %v1922 = vunpack.c.l.b16 %v238
    %v1923 = vunpack.c.l.b16 %v239
    %v1924 = vunpack.c.l.b16 %v240
    %v1925 = vunpack.c.l.b16 %v241
    %v1926 = vunpack.c.l.b16 %v242
    %v1927 = vunpack.c.l.b16 %v243
    %v1928 = vunpack.c.l.b16 %v244
    %v1929 = vunpack.c.l.b16 %v245
    %v1930 = vunpack.c.l.b16 %v246
    %v1931 = vunpack.c.l.b16 %v247
    %v1932 = vunpack.c.l.b16 %v248
    %v1933 = vunpack.c.l.b16 %v249
    %v1934 = vunpack.c.l.b16 %v250
    %v1935 = vunpack.c.l.b16 %v251
    %v1936 = vunpack.c.l.b16 %v252
    %v1937 = vunpack.c.l.b16 %v253
    %v1938 = vunpack.c.l.b16 %v254
    %v1939 = vunpack.c.l.b16 %v255
    %v1940 = vunpack.c.l.b16 %v256
    %v1941 = vunpack.c.l.b16 %v257
    %v1942 = vunpack.c.l.b16 %v258
    %v1943 = vunpack.c.l.b16 %v259
    %v1944 = vunpack.c.l.b16 %v260
    %v1945 = vunpack.c.l.b16 %v261
    %v1946 = vunpack.c.l.b16 %v262
    %v1947 = vunpack.c.l.b16 %v263
    %v1948 = vunpack.c.l.b16 %v264
    %v1949 = vunpack.c.l.b16 %v265
    %v1950 = vunpack.c.l.b16 %v266
    %v1951 = vunpack.c.l.b16 %v267
    %v1952 = vunpack.c.l.b16 %v268
    %v1953 = vunpack.c.l.b16 %v269
    %v1954 = vunpack.c.l.b16 %v270
    %v1955 = vunpack.c.l.b16 %v271
    %v1956 = vunpack.c.l.b16 %v272
    %v1957 = vunpack.c.l.b16 %v273
    %v1958 = vunpack.c.l.b16 %v274
    %v1959 = vunpack.c.l.b16 %v275
    %v1960 = vunpack.c.l.b16 %v276
    %v1961 = vunpack.c.l.b16 %v277
    %v1962 = vunpack.c.l.b16 %v278
    %v1963 = vunpack.c.l.b16 %v279
    %v1964 = vunpack.c.l.b16 %v280
    %v1965 = vunpack.c.l.b16 %v281
    %v1966 = vunpack.c.l.b16 %v282
    %v1967 = vunpack.c.l.b16 %v283
    %v1968 = vunpack.c.l.b16 %v284
    %v1969 = vunpack.c.l.b16 %v285
    %v1970 = vunpack.c.l.b16 %v286
    %v1971 = vunpack.c.l.b16 %v287
    %v1972 = vunpack.c.l.b16 %v288
    %v1973 = vunpack.c.l.b16 %v289
    %v1974 = vunpack.c.l.b16 %v290
    %v1975 = vunpack.c.l.b16 %v291
    %v1976 = vunpack.c.l.b16 %v292
    %v1977 = vunpack.c.l.b16 %v293
    %v1978 = vunpack.c.l.b16 %v294
    %v1979 = vunpack.c.l.b16 %v295
    %v1980 = vunpack.c.l.b16 %v296
    %v1981 = vunpack.c.l.b16 %v297
    %v1982 = vunpack.c.l.b16 %v298
    %v1983 = vunpack.c.l.b16 %v299
    %v1984 = vunpack.c.l.b16 %v300
    %v1985 = vunpack.c.l.b16 %v301
    %v1986 = vunpack.c.l.b16 %v302
    %v1987 = vunpack.c.l.b16 %v303
    %v1988 = vunpack.c.l.b16 %v304
    %v1989 = vunpack.c.l.b16 %v305
    %v1990 = vunpack.c.l.b16 %v306
    %v1991 = vunpack.c.l.b16 %v307
    %v1992 = vunpack.c.l.b16 %v308
    %v1993 = vunpack.c.l.b16 %v309
    %v1994 = vunpack.c.l.b16 %v310
    %v1995 = vunpack.c.l.b16 %v311
    %v1996 = vunpack.c.l.b16 %v312
    %v1997 = vunpack.c.l.b16 %v313
    %v1998 = vunpack.c.l.b16 %v314
    %v1999 = vunpack.c.l.b16 %v315
    %v2000 = vunpack.c.l.b16 %v316
    %v2001 = vunpack.c.l.b16 %v317
    %v2002 = vunpack.c.l.b16 %v318
    %v2003 = vunpack.c.l.b16 %v319
    %v2004 = vunpack.c.l.b16 %v320
    %v2005 = vunpack.c.l.b16 %v321
    %v2006 = vunpack.c.l.b16 %v322
    %v2007 = vunpack.c.l.b16 %v323
    %v2008 = vunpack.c.l.b16 %v324
    %v2009 = vunpack.c.l.b16 %v325
    %v2010 = vunpack.c.l.b16 %v326
    %v2011 = vunpack.c.l.b16 %v327
    %v2012 = vunpack.c.l.b16 %v328
    %v2013 = vunpack.c.l.b16 %v329
    %v2014 = vunpack.c.l.b16 %v330
    %v2015 = vunpack.c.l.b16 %v331
    %v2016 = vunpack.c.l.b16 %v332
    %v2017 = vunpack.c.l.b16 %v333
    %v2018 = vunpack.c.l.b16 %v334
    %v2019 = vunpack.c.l.b16 %v335
    %v2020 = vunpack.c.l.b16 %v336
    %v2021 = vunpack.c.l.b16 %v337
    %v2022 = vunpack.c.l.b16 %v338
    %v2023 = vunpack.c.l.b16 %v339
    %v2024 = vunpack.c.l.b16 %v340
    %v2025 = vunpack.c.l.b16 %v341
    %v2026 = vunpack.c.l.b16 %v342
    %v2027 = vunpack.c.l.b16 %v343
    %v2028 = vunpack.c.l.b16 %v344
    %v2029 = vunpack.c.l.b16 %v345
    %v2030 = vunpack.c.l.b16 %v346
    %v2031 = vunpack.c.l.b16 %v347
    %v2032 = vunpack.c.l.b16 %v348
    %v2033 = vunpack.c.l.b16 %v349
    %v2034 = vunpack.c.l.b16 %v350
    %v2035 = vunpack.c.l.b16 %v351
    %v2036 = vunpack.c.l.b16 %v352
    %v2037 = vunpack.c.l.b16 %v353
    %v2038 = vunpack.c.l.b16 %v354
    %v2039 = vunpack.c.l.b16 %v355
    %v2040 = vunpack.c.l.b16 %v356
    %v2041 = vunpack.c.l.b16 %v357
    %v2042 = vunpack.c.l.b16 %v358
    %v2043 = vunpack.c.l.b16 %v359
    %v2044 = vunpack.c.l.b16 %v360
    %v2045 = vunpack.c.l.b16 %v361
    %v2046 = vunpack.c.l.b16 %v362
    %v2047 = vunpack.c.l.b16 %v363
    %v2048 = vunpack.c.l.b16 %v364
    %v2049 = vunpack.c.l.b16 %v365
    %v2050 = vunpack.c.l.b16 %v366
    %v2051 = vunpack.c.l.b16 %v367
    %v2052 = vunpack.c.l.b16 %v368
    %v2053 = vunpack.c.l.b16 %v369
    %v2054 = vunpack.c.l.b16 %v370
    %v2055 = vunpack.c.l.b16 %v371
    %v2056 = vunpack.c.l.b16 %v372
    %v2057 = vunpack.c.l.b16 %v373
    %v2058 = vunpack.c.l.b16 %v374
    %v2059 = vunpack.c.l.b16 %v375
    %v2060 = vunpack.c.l.b16 %v376
    %v2061 = vunpack.c.l.b16 %v377
    %v2062 = vunpack.c.l.b16 %v378
    %v2063 = vunpack.c.l.b16 %v379
    %v2064 = vunpack.c.l.b16 %v380
    %v2065 = vunpack.c.l.b16 %v381
    %v2066 = vunpack.c.l.b16 %v382
    %v2067 = vunpack.c.l.b16 %v383
    %v2068 = vunpack.c.l.b16 %v384
    %v2069 = vunpack.c.l.b16 %v385
    %v2070 = vunpack.c.l.b16 %v386
    %v2071 = vunpack.c.l.b16 %v387
    %v2072 = vunpack.c.l.b16 %v388
    %v2073 = vunpack.c.l.b16 %v389
    %v2074 = vunpack.c.l.b16 %v390
    %v2075 = vunpack.c.l.b16 %v391
    %v2076 = vunpack.c.l.b16 %v392
    %v2077 = vunpack.c.l.b16 %v393
    %v2078 = vunpack.c.l.b16 %v394
    %v2079 = vunpack.c.l.b16 %v395
    %v2080 = vunpack.c.l.b16 %v396
    %v2081 = vunpack.c.l.b16 %v397
    %v2082 = vunpack.c.l.b16 %v398
    %v2083 = vunpack.c.l.b16 %v399
    %v2084 = vunpack.c.l.b16 %v400
    %v2085 = vunpack.c.l.b16 %v401
    %v2086 = vunpack.c.l.b16 %v402
    %v2087 = vunpack.c.l.b16 %v403
    %v2088 = vunpack.c.l.b16 %v404
    %v2089 = vunpack.c.l.b16 %v405
    %v2090 = vunpack.c.l.b16 %v406
    %v2091 = vunpack.c.l.b16 %v407
    %v2092 = vunpack.c.l.b16 %v408
    %v2093 = vunpack.c.l.b16 %v409
    %v2094 = vunpack.c.l.b16 %v410
    %v2095 = vunpack.c.l.b16 %v411
    %v2096 = vunpack.c.l.b16 %v412
    %v2097 = vunpack.c.l.b16 %v413
    %v2098 = vunpack.c.l.b16 %v414
    %v2099 = vunpack.c.l.b16 %v415
    %v2100 = vunpack.c.l.b16 %v416
    %v2101 = vunpack.c.l.b16 %v417
    %v2102 = vunpack.c.l.b16 %v418
    %v2103 = vunpack.c.l.b16 %v419
    %v2104 = vunpack.c.l.b16 %v420
    %v2105 = vunpack.c.l.b16 %v421
    %v2106 = vunpack.c.l.b16 %v422
    %v2107 = vunpack.c.l.b16 %v423
    %v2108 = vunpack.c.l.b16 %v424
    %v2109 = vunpack.c.l.b16 %v425
    %v2110 = vunpack.c.l.b16 %v426
    %v2111 = vunpack.c.l.b16 %v427
    %v2112 = vunpack.c.l.b16 %v428
    %v2113 = vunpack.c.l.b16 %v429
    %v2114 = vunpack.c.l.b16 %v430
    %v2115 = vunpack.c.l.b16 %v431
    %v2116 = vunpack.c.l.b16 %v432
    %v2117 = vunpack.c.l.b16 %v433
    %v2118 = vunpack.c.l.b16 %v434
    %v2119 = vunpack.c.l.b16 %v435
    %v2120 = vunpack.c.l.b16 %v436
    %v2121 = vunpack.c.l.b16 %v437
    %v2122 = vunpack.c.l.b16 %v438
    %v2123 = vunpack.c.l.b16 %v439
    %v2124 = vunpack.c.l.b16 %v440
    %v2125 = vunpack.c.l.b16 %v441
    %v2126 = vunpack.c.l.b16 %v442
    %v2127 = vunpack.c.l.b16 %v443
    %v2128 = vunpack.c.l.b16 %v444
    %v2129 = vunpack.c.l.b16 %v445
    %v2130 = vunpack.c.l.b16 %v446
    %v2131 = vunpack.c.l.b16 %v447
    %v2132 = vunpack.c.l.b16 %v448
    %v2133 = vunpack.c.l.b16 %v449
    %v2134 = vunpack.c.l.b16 %v450
    %v2135 = vunpack.c.l.b16 %v451
    %v2136 = vunpack.c.l.b16 %v452
    %v2137 = vunpack.c.l.b16 %v453
    %v2138 = vunpack.c.l.b16 %v454
    %v2139 = vunpack.c.l.b16 %v455
    %v2140 = vunpack.c.l.b16 %v456
    %v2141 = vunpack.c.l.b16 %v457
    %v2142 = vunpack.c.l.b16 %v458
    %v2143 = vunpack.c.l.b16 %v459
    %v2144 = vunpack.c.l.b16 %v460
    %v2145 = vunpack.c.l.b16 %v461
    %v2146 = vunpack.c.l.b16 %v462
    %v2147 = vunpack.c.l.b16 %v463
    %v2148 = vunpack.c.l.b16 %v464
    %v2149 = vunpack.c.l.b16 %v465
    %v2150 = vunpack.c.l.b16 %v466
    %v2151 = vunpack.c.l.b16 %v467
    %v2152 = vunpack.c.l.b16 %v468
    %v2153 = vunpack.c.l.b16 %v469
    %v2154 = vunpack.c.l.b16 %v470
    %v2155 = vunpack.c.l.b16 %v471
    %v2156 = vunpack.c.l.b16 %v472
    %v2157 = vunpack.c.l.b16 %v473
    %v2158 = vunpack.c.l.b16 %v474
    %v2159 = vunpack.c.l.b16 %v475
    %v2160 = vunpack.c.l.b16 %v476
    %v2161 = vunpack.c.l.b16 %v477
    %v2162 = vunpack.c.l.b16 %v478
    %v2163 = vunpack.c.l.b16 %v479
    %v2164 = vunpack.c.l.b16 %v480
    %v2165 = vunpack.c.l.b16 %v481
    %v2166 = vunpack.c.l.b16 %v482
    %v2167 = vunpack.c.l.b16 %v483
    %v2168 = vunpack.c.l.b16 %v484
    %v2169 = vunpack.c.l.b16 %v485
    %v2170 = vunpack.c.l.b16 %v486
    %v2171 = vunpack.c.l.b16 %v487
    %v2172 = vunpack.c.l.b16 %v488
    %v2173 = vunpack.c.l.b16 %v489
    %v2174 = vunpack.c.l.b16 %v490
    %v2175 = vunpack.c.l.b16 %v491
    %v2176 = vunpack.c.l.b16 %v492
    %v2177 = vunpack.c.l.b16 %v493
    %v2178 = vunpack.c.l.b16 %v494
    %v2179 = vunpack.c.l.b16 %v495
    %v2180 = vunpack.c.l.b16 %v496
    %v2181 = vunpack.c.l.b16 %v497
    %v2182 = vunpack.c.l.b16 %v498
    %v2183 = vunpack.c.l.b16 %v499
    %v2184 = vunpack.c.l.b16 %v500
    %v2185 = vunpack.c.l.b16 %v501
    %v2186 = vunpack.c.l.b16 %v502
    %v2187 = vunpack.c.l.b16 %v503
    %v2188 = vunpack.c.l.b16 %v504
    %v2189 = vunpack.c.l.b16 %v505
    %v2190 = vunpack.c.l.b16 %v506
    %v2191 = vunpack.c.l.b16 %v507
    %v2192 = vunpack.c.l.b16 %v508
    %v2193 = vunpack.c.l.b16 %v509
    %v2194 = vunpack.c.l.b16 %v510
    %v2195 = vunpack.c.l.b16 %v511
    %v2196 = vunpack.c.l.b16 %v512
    %v2197 = vunpack.c.l.b16 %v513
    %v2198 = vunpack.c.l.b16 %v514
    %v2199 = vunpack.c.l.b16 %v515
    %v2200 = vunpack.c.l.b16 %v516
    %v2201 = vunpack.c.l.b16 %v517
    %v2202 = vunpack.c.l.b16 %v518
    %v2203 = vunpack.c.l.b16 %v519
    %v2204 = vunpack.c.l.b16 %v520
    %v2205 = vunpack.c.l.b16 %v521
    %v2206 = vunpack.c.l.b16 %v522
    %v2207 = vunpack.c.l.b16 %v523
    %v2208 = vunpack.c.l.b16 %v524
    %v2209 = vunpack.c.l.b16 %v525
    %v2210 = vunpack.c.l.b16 %v526
    %v2211 = vunpack.c.l.b16 %v527
    %v2212 = vunpack.c.l.b16 %v528
    %v2213 = vunpack.c.l.b16 %v529
    %v2214 = vunpack.c.l.b16 %v530
    %v2215 = vunpack.c.l.b16 %v531
    %v2216 = vunpack.c.l.b16 %v532
    %v2217 = vunpack.c.l.b16 %v533
    %v2218 = vunpack.c.l.b16 %v534
    %v2219 = vunpack.c.l.b16 %v535
    %v2220 = vunpack.c.l.b16 %v536
    %v2221 = vunpack.c.l.b16 %v537
    %v2222 = vunpack.c.l.b16 %v538
    %v2223 = vunpack.c.l.b16 %v539
    %v2224 = vunpack.c.l.b16 %v540
    %v2225 = vunpack.c.l.b16 %v541
    %v2226 = vunpack.c.l.b16 %v542
    %v2227 = vunpack.c.l.b16 %v543
    %v2228 = vunpack.c.l.b16 %v544
    %v2229 = vunpack.c.l.b16 %v545
    %v2230 = vunpack.c.l.b16 %v546
    %v2231 = vunpack.c.l.b16 %v547
    %v2232 = vunpack.c.l.b16 %v548
    %v2233 = vunpack.c.l.b16 %v549
    %v2234 = vunpack.c.l.b16 %v550
    %v2235 = vunpack.c.l.b16 %v551
    %v2236 = vunpack.c.l.b16 %v552
    %v2237 = vunpack.c.l.b16 %v553
    %v2238 = vunpack.c.l.b16 %v554
    %v2239 = vunpack.c.l.b16 %v555
    %v2240 = vunpack.c.l.b16 %v556
    %v2241 = vunpack.c.l.b16 %v557
    %v2242 = vunpack.c.l.b16 %v558
    %v2243 = vunpack.c.l.b16 %v559
    %v2244 = vunpack.c.l.b16 %v560
    %v2245 = vunpack.c.l.b16 %v561
    %v2246 = vunpack.c.l.b16 %v562
    %v2247 = vunpack.c.l.b16 %v563
    %v2248 = vunpack.c.l.b16 %v564
    %v2249 = vunpack.c.l.b16 %v565
    %v2250 = vunpack.c.l.b16 %v566
    %v2251 = vunpack.c.l.b16 %v567
    %v2252 = vunpack.c.l.b16 %v568
    %v2253 = vunpack.c.l.b16 %v569
    %v2254 = vunpack.c.l.b16 %v570
    %v2255 = vunpack.c.l.b16 %v571
    %v2256 = vunpack.c.l.b16 %v572
    %v2257 = vunpack.c.l.b16 %v573
    %v2258 = vunpack.c.l.b16 %v574
    %v2259 = vunpack.c.l.b16 %v575
    %v2260 = vunpack.c.l.b16 %v576
    %v2261 = vunpack.c.l.b16 %v577
    %v2262 = vunpack.c.l.b16 %v578
    %v2263 = vunpack.c.l.b16 %v579
    %v2264 = vunpack.c.l.b16 %v580
    %v2265 = vunpack.c.l.b16 %v581
    %v2266 = vunpack.c.l.b16 %v582
    %v2267 = vunpack.c.l.b16 %v583
    %v2268 = vunpack.c.l.b16 %v584
    %v2269 = vunpack.c.l.b16 %v585
    %v2270 = vunpack.c.l.b16 %v586
    %v2271 = vunpack.c.l.b16 %v587
    %v2272 = vunpack.c.l.b16 %v588
    %v2273 = vunpack.c.l.b16 %v589
    %v2274 = vunpack.c.l.b16 %v590
    %v2275 = vunpack.c.l.b16 %v591
    %v2276 = vunpack.c.l.b16 %v592
    %v2277 = vunpack.c.l.b16 %v593
    %v2278 = vunpack.c.l.b16 %v594
    %v2279 = vunpack.c.l.b16 %v595
    %v2280 = vunpack.c.l.b16 %v596
    %v2281 = vunpack.c.l.b16 %v597
    %v2282 = vunpack.c.l.b16 %v598
    %v2283 = vunpack.c.l.b16 %v599
    %v2284 = vunpack.c.l.b16 %v600
    %v2285 = vunpack.c.l.b16 %v601
    %v2286 = vunpack.c.l.b16 %v602
    %v2287 = vunpack.c.l.b16 %v603
    %v2288 = vunpack.c.l.b16 %v604
    %v2289 = vunpack.c.l.b16 %v605
    %v2290 = vunpack.c.l.b16 %v606
    %v2291 = vunpack.c.l.b16 %v607
    %v2292 = vunpack.c.l.b16 %v608
    %v2293 = vunpack.c.l.b16 %v609
    %v2294 = vunpack.c.l.b16 %v610
    %v2295 = vunpack.c.l.b16 %v611
    %v2296 = vunpack.c.l.b16 %v612
    %v2297 = vunpack.c.l.b16 %v613
    %v2298 = vunpack.c.l.b16 %v614
    %v2299 = vunpack.c.l.b16 %v615
    %v2300 = vunpack.c.l.b16 %v616
    %v2301 = vunpack.c.l.b16 %v617
    %v2302 = vunpack.c.l.b16 %v618
    %v2303 = vunpack.c.l.b16 %v619
    %v2304 = vunpack.c.l.b16 %v620
    %v2305 = vunpack.c.l.b16 %v621
    %v2306 = vunpack.c.l.b16 %v622
    %v2307 = vunpack.c.l.b16 %v623
    %v2308 = vunpack.c.l.b16 %v624
    %v2309 = vunpack.c.l.b16 %v625
    %v2310 = vunpack.c.l.b16 %v626
    %v2311 = vunpack.c.l.b16 %v627
    %v2312 = vunpack.c.l.b16 %v628
    %v2313 = vunpack.c.l.b16 %v629
    %v2314 = vunpack.c.l.b16 %v630
    %v2315 = vunpack.c.l.b16 %v631
    %v2316 = vunpack.c.l.b16 %v632
    %v2317 = vunpack.c.l.b16 %v633
    %v2318 = vunpack.c.l.b16 %v634
    %v2319 = vunpack.c.l.b16 %v635
    %v2320 = vunpack.c.l.b16 %v636
    %v2321 = vunpack.c.l.b16 %v637
    %v2322 = vunpack.c.l.b16 %v638
    %v2323 = vunpack.c.l.b16 %v639
    %v2324 = vunpack.c.l.b16 %v640
    %v2325 = vunpack.c.l.b16 %v641
    %v2326 = vunpack.c.l.b16 %v642
    %v2327 = vunpack.c.l.b16 %v643
    %v2328 = vunpack.c.l.b16 %v644
    %v2329 = vunpack.c.l.b16 %v645
    %v2330 = vunpack.c.l.b16 %v646
    %v2331 = vunpack.c.l.b16 %v647
    %v2332 = vunpack.c.l.b16 %v648
    %v2333 = vunpack.c.l.b16 %v649
    %v2334 = vunpack.c.l.b16 %v650
    %v2335 = vunpack.c.l.b16 %v651
    %v2336 = vunpack.c.l.b16 %v652
    %v2337 = vunpack.c.l.b16 %v653
    %v2338 = vunpack.c.l.b16 %v654
    %v2339 = vunpack.c.l.b16 %v655
    %v2340 = vunpack.c.l.b16 %v656
    %v2341 = vunpack.c.l.b16 %v657
    %v2342 = vunpack.c.l.b16 %v658
    %v2343 = vunpack.c.l.b16 %v659
    %v2344 = vunpack.c.l.b16 %v660
    %v2345 = vunpack.c.l.b16 %v661
    %v2346 = vunpack.c.l.b16 %v662
    %v2347 = vunpack.c.l.b16 %v663
    %v2348 = vunpack.c.l.b16 %v664
    %v2349 = vunpack.c.l.b16 %v665
    %v2350 = vunpack.c.l.b16 %v666
    %v2351 = vunpack.c.l.b16 %v667
    %v2352 = vunpack.c.l.b16 %v668
    %v2353 = vunpack.c.l.b16 %v669
    %v2354 = vunpack.c.l.b16 %v670
    %v2355 = vunpack.c.l.b16 %v671
    %v2356 = vunpack.c.l.b16 %v672
    %v2357 = vunpack.c.l.b16 %v673
    %v2358 = vunpack.c.l.b16 %v674
    %v2359 = vunpack.c.l.b16 %v675
    %v2360 = vunpack.c.l.b16 %v676
    %v2361 = vunpack.c.l.b16 %v677
    %v2362 = vunpack.c.l.b16 %v678
    %v2363 = vunpack.c.l.b16 %v679
    %v2364 = vunpack.c.l.b16 %v680
    %v2365 = vunpack.c.l.b16 %v681
    %v2366 = vunpack.c.l.b16 %v682
    %v2367 = vunpack.c.l.b16 %v683
    %v2368 = vunpack.c.l.b16 %v684
    %v2369 = vunpack.c.l.b16 %v685
    %v2370 = vunpack.c.l.b16 %v686
    %v2371 = vunpack.c.l.b16 %v687
    %v2372 = vunpack.c.l.b16 %v688
    %v2373 = vunpack.c.l.b16 %v689
    %v2374 = vunpack.c.l.b16 %v690
    %v2375 = vunpack.c.l.b16 %v691
    %v2376 = vunpack.c.l.b16 %v692
    %v2377 = vunpack.c.l.b16 %v693
    %v2378 = vunpack.c.l.b16 %v694
    %v2379 = vunpack.c.l.b16 %v695
    %v2380 = vunpack.c.l.b16 %v696
    %v2381 = vunpack.c.l.b16 %v697
    %v2382 = vunpack.c.l.b16 %v698
    %v2383 = vunpack.c.l.b16 %v699
    %v2384 = vunpack.c.l.b16 %v700
    %v2385 = vunpack.c.l.b16 %v701
    %v2386 = vunpack.c.l.b16 %v702
    %v2387 = vunpack.c.l.b16 %v703
    %v2388 = vunpack.c.l.b16 %v704
    %v2389 = vunpack.c.l.b16 %v705
    %v2390 = vunpack.c.l.b16 %v706
    %v2391 = vunpack.c.l.b16 %v707
    %v2392 = vunpack.c.l.b16 %v708
    %v2393 = vunpack.c.l.b16 %v709
    %v2394 = vunpack.c.l.b16 %v710
    %v2395 = vunpack.c.l.b16 %v711
    %v2396 = vunpack.c.l.b16 %v712
    %v2397 = vunpack.c.l.b16 %v713
    %v2398 = vunpack.c.l.b16 %v714
    %v2399 = vunpack.c.l.b16 %v715
    %v2400 = vunpack.c.l.b16 %v716
    %v2401 = vunpack.c.l.b16 %v717
    %v2402 = vunpack.c.l.b16 %v718
    %v2403 = vunpack.c.l.b16 %v719
    %v2404 = vunpack.c.l.b16 %v720
    %v2405 = vunpack.c.l.b16 %v721
    %v2406 = vunpack.c.l.b16 %v722
    %v2407 = vunpack.c.l.b16 %v723
    %v2408 = vunpack.c.l.b16 %v724
    %v2409 = vunpack.c.l.b16 %v725
    %v2410 = vunpack.c.l.b16 %v726
    %v2411 = vunpack.c.l.b16 %v727
    %v2412 = vunpack.c.l.b16 %v728
    %v2413 = vunpack.c.l.b16 %v729
    %v2414 = vunpack.c.l.b16 %v730
    %v2415 = vunpack.c.l.b16 %v731
    %v2416 = vunpack.c.l.b16 %v732
    %v2417 = vunpack.c.l.b16 %v733
    %v2418 = vunpack.c.l.b16 %v734
    %v2419 = vunpack.c.l.b16 %v735
    %v2420 = vunpack.c.l.b16 %v736
    %v2421 = vunpack.c.l.b16 %v737
    %v2422 = vunpack.c.l.b16 %v738
    %v2423 = vunpack.c.l.b16 %v739
    %v2424 = vunpack.c.l.b16 %v740
    %v2425 = vunpack.c.l.b16 %v741
    %v2426 = vunpack.c.l.b16 %v742
    %v2427 = vunpack.c.l.b16 %v743
    %v2428 = vunpack.c.l.b16 %v744
    %v2429 = vunpack.c.l.b16 %v745
    %v2430 = vunpack.c.l.b16 %v746
    %v2431 = vunpack.c.l.b16 %v747
    %v2432 = vunpack.c.l.b16 %v748
    %v2433 = vunpack.c.l.b16 %v749
    %v2434 = vunpack.c.l.b16 %v750
    %v2435 = vunpack.c.l.b16 %v751
    %v2436 = vunpack.c.l.b16 %v752
    %v2437 = vunpack.c.l.b16 %v753
    %v2438 = vunpack.c.l.b16 %v754
    %v2439 = vunpack.c.l.b16 %v755
    %v2440 = vunpack.c.l.b16 %v756
    %v2441 = vunpack.c.l.b16 %v757
    %v2442 = vunpack.c.l.b16 %v758
    %v2443 = vunpack.c.l.b16 %v759
    %v2444 = vunpack.c.l.b16 %v760
    %v2445 = vunpack.c.l.b16 %v761
    %v2446 = vunpack.c.l.b16 %v762
    %v2447 = vunpack.c.l.b16 %v763
    %v2448 = vunpack.c.l.b16 %v764
    %v2449 = vunpack.c.l.b16 %v765
    %v2450 = vunpack.c.l.b16 %v766
    %v2451 = vunpack.c.l.b16 %v767
    %v2452 = vunpack.c.l.b16 %v768
    %v2453 = vunpack.c.l.b16 %v769
    %v2454 = vunpack.c.l.b16 %v770
    %v2455 = vunpack.c.l.b16 %v771
    %v2456 = vunpack.c.l.b16 %v772
    %v2457 = vunpack.c.l.b16 %v773
    %v2458 = vunpack.c.l.b16 %v774
    %v2459 = vunpack.c.l.b16 %v775
    %v2460 = vunpack.c.l.b16 %v776
    %v2461 = vunpack.c.l.b16 %v777
    %v2462 = vunpack.c.l.b16 %v778
    %v2463 = vunpack.c.l.b16 %v779
    %v2464 = vunpack.c.l.b16 %v780
    %v2465 = vunpack.c.l.b16 %v781
    %v2466 = vunpack.c.l.b16 %v782
    %v2467 = vunpack.c.l.b16 %v783
    %v2468 = vunpack.c.l.b16 %v784
    %v2469 = vunpack.c.l.b16 %v785
    %v2470 = vunpack.c.l.b16 %v786
    %v2471 = vunpack.c.l.b16 %v787
    %v2472 = vunpack.c.l.b16 %v788
    %v2473 = vunpack.c.l.b16 %v789
    %v2474 = vunpack.c.l.b16 %v790
    %v2475 = vunpack.c.l.b16 %v791
    %v2476 = vunpack.c.l.b16 %v792
    %v2477 = vunpack.c.l.b16 %v793
    %v2478 = vunpack.c.l.b16 %v794
    %v2479 = vunpack.c.l.b16 %v795
    %v2480 = vunpack.c.l.b16 %v796
    %v2481 = vunpack.c.l.b16 %v797
    %v2482 = vunpack.c.l.b16 %v798
    %v2483 = vunpack.c.l.b16 %v799
    %v2484 = vunpack.c.l.b16 %v800
    %v2485 = vunpack.c.l.b16 %v801
    %v2486 = vunpack.c.l.b16 %v802
    %v2487 = vunpack.c.l.b16 %v803
    %v2488 = vunpack.c.l.b16 %v804
    %v2489 = vunpack.c.l.b16 %v805
    %v2490 = vunpack.c.l.b16 %v806
    %v2491 = vunpack.c.l.b16 %v807
    %v2492 = vunpack.c.l.b16 %v808
    %v2493 = vunpack.c.l.b16 %v809
    %v2494 = vunpack.c.l.b16 %v810
    %v2495 = vunpack.c.l.b16 %v811
    %v2496 = vunpack.c.l.b16 %v812
    %v2497 = vunpack.c.l.b16 %v813
    %v2498 = vunpack.c.l.b16 %v814
    %v2499 = vunpack.c.l.b16 %v815
    %v2500 = vunpack.c.l.b16 %v816
    %v2501 = vunpack.c.l.b16 %v817
    %v2502 = vunpack.c.l.b16 %v818
    %v2503 = vunpack.c.l.b16 %v819
    %v2504 = vunpack.c.l.b16 %v820
    %v2505 = vunpack.c.l.b16 %v821
    %v2506 = vunpack.c.l.b16 %v822
    %v2507 = vunpack.c.l.b16 %v823
    %v2508 = vunpack.c.l.b16 %v824
    %v2509 = vunpack.c.l.b16 %v825
    %v2510 = vunpack.c.l.b16 %v826
    %v2511 = vunpack.c.l.b16 %v827
    %v2512 = vunpack.c.l.b16 %v828
    %v2513 = vunpack.c.l.b16 %v829
    %v2514 = vunpack.c.l.b16 %v830
    %v2515 = vunpack.c.l.b16 %v831
    %v2516 = vunpack.c.l.b16 %v832
    %v2517 = vunpack.c.l.b16 %v833
    %v2518 = vunpack.c.l.b16 %v834
    %v2519 = vunpack.c.l.b16 %v835
    %v2520 = vunpack.c.l.b16 %v836
    %v2521 = vunpack.c.l.b16 %v837
    %v2522 = vunpack.c.l.b16 %v838
    %v2523 = vunpack.c.l.b16 %v839
    %v2524 = vunpack.c.l.b16 %v840
    %v2525 = vunpack.c.l.b16 %v841
    %v2526 = vunpack.c.l.b16 %v842
    %v2527 = vunpack.c.l.b16 %v843
    %v2528 = vunpack.c.l.b16 %v844
    %v2529 = vunpack.c.l.b16 %v845
    %v2530 = vunpack.c.l.b16 %v846
    %v2531 = vunpack.c.l.b16 %v847
    %v2532 = vunpack.c.l.b16 %v848
    %v2533 = vunpack.c.l.b16 %v849
    %v2534 = vunpack.c.l.b16 %v850
    %v2535 = vunpack.c.l.b16 %v851
    %v2536 = vunpack.c.l.b16 %v852
    %v2537 = vunpack.c.l.b16 %v853
    %v2538 = vunpack.c.l.b16 %v854
    %v2539 = vunpack.c.l.b16 %v855
    %v2540 = vunpack.c.l.b16 %v856
    %v2541 = vunpack.c.l.b16 %v857
    %v2542 = vunpack.c.l.b16 %v858
    %v2543 = vunpack.c.l.b16 %v859
    %v2544 = vunpack.c.l.b16 %v860
    %v2545 = vunpack.c.l.b16 %v861
    %v2546 = vunpack.c.l.b16 %v862
    %v2547 = vunpack.c.l.b16 %v863
    %v2548 = vunpack.c.l.b16 %v864
    %v2549 = vunpack.c.l.b16 %v865
    %v2550 = vunpack.c.l.b16 %v866
    %v2551 = vunpack.c.l.b16 %v867
    %v2552 = vunpack.c.l.b16 %v868
    %v2553 = vunpack.c.l.b16 %v869
    %v2554 = vunpack.c.l.b16 %v870
    %v2555 = vpack.c.b16 %v1772, %v1771
    %v2556 = vpack.c.b16 %v1774, %v1773
    %v2557 = vpack.c.b16 %v1776, %v1775
    %v2558 = vpack.c.b16 %v1778, %v1777
    %v2559 = vpack.c.b16 %v1780, %v1779
    %v2560 = vpack.c.b16 %v1782, %v1781
    %v2561 = vpack.c.b16 %v1784, %v1783
    %v2562 = vpack.c.b16 %v1786, %v1785
    %v2563 = vpack.c.b16 %v1788, %v1787
    %v2564 = vpack.c.b16 %v1790, %v1789
    %v2565 = vpack.c.b16 %v1792, %v1791
    %v2566 = vpack.c.b16 %v1794, %v1793
    %v2567 = vpack.c.b16 %v1796, %v1795
    %v2568 = vpack.c.b16 %v1798, %v1797
    %v2569 = vpack.c.b16 %v1800, %v1799
    %v2570 = vpack.c.b16 %v1802, %v1801
    %v2571 = vpack.c.b16 %v1804, %v1803
    %v2572 = vpack.c.b16 %v1806, %v1805
    %v2573 = vpack.c.b16 %v1808, %v1807
    %v2574 = vpack.c.b16 %v1810, %v1809
    %v2575 = vpack.c.b16 %v1812, %v1811
    %v2576 = vpack.c.b16 %v1814, %v1813
    %v2577 = vpack.c.b16 %v1816, %v1815
    %v2578 = vpack.c.b16 %v1818, %v1817
    %v2579 = vpack.c.b16 %v1820, %v1819
    %v2580 = vpack.c.b16 %v1822, %v1821
    %v2581 = vpack.c.b16 %v1824, %v1823
    %v2582 = vpack.c.b16 %v1826, %v1825
    %v2583 = vpack.c.b16 %v1828, %v1827
    %v2584 = vpack.c.b16 %v1830, %v1829
    %v2585 = vpack.c.b16 %v1832, %v1831
    %v2586 = vpack.c.b16 %v1834, %v1833
    %v2587 = vpack.c.b16 %v1836, %v1835
    %v2588 = vpack.c.b16 %v1838, %v1837
    %v2589 = vpack.c.b16 %v1840, %v1839
    %v2590 = vpack.c.b16 %v1842, %v1841
    %v2591 = vpack.c.b16 %v1844, %v1843
    %v2592 = vpack.c.b16 %v1846, %v1845
    %v2593 = vpack.c.b16 %v1848, %v1847
    %v2594 = vpack.c.b16 %v1850, %v1849
    %v2595 = vpack.c.b16 %v1852, %v1851
    %v2596 = vpack.c.b16 %v1854, %v1853
    %v2597 = vpack.c.b16 %v1856, %v1855
    %v2598 = vpack.c.b16 %v1858, %v1857
    %v2599 = vpack.c.b16 %v1860, %v1859
    %v2600 = vpack.c.b16 %v1862, %v1861
    %v2601 = vpack.c.b16 %v1864, %v1863
    %v2602 = vpack.c.b16 %v1866, %v1865
    %v2603 = vpack.c.b16 %v1868, %v1867
    %v2604 = vpack.c.b16 %v1870, %v1869
    %v2605 = vpack.c.b16 %v1872, %v1871
    %v2606 = vpack.c.b16 %v1874, %v1873
    %v2607 = vpack.c.b16 %v1876, %v1875
    %v2608 = vpack.c.b16 %v1878, %v1877
    %v2609 = vpack.c.b16 %v1880, %v1879
    %v2610 = vpack.c.b16 %v1882, %v1881
    %v2611 = vpack.c.b16 %v1884, %v1883
    %v2612 = vpack.c.b16 %v1886, %v1885
    %v2613 = vpack.c.b16 %v1888, %v1887
    %v2614 = vpack.c.b16 %v1890, %v1889
    %v2615 = vpack.c.b16 %v1892, %v1891
    %v2616 = vpack.c.b16 %v1894, %v1893
    %v2617 = vpack.c.b16 %v1896, %v1895
    %v2618 = vpack.c.b16 %v1898, %v1897
    %v2619 = vpack.c.b16 %v1900, %v1899
    %v2620 = vpack.c.b16 %v1902, %v1901
    %v2621 = vpack.c.b16 %v1904, %v1903
    %v2622 = vpack.c.b16 %v1906, %v1905
    %v2623 = vpack.c.b16 %v1908, %v1907
    %v2624 = vpack.c.b16 %v1910, %v1909
    %v2625 = vpack.c.b16 %v1912, %v1911
    %v2626 = vpack.c.b16 %v1914, %v1913
    %v2627 = vpack.c.b16 %v1916, %v1915
    %v2628 = vpack.c.b16 %v1918, %v1917
    %v2629 = vpack.c.b16 %v1920, %v1919
    %v2630 = vpack.c.b16 %v1922, %v1921
    %v2631 = vpack.c.b16 %v1924, %v1923
    %v2632 = vpack.c.b16 %v1926, %v1925
    %v2633 = vpack.c.b16 %v1928, %v1927
    %v2634 = vpack.c.b16 %v1930, %v1929
    %v2635 = vpack.c.b16 %v1932, %v1931
    %v2636 = vpack.c.b16 %v1934, %v1933
    %v2637 = vpack.c.b16 %v1936, %v1935
    %v2638 = vpack.c.b16 %v1938, %v1937
    %v2639 = vpack.c.b16 %v1940, %v1939
    %v2640 = vpack.c.b16 %v1942, %v1941
    %v2641 = vpack.c.b16 %v1944, %v1943
    %v2642 = vpack.c.b16 %v1946, %v1945
    %v2643 = vpack.c.b16 %v1948, %v1947
    %v2644 = vpack.c.b16 %v1950, %v1949
    %v2645 = vpack.c.b16 %v1952, %v1951
    %v2646 = vpack.c.b16 %v1954, %v1953
    %v2647 = vpack.c.b16 %v1956, %v1955
    %v2648 = vpack.c.b16 %v1958, %v1957
    %v2649 = vpack.c.b16 %v1960, %v1959
    %v2650 = vpack.c.b16 %v1962, %v1961
    %v2651 = vpack.c.b16 %v1964, %v1963
    %v2652 = vpack.c.b16 %v1966, %v1965
    %v2653 = vpack.c.b16 %v1968, %v1967
    %v2654 = vpack.c.b16 %v1970, %v1969
    %v2655 = vpack.c.b16 %v1972, %v1971
    %v2656 = vpack.c.b16 %v1974, %v1973
    %v2657 = vpack.c.b16 %v1976, %v1975
    %v2658 = vpack.c.b16 %v1978, %v1977
    %v2659 = vpack.c.b16 %v1980, %v1979
    %v2660 = vpack.c.b16 %v1982, %v1981
    %v2661 = vpack.c.b16 %v1984, %v1983
    %v2662 = vpack.c.b16 %v1986, %v1985
    %v2663 = vpack.c.b16 %v1988, %v1987
    %v2664 = vpack.c.b16 %v1990, %v1989
    %v2665 = vpack.c.b16 %v1992, %v1991
    %v2666 = vpack.c.b16 %v1994, %v1993
    %v2667 = vpack.c.b16 %v1996, %v1995
    %v2668 = vpack.c.b16 %v1998, %v1997
    %v2669 = vpack.c.b16 %v2000, %v1999
    %v2670 = vpack.c.b16 %v2002, %v2001
    %v2671 = vpack.c.b16 %v2004, %v2003
    %v2672 = vpack.c.b16 %v2006, %v2005
    %v2673 = vpack.c.b16 %v2008, %v2007
    %v2674 = vpack.c.b16 %v2010, %v2009
    %v2675 = vpack.c.b16 %v2012, %v2011
    %v2676 = vpack.c.b16 %v2014, %v2013
    %v2677 = vpack.c.b16 %v2016, %v2015
    %v2678 = vpack.c.b16 %v2018, %v2017
    %v2679 = vpack.c.b16 %v2020, %v2019
    %v2680 = vpack.c.b16 %v2022, %v2021
    %v2681 = vpack.c.b16 %v2024, %v2023
    %v2682 = vpack.c.b16 %v2026, %v2025
    %v2683 = vpack.c.b16 %v2028, %v2027
    %v2684 = vpack.c.b16 %v2030, %v2029
    %v2685 = vpack.c.b16 %v2032, %v2031
    %v2686 = vpack.c.b16 %v2034, %v2033
    %v2687 = vpack.c.b16 %v2036, %v2035
    %v2688 = vpack.c.b16 %v2038, %v2037
    %v2689 = vpack.c.b16 %v2040, %v2039
    %v2690 = vpack.c.b16 %v2042, %v2041
    %v2691 = vpack.c.b16 %v2044, %v2043
    %v2692 = vpack.c.b16 %v2046, %v2045
    %v2693 = vpack.c.b16 %v2048, %v2047
    %v2694 = vpack.c.b16 %v2050, %v2049
    %v2695 = vpack.c.b16 %v2052, %v2051
    %v2696 = vpack.c.b16 %v2054, %v2053
    %v2697 = vpack.c.b16 %v2056, %v2055
    %v2698 = vpack.c.b16 %v2058, %v2057
    %v2699 = vpack.c.b16 %v2060, %v2059
    %v2700 = vpack.c.b16 %v2062, %v2061
    %v2701 = vpack.c.b16 %v2064, %v2063
    %v2702 = vpack.c.b16 %v2066, %v2065
    %v2703 = vpack.c.b16 %v2068, %v2067
    %v2704 = vpack.c.b16 %v2070, %v2069
    %v2705 = vpack.c.b16 %v2072, %v2071
    %v2706 = vpack.c.b16 %v2074, %v2073
    %v2707 = vpack.c.b16 %v2076, %v2075
    %v2708 = vpack.c.b16 %v2078, %v2077
    %v2709 = vpack.c.b16 %v2080, %v2079
    %v2710 = vpack.c.b16 %v2082, %v2081
    %v2711 = vpack.c.b16 %v2084, %v2083
    %v2712 = vpack.c.b16 %v2086, %v2085
    %v2713 = vpack.c.b16 %v2088, %v2087
    %v2714 = vpack.c.b16 %v2090, %v2089
    %v2715 = vpack.c.b16 %v2092, %v2091
    %v2716 = vpack.c.b16 %v2094, %v2093
    %v2717 = vpack.c.b16 %v2096, %v2095
    %v2718 = vpack.c.b16 %v2098, %v2097
    %v2719 = vpack.c.b16 %v2100, %v2099
    %v2720 = vpack.c.b16 %v2102, %v2101
    %v2721 = vpack.c.b16 %v2104, %v2103
    %v2722 = vpack.c.b16 %v2106, %v2105
    %v2723 = vpack.c.b16 %v2108, %v2107
    %v2724 = vpack.c.b16 %v2110, %v2109
    %v2725 = vpack.c.b16 %v2112, %v2111
    %v2726 = vpack.c.b16 %v2114, %v2113
    %v2727 = vpack.c.b16 %v2116, %v2115
    %v2728 = vpack.c.b16 %v2118, %v2117
    %v2729 = vpack.c.b16 %v2120, %v2119
    %v2730 = vpack.c.b16 %v2122, %v2121
    %v2731 = vpack.c.b16 %v2124, %v2123
    %v2732 = vpack.c.b16 %v2126, %v2125
    %v2733 = vpack.c.b16 %v2128, %v2127
    %v2734 = vpack.c.b16 %v2130, %v2129
    %v2735 = vpack.c.b16 %v2132, %v2131
    %v2736 = vpack.c.b16 %v2134, %v2133
    %v2737 = vpack.c.b16 %v2136, %v2135
    %v2738 = vpack.c.b16 %v2138, %v2137
    %v2739 = vpack.c.b16 %v2140, %v2139
    %v2740 = vpack.c.b16 %v2142, %v2141
    %v2741 = vpack.c.b16 %v2144, %v2143
    %v2742 = vpack.c.b16 %v2146, %v2145
    %v2743 = vpack.c.b16 %v2148, %v2147
    %v2744 = vpack.c.b16 %v2150, %v2149
    %v2745 = vpack.c.b16 %v2152, %v2151
    %v2746 = vpack.c.b16 %v2154, %v2153
    %v2747 = vpack.c.b16 %v2156, %v2155
    %v2748 = vpack.c.b16 %v2158, %v2157
    %v2749 = vpack.c.b16 %v2160, %v2159
    %v2750 = vpack.c.b16 %v2162, %v2161
    %v2751 = vpack.c.b16 %v2164, %v2163
    %v2752 = vpack.c.b16 %v2166, %v2165
    %v2753 = vpack.c.b16 %v2168, %v2167
    %v2754 = vpack.c.b16 %v2170, %v2169
    %v2755 = vpack.c.b16 %v2172, %v2171
    %v2756 = vpack.c.b16 %v2174, %v2173
    %v2757 = vpack.c.b16 %v2176, %v2175
    %v2758 = vpack.c.b16 %v2178, %v2177
    %v2759 = vpack.c.b16 %v2180, %v2179
    %v2760 = vpack.c.b16 %v2182, %v2181
    %v2761 = vpack.c.b16 %v2184, %v2183
    %v2762 = vpack.c.b16 %v2186, %v2185
    %v2763 = vpack.c.b16 %v2188, %v2187
    %v2764 = vpack.c.b16 %v2190, %v2189
    %v2765 = vpack.c.b16 %v2192, %v2191
    %v2766 = vpack.c.b16 %v2194, %v2193
    %v2767 = vpack.c.b16 %v2196, %v2195
    %v2768 = vpack.c.b16 %v2198, %v2197
    %v2769 = vpack.c.b16 %v2200, %v2199
    %v2770 = vpack.c.b16 %v2202, %v2201
    %v2771 = vpack.c.b16 %v2204, %v2203
    %v2772 = vpack.c.b16 %v2206, %v2205
    %v2773 = vpack.c.b16 %v2208, %v2207
    %v2774 = vpack.c.b16 %v2210, %v2209
    %v2775 = vpack.c.b16 %v2212, %v2211
    %v2776 = vpack.c.b16 %v2214, %v2213
    %v2777 = vpack.c.b16 %v2216, %v2215
    %v2778 = vpack.c.b16 %v2218, %v2217
    %v2779 = vpack.c.b16 %v2220, %v2219
    %v2780 = vpack.c.b16 %v2222, %v2221
    %v2781 = vpack.c.b16 %v2224, %v2223
    %v2782 = vpack.c.b16 %v2226, %v2225
    %v2783 = vpack.c.b16 %v2228, %v2227
    %v2784 = vpack.c.b16 %v2230, %v2229
    %v2785 = vpack.c.b16 %v2232, %v2231
    %v2786 = vpack.c.b16 %v2234, %v2233
    %v2787 = vpack.c.b16 %v2236, %v2235
    %v2788 = vpack.c.b16 %v2238, %v2237
    %v2789 = vpack.c.b16 %v2240, %v2239
    %v2790 = vpack.c.b16 %v2242, %v2241
    %v2791 = vpack.c.b16 %v2244, %v2243
    %v2792 = vpack.c.b16 %v2246, %v2245
    %v2793 = vpack.c.b16 %v2248, %v2247
    %v2794 = vpack.c.b16 %v2250, %v2249
    %v2795 = vpack.c.b16 %v2252, %v2251
    %v2796 = vpack.c.b16 %v2254, %v2253
    %v2797 = vpack.c.b16 %v2256, %v2255
    %v2798 = vpack.c.b16 %v2258, %v2257
    %v2799 = vpack.c.b16 %v2260, %v2259
    %v2800 = vpack.c.b16 %v2262, %v2261
    %v2801 = vpack.c.b16 %v2264, %v2263
    %v2802 = vpack.c.b16 %v2266, %v2265
    %v2803 = vpack.c.b16 %v2268, %v2267
    %v2804 = vpack.c.b16 %v2270, %v2269
    %v2805 = vpack.c.b16 %v2272, %v2271
    %v2806 = vpack.c.b16 %v2274, %v2273
    %v2807 = vpack.c.b16 %v2276, %v2275
    %v2808 = vpack.c.b16 %v2278, %v2277
    %v2809 = vpack.c.b16 %v2280, %v2279
    %v2810 = vpack.c.b16 %v2282, %v2281
    %v2811 = vpack.c.b16 %v2284, %v2283
    %v2812 = vpack.c.b16 %v2286, %v2285
    %v2813 = vpack.c.b16 %v2288, %v2287
    %v2814 = vpack.c.b16 %v2290, %v2289
    %v2815 = vpack.c.b16 %v2292, %v2291
    %v2816 = vpack.c.b16 %v2294, %v2293
    %v2817 = vpack.c.b16 %v2296, %v2295
    %v2818 = vpack.c.b16 %v2298, %v2297
    %v2819 = vpack.c.b16 %v2300, %v2299
    %v2820 = vpack.c.b16 %v2302, %v2301
    %v2821 = vpack.c.b16 %v2304, %v2303
    %v2822 = vpack.c.b16 %v2306, %v2305
    %v2823 = vpack.c.b16 %v2308, %v2307
    %v2824 = vpack.c.b16 %v2310, %v2309
    %v2825 = vpack.c.b16 %v2312, %v2311
    %v2826 = vpack.c.b16 %v2314, %v2313
    %v2827 = vpack.c.b16 %v2316, %v2315
    %v2828 = vpack.c.b16 %v2318, %v2317
    %v2829 = vpack.c.b16 %v2320, %v2319
    %v2830 = vpack.c.b16 %v2322, %v2321
    %v2831 = vpack.c.b16 %v2324, %v2323
    %v2832 = vpack.c.b16 %v2326, %v2325
    %v2833 = vpack.c.b16 %v2328, %v2327
    %v2834 = vpack.c.b16 %v2330, %v2329
    %v2835 = vpack.c.b16 %v2332, %v2331
    %v2836 = vpack.c.b16 %v2334, %v2333
    %v2837 = vpack.c.b16 %v2336, %v2335
    %v2838 = vpack.c.b16 %v2338, %v2337
    %v2839 = vpack.c.b16 %v2340, %v2339
    %v2840 = vpack.c.b16 %v2342, %v2341
    %v2841 = vpack.c.b16 %v2344, %v2343
    %v2842 = vpack.c.b16 %v2346, %v2345
    %v2843 = vpack.c.b16 %v2348, %v2347
    %v2844 = vpack.c.b16 %v2350, %v2349
    %v2845 = vpack.c.b16 %v2352, %v2351
    %v2846 = vpack.c.b16 %v2354, %v2353
    %v2847 = vpack.c.b16 %v2356, %v2355
    %v2848 = vpack.c.b16 %v2358, %v2357
    %v2849 = vpack.c.b16 %v2360, %v2359
    %v2850 = vpack.c.b16 %v2362, %v2361
    %v2851 = vpack.c.b16 %v2364, %v2363
    %v2852 = vpack.c.b16 %v2366, %v2365
    %v2853 = vpack.c.b16 %v2368, %v2367
    %v2854 = vpack.c.b16 %v2370, %v2369
    %v2855 = vpack.c.b16 %v2372, %v2371
    %v2856 = vpack.c.b16 %v2374, %v2373
    %v2857 = vpack.c.b16 %v2376, %v2375
    %v2858 = vpack.c.b16 %v2378, %v2377
    %v2859 = vpack.c.b16 %v2380, %v2379
    %v2860 = vpack.c.b16 %v2382, %v2381
    %v2861 = vpack.c.b16 %v2384, %v2383
    %v2862 = vpack.c.b16 %v2386, %v2385
    %v2863 = vpack.c.b16 %v2388, %v2387
    %v2864 = vpack.c.b16 %v2390, %v2389
    %v2865 = vpack.c.b16 %v2392, %v2391
    %v2866 = vpack.c.b16 %v2394, %v2393
    %v2867 = vpack.c.b16 %v2396, %v2395
    %v2868 = vpack.c.b16 %v2398, %v2397
    %v2869 = vpack.c.b16 %v2400, %v2399
    %v2870 = vpack.c.b16 %v2402, %v2401
    %v2871 = vpack.c.b16 %v2404, %v2403
    %v2872 = vpack.c.b16 %v2406, %v2405
    %v2873 = vpack.c.b16 %v2408, %v2407
    %v2874 = vpack.c.b16 %v2410, %v2409
    %v2875 = vpack.c.b16 %v2412, %v2411
    %v2876 = vpack.c.b16 %v2414, %v2413
    %v2877 = vpack.c.b16 %v2416, %v2415
    %v2878 = vpack.c.b16 %v2418, %v2417
    %v2879 = vpack.c.b16 %v2420, %v2419
    %v2880 = vpack.c.b16 %v2422, %v2421
    %v2881 = vpack.c.b16 %v2424, %v2423
    %v2882 = vpack.c.b16 %v2426, %v2425
    %v2883 = vpack.c.b16 %v2428, %v2427
    %v2884 = vpack.c.b16 %v2430, %v2429
    %v2885 = vpack.c.b16 %v2432, %v2431
    %v2886 = vpack.c.b16 %v2434, %v2433
    %v2887 = vpack.c.b16 %v2436, %v2435
    %v2888 = vpack.c.b16 %v2438, %v2437
    %v2889 = vpack.c.b16 %v2440, %v2439
    %v2890 = vpack.c.b16 %v2442, %v2441
    %v2891 = vpack.c.b16 %v2444, %v2443
    %v2892 = vpack.c.b16 %v2446, %v2445
    %v2893 = vpack.c.b16 %v2448, %v2447
    %v2894 = vpack.c.b16 %v2450, %v2449
    %v2895 = vpack.c.b16 %v2452, %v2451
    %v2896 = vpack.c.b16 %v2454, %v2453
    %v2897 = vpack.c.b16 %v2456, %v2455
    %v2898 = vpack.c.b16 %v2458, %v2457
    %v2899 = vpack.c.b16 %v2460, %v2459
    %v2900 = vpack.c.b16 %v2462, %v2461
    %v2901 = vpack.c.b16 %v2464, %v2463
    %v2902 = vpack.c.b16 %v2466, %v2465
    %v2903 = vpack.c.b16 %v2468, %v2467
    %v2904 = vpack.c.b16 %v2470, %v2469
    %v2905 = vpack.c.b16 %v2472, %v2471
    %v2906 = vpack.c.b16 %v2474, %v2473
    %v2907 = vpack.c.b16 %v2476, %v2475
    %v2908 = vpack.c.b16 %v2478, %v2477
    %v2909 = vpack.c.b16 %v2480, %v2479
    %v2910 = vpack.c.b16 %v2482, %v2481
    %v2911 = vpack.c.b16 %v2484, %v2483
    %v2912 = vpack.c.b16 %v2486, %v2485
    %v2913 = vpack.c.b16 %v2488, %v2487
    %v2914 = vpack.c.b16 %v2490, %v2489
    %v2915 = vpack.c.b16 %v2492, %v2491
    %v2916 = vpack.c.b16 %v2494, %v2493
    %v2917 = vpack.c.b16 %v2496, %v2495
    %v2918 = vpack.c.b16 %v2498, %v2497
    %v2919 = vpack.c.b16 %v2500, %v2499
    %v2920 = vpack.c.b16 %v2502, %v2501
    %v2921 = vpack.c.b16 %v2504, %v2503
    %v2922 = vpack.c.b16 %v2506, %v2505
    %v2923 = vpack.c.b16 %v2508, %v2507
    %v2924 = vpack.c.b16 %v2510, %v2509
    %v2925 = vpack.c.b16 %v2512, %v2511
    %v2926 = vpack.c.b16 %v2514, %v2513
    %v2927 = vpack.c.b16 %v2516, %v2515
    %v2928 = vpack.c.b16 %v2518, %v2517
    %v2929 = vpack.c.b16 %v2520, %v2519
    %v2930 = vpack.c.b16 %v2522, %v2521
    %v2931 = vpack.c.b16 %v2524, %v2523
    %v2932 = vpack.c.b16 %v2526, %v2525
    %v2933 = vpack.c.b16 %v2528, %v2527
    %v2934 = vpack.c.b16 %v2530, %v2529
    %v2935 = vpack.c.b16 %v2532, %v2531
    %v2936 = vpack.c.b16 %v2534, %v2533
    %v2937 = vpack.c.b16 %v2536, %v2535
    %v2938 = vpack.c.b16 %v2538, %v2537
    %v2939 = vpack.c.b16 %v2540, %v2539
    %v2940 = vpack.c.b16 %v2542, %v2541
    %v2941 = vpack.c.b16 %v2544, %v2543
    %v2942 = vpack.c.b16 %v2546, %v2545
    %v2943 = vpack.c.b16 %v2548, %v2547
    %v2944 = vpack.c.b16 %v2550, %v2549
    %v2945 = vpack.c.b16 %v2552, %v2551
    %v2946 = vpack.c.b16 %v2554, %v2553
    %3339 = vmatpush.bf16.msra.mxu0 %v2562
    %3340 = vmatpush.bf16.msra.mxu0 %v2561
    %3341 = vmatpush.bf16.msra.mxu0 %v2560
    %3342 = vmatpush.bf16.msra.mxu0 %v2559
    %3343 = vmatpush.bf16.msra.mxu0 %v2558
    %3344 = vmatpush.bf16.msra.mxu0 %v2557
    %3345 = vmatpush.bf16.msra.mxu0 %v2556
    %3346 = vmatpush.bf16.msra.mxu0 %v2555
    %3347 = vmatmul.bf16.gmra.mxu0 %v877
    %v3348 = vpop.f32.mrf.mxu0
    %v3349 = vadd.f32 %v873, %v3348
    %v3350 = vpop.f32.mrf.mxu0
    %3351 = vdwg.mxu0
    %3352 = vmatpush.bf16.msra.mxu0 %v2570
    %3353 = vmatpush.bf16.msra.mxu0 %v2569
    %3354 = vmatpush.bf16.msra.mxu0 %v2568
    %3355 = vmatpush.bf16.msra.mxu0 %v2567
    %3356 = vmatpush.bf16.msra.mxu0 %v2566
    %3357 = vmatpush.bf16.msra.mxu0 %v2565
    %3358 = vmatpush.bf16.msra.mxu0 %v2564
    %3359 = vmatpush.bf16.msra.mxu0 %v2563
    %3360 = vmatmul.bf16.gmra.mxu0 %v878
    %v3361 = vpop.f32.mrf.mxu0
    %v3362 = vadd.f32 %v3349, %v3361
    %v3363 = vpop.f32.mrf.mxu0
    %3364 = vdwg.mxu0
    %3365 = vmatpush.bf16.msra.mxu0 %v2578
    %3366 = vmatpush.bf16.msra.mxu0 %v2577
    %3367 = vmatpush.bf16.msra.mxu0 %v2576
    %3368 = vmatpush.bf16.msra.mxu0 %v2575
    %3369 = vmatpush.bf16.msra.mxu0 %v2574
    %3370 = vmatpush.bf16.msra.mxu0 %v2573
    %3371 = vmatpush.bf16.msra.mxu0 %v2572
    %3372 = vmatpush.bf16.msra.mxu0 %v2571
    %3373 = vmatmul.bf16.gmra.mxu0 %v879
    %v3374 = vpop.f32.mrf.mxu0
    %v3375 = vadd.f32 %v3362, %v3374
    %v3376 = vpop.f32.mrf.mxu0
    %3377 = vdwg.mxu0
    %3378 = vmatpush.bf16.msra.mxu0 %v2586
    %3379 = vmatpush.bf16.msra.mxu0 %v2585
    %3380 = vmatpush.bf16.msra.mxu0 %v2584
    %3381 = vmatpush.bf16.msra.mxu0 %v2583
    %3382 = vmatpush.bf16.msra.mxu0 %v2582
    %3383 = vmatpush.bf16.msra.mxu0 %v2581
    %3384 = vmatpush.bf16.msra.mxu0 %v2580
    %3385 = vmatpush.bf16.msra.mxu0 %v2579
    %3386 = vmatmul.bf16.gmra.mxu0 %v880
    %v3387 = vpop.f32.mrf.mxu0
    %v3388 = vadd.f32 %v3375, %v3387
    %v3389 = vpop.f32.mrf.mxu0
    %3390 = vdwg.mxu0
    %3391 = vmatpush.bf16.msra.mxu0 %v2594
    %3392 = vmatpush.bf16.msra.mxu0 %v2593
    %3393 = vmatpush.bf16.msra.mxu0 %v2592
    %3394 = vmatpush.bf16.msra.mxu0 %v2591
    %3395 = vmatpush.bf16.msra.mxu0 %v2590
    %3396 = vmatpush.bf16.msra.mxu0 %v2589
    %3397 = vmatpush.bf16.msra.mxu0 %v2588
    %3398 = vmatpush.bf16.msra.mxu0 %v2587
    %3399 = vmatmul.bf16.gmra.mxu0 %v881
    %v3400 = vpop.f32.mrf.mxu0
    %v3401 = vadd.f32 %v3388, %v3400
    %v3402 = vpop.f32.mrf.mxu0
    %3403 = vdwg.mxu0
    %3404 = vmatpush.bf16.msra.mxu0 %v2602
    %3405 = vmatpush.bf16.msra.mxu0 %v2601
    %3406 = vmatpush.bf16.msra.mxu0 %v2600
    %3407 = vmatpush.bf16.msra.mxu0 %v2599
    %3408 = vmatpush.bf16.msra.mxu0 %v2598
    %3409 = vmatpush.bf16.msra.mxu0 %v2597
    %3410 = vmatpush.bf16.msra.mxu0 %v2596
    %3411 = vmatpush.bf16.msra.mxu0 %v2595
    %3412 = vmatmul.bf16.gmra.mxu0 %v882
    %v3413 = vpop.f32.mrf.mxu0
    %v3414 = vadd.f32 %v3401, %v3413
    %v3415 = vpop.f32.mrf.mxu0
    %3416 = vdwg.mxu0
    %3417 = vmatpush.bf16.msra.mxu0 %v2610
    %3418 = vmatpush.bf16.msra.mxu0 %v2609
    %3419 = vmatpush.bf16.msra.mxu0 %v2608
    %3420 = vmatpush.bf16.msra.mxu0 %v2607
    %3421 = vmatpush.bf16.msra.mxu0 %v2606
    %3422 = vmatpush.bf16.msra.mxu0 %v2605
    %3423 = vmatpush.bf16.msra.mxu0 %v2604
    %3424 = vmatpush.bf16.msra.mxu0 %v2603
    %3425 = vmatmul.bf16.gmra.mxu0 %v883
    %v3426 = vpop.f32.mrf.mxu0
    %v3427 = vadd.f32 %v3414, %v3426
    %v3428 = vpop.f32.mrf.mxu0
    %3429 = vdwg.mxu0
    %3430 = vmatpush.bf16.msra.mxu0 %v2618
    %3431 = vmatpush.bf16.msra.mxu0 %v2617
    %3432 = vmatpush.bf16.msra.mxu0 %v2616
    %3433 = vmatpush.bf16.msra.mxu0 %v2615
    %3434 = vmatpush.bf16.msra.mxu0 %v2614
    %3435 = vmatpush.bf16.msra.mxu0 %v2613
    %3436 = vmatpush.bf16.msra.mxu0 %v2612
    %3437 = vmatpush.bf16.msra.mxu0 %v2611
    %3438 = vmatmul.bf16.gmra.mxu0 %v884
    %v3439 = vpop.f32.mrf.mxu0
    %v3440 = vadd.f32 %v3427, %v3439
    %v3441 = vpop.f32.mrf.mxu0
    %3442 = vdwg.mxu0
    %3443 = vmatpush.bf16.msra.mxu0 %v2626
    %3444 = vmatpush.bf16.msra.mxu0 %v2625
    %3445 = vmatpush.bf16.msra.mxu0 %v2624
    %3446 = vmatpush.bf16.msra.mxu0 %v2623
    %3447 = vmatpush.bf16.msra.mxu0 %v2622
    %3448 = vmatpush.bf16.msra.mxu0 %v2621
    %3449 = vmatpush.bf16.msra.mxu0 %v2620
    %3450 = vmatpush.bf16.msra.mxu0 %v2619
    %3451 = vmatmul.bf16.gmra.mxu0 %v887
    %v3452 = vpop.f32.mrf.mxu0
    %v3453 = vadd.f32 %v3440, %v3452
    %v3454 = vpop.f32.mrf.mxu0
    %3455 = vdwg.mxu0
    %3456 = vmatpush.bf16.msra.mxu0 %v2634
    %3457 = vmatpush.bf16.msra.mxu0 %v2633
    %3458 = vmatpush.bf16.msra.mxu0 %v2632
    %3459 = vmatpush.bf16.msra.mxu0 %v2631
    %3460 = vmatpush.bf16.msra.mxu0 %v2630
    %3461 = vmatpush.bf16.msra.mxu0 %v2629
    %3462 = vmatpush.bf16.msra.mxu0 %v2628
    %3463 = vmatpush.bf16.msra.mxu0 %v2627
    %3464 = vmatmul.bf16.gmra.mxu0 %v888
    %v3465 = vpop.f32.mrf.mxu0
    %v3466 = vadd.f32 %v3453, %v3465
    %v3467 = vpop.f32.mrf.mxu0
    %3468 = vdwg.mxu0
    %3469 = vmatpush.bf16.msra.mxu0 %v2642
    %3470 = vmatpush.bf16.msra.mxu0 %v2641
    %3471 = vmatpush.bf16.msra.mxu0 %v2640
    %3472 = vmatpush.bf16.msra.mxu0 %v2639
    %3473 = vmatpush.bf16.msra.mxu0 %v2638
    %3474 = vmatpush.bf16.msra.mxu0 %v2637
    %3475 = vmatpush.bf16.msra.mxu0 %v2636
    %3476 = vmatpush.bf16.msra.mxu0 %v2635
    %3477 = vmatmul.bf16.gmra.mxu0 %v889
    %v3478 = vpop.f32.mrf.mxu0
    %v3479 = vadd.f32 %v3466, %v3478
    %v3480 = vpop.f32.mrf.mxu0
    %3481 = vdwg.mxu0
    %3482 = vmatpush.bf16.msra.mxu0 %v2650
    %3483 = vmatpush.bf16.msra.mxu0 %v2649
    %3484 = vmatpush.bf16.msra.mxu0 %v2648
    %3485 = vmatpush.bf16.msra.mxu0 %v2647
    %3486 = vmatpush.bf16.msra.mxu0 %v2646
    %3487 = vmatpush.bf16.msra.mxu0 %v2645
    %3488 = vmatpush.bf16.msra.mxu0 %v2644
    %3489 = vmatpush.bf16.msra.mxu0 %v2643
    %3490 = vmatmul.bf16.gmra.mxu0 %v890
    %v3491 = vpop.f32.mrf.mxu0
    %v3492 = vadd.f32 %v3479, %v3491
    %v3493 = vpop.f32.mrf.mxu0
    %3494 = vdwg.mxu0
    %3495 = vmatpush.bf16.msra.mxu0 %v2658
    %3496 = vmatpush.bf16.msra.mxu0 %v2657
    %3497 = vmatpush.bf16.msra.mxu0 %v2656
    %3498 = vmatpush.bf16.msra.mxu0 %v2655
    %3499 = vmatpush.bf16.msra.mxu0 %v2654
    %3500 = vmatpush.bf16.msra.mxu0 %v2653
    %3501 = vmatpush.bf16.msra.mxu0 %v2652
    %3502 = vmatpush.bf16.msra.mxu0 %v2651
    %3503 = vmatmul.bf16.gmra.mxu0 %v891
    %v3504 = vpop.f32.mrf.mxu0
    %v3505 = vadd.f32 %v3492, %v3504
    %v3506 = vpop.f32.mrf.mxu0
    %3507 = vdwg.mxu0
    %3508 = vmatpush.bf16.msra.mxu0 %v2666
    %3509 = vmatpush.bf16.msra.mxu0 %v2665
    %3510 = vmatpush.bf16.msra.mxu0 %v2664
    %3511 = vmatpush.bf16.msra.mxu0 %v2663
    %3512 = vmatpush.bf16.msra.mxu0 %v2662
    %3513 = vmatpush.bf16.msra.mxu0 %v2661
    %3514 = vmatpush.bf16.msra.mxu0 %v2660
    %3515 = vmatpush.bf16.msra.mxu0 %v2659
    %3516 = vmatmul.bf16.gmra.mxu0 %v892
    %v3517 = vpop.f32.mrf.mxu0
    %v3518 = vadd.f32 %v3505, %v3517
    %v3519 = vpop.f32.mrf.mxu0
    %3520 = vdwg.mxu0
    %3521 = vmatpush.bf16.msra.mxu0 %v2674
    %3522 = vmatpush.bf16.msra.mxu0 %v2673
    %3523 = vmatpush.bf16.msra.mxu0 %v2672
    %3524 = vmatpush.bf16.msra.mxu0 %v2671
    %3525 = vmatpush.bf16.msra.mxu0 %v2670
    %3526 = vmatpush.bf16.msra.mxu0 %v2669
    %3527 = vmatpush.bf16.msra.mxu0 %v2668
    %3528 = vmatpush.bf16.msra.mxu0 %v2667
    %3529 = vmatmul.bf16.gmra.mxu0 %v893
    %v3530 = vpop.f32.mrf.mxu0
    %v3531 = vadd.f32 %v3518, %v3530
    %v3532 = vpop.f32.mrf.mxu0
    %3533 = vdwg.mxu0
    %3534 = vmatpush.bf16.msra.mxu0 %v2682
    %3535 = vmatpush.bf16.msra.mxu0 %v2681
    %3536 = vmatpush.bf16.msra.mxu0 %v2680
    %3537 = vmatpush.bf16.msra.mxu0 %v2679
    %3538 = vmatpush.bf16.msra.mxu0 %v2678
    %3539 = vmatpush.bf16.msra.mxu0 %v2677
    %3540 = vmatpush.bf16.msra.mxu0 %v2676
    %3541 = vmatpush.bf16.msra.mxu0 %v2675
    %3542 = vmatmul.bf16.gmra.mxu0 %v894
    %v3543 = vpop.f32.mrf.mxu0
    %v3544 = vadd.f32 %v3531, %v3543
    %v3545 = vpop.f32.mrf.mxu0
    %3546 = vdwg.mxu0
    %3547 = vmatpush.bf16.msra.mxu0 %v2690
    %3548 = vmatpush.bf16.msra.mxu0 %v2689
    %3549 = vmatpush.bf16.msra.mxu0 %v2688
    %3550 = vmatpush.bf16.msra.mxu0 %v2687
    %3551 = vmatpush.bf16.msra.mxu0 %v2686
    %3552 = vmatpush.bf16.msra.mxu0 %v2685
    %3553 = vmatpush.bf16.msra.mxu0 %v2684
    %3554 = vmatpush.bf16.msra.mxu0 %v2683
    %3555 = vmatmul.bf16.gmra.mxu0 %v897
    %v3556 = vpop.f32.mrf.mxu0
    %v3557 = vadd.f32 %v3544, %v3556
    %v3558 = vpop.f32.mrf.mxu0
    %3559 = vdwg.mxu0
    %3560 = vmatpush.bf16.msra.mxu0 %v2698
    %3561 = vmatpush.bf16.msra.mxu0 %v2697
    %3562 = vmatpush.bf16.msra.mxu0 %v2696
    %3563 = vmatpush.bf16.msra.mxu0 %v2695
    %3564 = vmatpush.bf16.msra.mxu0 %v2694
    %3565 = vmatpush.bf16.msra.mxu0 %v2693
    %3566 = vmatpush.bf16.msra.mxu0 %v2692
    %3567 = vmatpush.bf16.msra.mxu0 %v2691
    %3568 = vmatmul.bf16.gmra.mxu0 %v898
    %v3569 = vpop.f32.mrf.mxu0
    %v3570 = vadd.f32 %v3557, %v3569
    %v3571 = vpop.f32.mrf.mxu0
    %3572 = vdwg.mxu0
    %3573 = vmatpush.bf16.msra.mxu0 %v2706
    %3574 = vmatpush.bf16.msra.mxu0 %v2705
    %3575 = vmatpush.bf16.msra.mxu0 %v2704
    %3576 = vmatpush.bf16.msra.mxu0 %v2703
    %3577 = vmatpush.bf16.msra.mxu0 %v2702
    %3578 = vmatpush.bf16.msra.mxu0 %v2701
    %3579 = vmatpush.bf16.msra.mxu0 %v2700
    %3580 = vmatpush.bf16.msra.mxu0 %v2699
    %3581 = vmatmul.bf16.gmra.mxu0 %v899
    %v3582 = vpop.f32.mrf.mxu0
    %v3583 = vadd.f32 %v3570, %v3582
    %v3584 = vpop.f32.mrf.mxu0
    %3585 = vdwg.mxu0
    %3586 = vmatpush.bf16.msra.mxu0 %v2714
    %3587 = vmatpush.bf16.msra.mxu0 %v2713
    %3588 = vmatpush.bf16.msra.mxu0 %v2712
    %3589 = vmatpush.bf16.msra.mxu0 %v2711
    %3590 = vmatpush.bf16.msra.mxu0 %v2710
    %3591 = vmatpush.bf16.msra.mxu0 %v2709
    %3592 = vmatpush.bf16.msra.mxu0 %v2708
    %3593 = vmatpush.bf16.msra.mxu0 %v2707
    %3594 = vmatmul.bf16.gmra.mxu0 %v900
    %v3595 = vpop.f32.mrf.mxu0
    %v3596 = vadd.f32 %v3583, %v3595
    %v3597 = vpop.f32.mrf.mxu0
    %3598 = vdwg.mxu0
    %3599 = vmatpush.bf16.msra.mxu0 %v2722
    %3600 = vmatpush.bf16.msra.mxu0 %v2721
    %3601 = vmatpush.bf16.msra.mxu0 %v2720
    %3602 = vmatpush.bf16.msra.mxu0 %v2719
    %3603 = vmatpush.bf16.msra.mxu0 %v2718
    %3604 = vmatpush.bf16.msra.mxu0 %v2717
    %3605 = vmatpush.bf16.msra.mxu0 %v2716
    %3606 = vmatpush.bf16.msra.mxu0 %v2715
    %3607 = vmatmul.bf16.gmra.mxu0 %v901
    %v3608 = vpop.f32.mrf.mxu0
    %v3609 = vadd.f32 %v3596, %v3608
    %v3610 = vpop.f32.mrf.mxu0
    %3611 = vdwg.mxu0
    %3612 = vmatpush.bf16.msra.mxu0 %v2730
    %3613 = vmatpush.bf16.msra.mxu0 %v2729
    %3614 = vmatpush.bf16.msra.mxu0 %v2728
    %3615 = vmatpush.bf16.msra.mxu0 %v2727
    %3616 = vmatpush.bf16.msra.mxu0 %v2726
    %3617 = vmatpush.bf16.msra.mxu0 %v2725
    %3618 = vmatpush.bf16.msra.mxu0 %v2724
    %3619 = vmatpush.bf16.msra.mxu0 %v2723
    %3620 = vmatmul.bf16.gmra.mxu0 %v902
    %v3621 = vpop.f32.mrf.mxu0
    %v3622 = vadd.f32 %v3609, %v3621
    %v3623 = vpop.f32.mrf.mxu0
    %3624 = vdwg.mxu0
    %3625 = vmatpush.bf16.msra.mxu0 %v2738
    %3626 = vmatpush.bf16.msra.mxu0 %v2737
    %3627 = vmatpush.bf16.msra.mxu0 %v2736
    %3628 = vmatpush.bf16.msra.mxu0 %v2735
    %3629 = vmatpush.bf16.msra.mxu0 %v2734
    %3630 = vmatpush.bf16.msra.mxu0 %v2733
    %3631 = vmatpush.bf16.msra.mxu0 %v2732
    %3632 = vmatpush.bf16.msra.mxu0 %v2731
    %3633 = vmatmul.bf16.gmra.mxu0 %v903
    %v3634 = vpop.f32.mrf.mxu0
    %v3635 = vadd.f32 %v3622, %v3634
    %v3636 = vpop.f32.mrf.mxu0
    %3637 = vdwg.mxu0
    %3638 = vmatpush.bf16.msra.mxu0 %v2746
    %3639 = vmatpush.bf16.msra.mxu0 %v2745
    %3640 = vmatpush.bf16.msra.mxu0 %v2744
    %3641 = vmatpush.bf16.msra.mxu0 %v2743
    %3642 = vmatpush.bf16.msra.mxu0 %v2742
    %3643 = vmatpush.bf16.msra.mxu0 %v2741
    %3644 = vmatpush.bf16.msra.mxu0 %v2740
    %3645 = vmatpush.bf16.msra.mxu0 %v2739
    %3646 = vmatmul.bf16.gmra.mxu0 %v904
    %v3647 = vpop.f32.mrf.mxu0
    %v3648 = vadd.f32 %v3635, %v3647
    %v3649 = vpop.f32.mrf.mxu0
    %3650 = vdwg.mxu0
    %3651 = vmatpush.bf16.msra.mxu0 %v2754
    %3652 = vmatpush.bf16.msra.mxu0 %v2753
    %3653 = vmatpush.bf16.msra.mxu0 %v2752
    %3654 = vmatpush.bf16.msra.mxu0 %v2751
    %3655 = vmatpush.bf16.msra.mxu0 %v2750
    %3656 = vmatpush.bf16.msra.mxu0 %v2749
    %3657 = vmatpush.bf16.msra.mxu0 %v2748
    %3658 = vmatpush.bf16.msra.mxu0 %v2747
    %3659 = vmatmul.bf16.gmra.mxu0 %v907
    %v3660 = vpop.f32.mrf.mxu0
    %v3661 = vadd.f32 %v3648, %v3660
    %v3662 = vpop.f32.mrf.mxu0
    %3663 = vdwg.mxu0
    %3664 = vmatpush.bf16.msra.mxu0 %v2762
    %3665 = vmatpush.bf16.msra.mxu0 %v2761
    %3666 = vmatpush.bf16.msra.mxu0 %v2760
    %3667 = vmatpush.bf16.msra.mxu0 %v2759
    %3668 = vmatpush.bf16.msra.mxu0 %v2758
    %3669 = vmatpush.bf16.msra.mxu0 %v2757
    %3670 = vmatpush.bf16.msra.mxu0 %v2756
    %3671 = vmatpush.bf16.msra.mxu0 %v2755
    %3672 = vmatmul.bf16.gmra.mxu0 %v908
    %v3673 = vpop.f32.mrf.mxu0
    %v3674 = vadd.f32 %v3661, %v3673
    %v3675 = vpop.f32.mrf.mxu0
    %3676 = vdwg.mxu0
    %3677 = vmatpush.bf16.msra.mxu0 %v2770
    %3678 = vmatpush.bf16.msra.mxu0 %v2769
    %3679 = vmatpush.bf16.msra.mxu0 %v2768
    %3680 = vmatpush.bf16.msra.mxu0 %v2767
    %3681 = vmatpush.bf16.msra.mxu0 %v2766
    %3682 = vmatpush.bf16.msra.mxu0 %v2765
    %3683 = vmatpush.bf16.msra.mxu0 %v2764
    %3684 = vmatpush.bf16.msra.mxu0 %v2763
    %3685 = vmatmul.bf16.gmra.mxu0 %v909
    %v3686 = vpop.f32.mrf.mxu0
    %v3687 = vadd.f32 %v3674, %v3686
    %v3688 = vpop.f32.mrf.mxu0
    %3689 = vdwg.mxu0
    %3690 = vmatpush.bf16.msra.mxu0 %v2778
    %3691 = vmatpush.bf16.msra.mxu0 %v2777
    %3692 = vmatpush.bf16.msra.mxu0 %v2776
    %3693 = vmatpush.bf16.msra.mxu0 %v2775
    %3694 = vmatpush.bf16.msra.mxu0 %v2774
    %3695 = vmatpush.bf16.msra.mxu0 %v2773
    %3696 = vmatpush.bf16.msra.mxu0 %v2772
    %3697 = vmatpush.bf16.msra.mxu0 %v2771
    %3698 = vmatmul.bf16.gmra.mxu0 %v910
    %v3699 = vpop.f32.mrf.mxu0
    %v3700 = vadd.f32 %v3687, %v3699
    %v3701 = vpop.f32.mrf.mxu0
    %3702 = vdwg.mxu0
    %3703 = vmatpush.bf16.msra.mxu0 %v2786
    %3704 = vmatpush.bf16.msra.mxu0 %v2785
    %3705 = vmatpush.bf16.msra.mxu0 %v2784
    %3706 = vmatpush.bf16.msra.mxu0 %v2783
    %3707 = vmatpush.bf16.msra.mxu0 %v2782
    %3708 = vmatpush.bf16.msra.mxu0 %v2781
    %3709 = vmatpush.bf16.msra.mxu0 %v2780
    %3710 = vmatpush.bf16.msra.mxu0 %v2779
    %3711 = vmatmul.bf16.gmra.mxu0 %v911
    %v3712 = vpop.f32.mrf.mxu0
    %v3713 = vadd.f32 %v3700, %v3712
    %v3714 = vpop.f32.mrf.mxu0
    %3715 = vdwg.mxu0
    %3716 = vmatpush.bf16.msra.mxu0 %v2794
    %3717 = vmatpush.bf16.msra.mxu0 %v2793
    %3718 = vmatpush.bf16.msra.mxu0 %v2792
    %3719 = vmatpush.bf16.msra.mxu0 %v2791
    %3720 = vmatpush.bf16.msra.mxu0 %v2790
    %3721 = vmatpush.bf16.msra.mxu0 %v2789
    %3722 = vmatpush.bf16.msra.mxu0 %v2788
    %3723 = vmatpush.bf16.msra.mxu0 %v2787
    %3724 = vmatmul.bf16.gmra.mxu0 %v912
    %v3725 = vpop.f32.mrf.mxu0
    %v3726 = vadd.f32 %v3713, %v3725
    %v3727 = vpop.f32.mrf.mxu0
    %3728 = vdwg.mxu0
    %3729 = vmatpush.bf16.msra.mxu0 %v2802
    %3730 = vmatpush.bf16.msra.mxu0 %v2801
    %3731 = vmatpush.bf16.msra.mxu0 %v2800
    %3732 = vmatpush.bf16.msra.mxu0 %v2799
    %3733 = vmatpush.bf16.msra.mxu0 %v2798
    %3734 = vmatpush.bf16.msra.mxu0 %v2797
    %3735 = vmatpush.bf16.msra.mxu0 %v2796
    %3736 = vmatpush.bf16.msra.mxu0 %v2795
    %3737 = vmatmul.bf16.gmra.mxu0 %v913
    %v3738 = vpop.f32.mrf.mxu0
    %v3739 = vadd.f32 %v3726, %v3738
    %v3740 = vpop.f32.mrf.mxu0
    %3741 = vdwg.mxu0
    %3742 = vmatpush.bf16.msra.mxu0 %v2810
    %3743 = vmatpush.bf16.msra.mxu0 %v2809
    %3744 = vmatpush.bf16.msra.mxu0 %v2808
    %3745 = vmatpush.bf16.msra.mxu0 %v2807
    %3746 = vmatpush.bf16.msra.mxu0 %v2806
    %3747 = vmatpush.bf16.msra.mxu0 %v2805
    %3748 = vmatpush.bf16.msra.mxu0 %v2804
    %3749 = vmatpush.bf16.msra.mxu0 %v2803
    %3750 = vmatmul.bf16.gmra.mxu0 %v914
    %v3751 = vpop.f32.mrf.mxu0
    %v3752 = vadd.f32 %v3739, %v3751
    %v3753 = vpop.f32.mrf.mxu0
    %3754 = vdwg.mxu0
    %3755 = vmatpush.bf16.msra.mxu0 %v2818
    %3756 = vmatpush.bf16.msra.mxu0 %v2817
    %3757 = vmatpush.bf16.msra.mxu0 %v2816
    %3758 = vmatpush.bf16.msra.mxu0 %v2815
    %3759 = vmatpush.bf16.msra.mxu0 %v2814
    %3760 = vmatpush.bf16.msra.mxu0 %v2813
    %3761 = vmatpush.bf16.msra.mxu0 %v2812
    %3762 = vmatpush.bf16.msra.mxu0 %v2811
    %3763 = vmatmul.bf16.gmra.mxu0 %v917
    %v3764 = vpop.f32.mrf.mxu0
    %v3765 = vadd.f32 %v3752, %v3764
    %v3766 = vpop.f32.mrf.mxu0
    %3767 = vdwg.mxu0
    %3768 = vmatpush.bf16.msra.mxu0 %v2826
    %3769 = vmatpush.bf16.msra.mxu0 %v2825
    %3770 = vmatpush.bf16.msra.mxu0 %v2824
    %3771 = vmatpush.bf16.msra.mxu0 %v2823
    %3772 = vmatpush.bf16.msra.mxu0 %v2822
    %3773 = vmatpush.bf16.msra.mxu0 %v2821
    %3774 = vmatpush.bf16.msra.mxu0 %v2820
    %3775 = vmatpush.bf16.msra.mxu0 %v2819
    %3776 = vmatmul.bf16.gmra.mxu0 %v918
    %v3777 = vpop.f32.mrf.mxu0
    %v3778 = vadd.f32 %v3765, %v3777
    %v3779 = vpop.f32.mrf.mxu0
    %3780 = vdwg.mxu0
    %3781 = vmatpush.bf16.msra.mxu0 %v2834
    %3782 = vmatpush.bf16.msra.mxu0 %v2833
    %3783 = vmatpush.bf16.msra.mxu0 %v2832
    %3784 = vmatpush.bf16.msra.mxu0 %v2831
    %3785 = vmatpush.bf16.msra.mxu0 %v2830
    %3786 = vmatpush.bf16.msra.mxu0 %v2829
    %3787 = vmatpush.bf16.msra.mxu0 %v2828
    %3788 = vmatpush.bf16.msra.mxu0 %v2827
    %3789 = vmatmul.bf16.gmra.mxu0 %v919
    %v3790 = vpop.f32.mrf.mxu0
    %v3791 = vadd.f32 %v3778, %v3790
    %v3792 = vpop.f32.mrf.mxu0
    %3793 = vdwg.mxu0
    %3794 = vmatpush.bf16.msra.mxu0 %v2842
    %3795 = vmatpush.bf16.msra.mxu0 %v2841
    %3796 = vmatpush.bf16.msra.mxu0 %v2840
    %3797 = vmatpush.bf16.msra.mxu0 %v2839
    %3798 = vmatpush.bf16.msra.mxu0 %v2838
    %3799 = vmatpush.bf16.msra.mxu0 %v2837
    %3800 = vmatpush.bf16.msra.mxu0 %v2836
    %3801 = vmatpush.bf16.msra.mxu0 %v2835
    %3802 = vmatmul.bf16.gmra.mxu0 %v920
    %v3803 = vpop.f32.mrf.mxu0
    %v3804 = vadd.f32 %v3791, %v3803
    %v3805 = vpop.f32.mrf.mxu0
    %3806 = vdwg.mxu0
    %3807 = vmatpush.bf16.msra.mxu0 %v2850
    %3808 = vmatpush.bf16.msra.mxu0 %v2849
    %3809 = vmatpush.bf16.msra.mxu0 %v2848
    %3810 = vmatpush.bf16.msra.mxu0 %v2847
    %3811 = vmatpush.bf16.msra.mxu0 %v2846
    %3812 = vmatpush.bf16.msra.mxu0 %v2845
    %3813 = vmatpush.bf16.msra.mxu0 %v2844
    %3814 = vmatpush.bf16.msra.mxu0 %v2843
    %3815 = vmatmul.bf16.gmra.mxu0 %v921
    %v3816 = vpop.f32.mrf.mxu0
    %v3817 = vadd.f32 %v3804, %v3816
    %v3818 = vpop.f32.mrf.mxu0
    %3819 = vdwg.mxu0
    %3820 = vmatpush.bf16.msra.mxu0 %v2858
    %3821 = vmatpush.bf16.msra.mxu0 %v2857
    %3822 = vmatpush.bf16.msra.mxu0 %v2856
    %3823 = vmatpush.bf16.msra.mxu0 %v2855
    %3824 = vmatpush.bf16.msra.mxu0 %v2854
    %3825 = vmatpush.bf16.msra.mxu0 %v2853
    %3826 = vmatpush.bf16.msra.mxu0 %v2852
    %3827 = vmatpush.bf16.msra.mxu0 %v2851
    %3828 = vmatmul.bf16.gmra.mxu0 %v922
    %v3829 = vpop.f32.mrf.mxu0
    %v3830 = vadd.f32 %v3817, %v3829
    %v3831 = vpop.f32.mrf.mxu0
    %3832 = vdwg.mxu0
    %3833 = vmatpush.bf16.msra.mxu0 %v2866
    %3834 = vmatpush.bf16.msra.mxu0 %v2865
    %3835 = vmatpush.bf16.msra.mxu0 %v2864
    %3836 = vmatpush.bf16.msra.mxu0 %v2863
    %3837 = vmatpush.bf16.msra.mxu0 %v2862
    %3838 = vmatpush.bf16.msra.mxu0 %v2861
    %3839 = vmatpush.bf16.msra.mxu0 %v2860
    %3840 = vmatpush.bf16.msra.mxu0 %v2859
    %3841 = vmatmul.bf16.gmra.mxu0 %v923
    %v3842 = vpop.f32.mrf.mxu0
    %v3843 = vadd.f32 %v3830, %v3842
    %v3844 = vpop.f32.mrf.mxu0
    %3845 = vdwg.mxu0
    %3846 = vmatpush.bf16.msra.mxu0 %v2874
    %3847 = vmatpush.bf16.msra.mxu0 %v2873
    %3848 = vmatpush.bf16.msra.mxu0 %v2872
    %3849 = vmatpush.bf16.msra.mxu0 %v2871
    %3850 = vmatpush.bf16.msra.mxu0 %v2870
    %3851 = vmatpush.bf16.msra.mxu0 %v2869
    %3852 = vmatpush.bf16.msra.mxu0 %v2868
    %3853 = vmatpush.bf16.msra.mxu0 %v2867
    %3854 = vmatmul.bf16.gmra.mxu0 %v924
    %v3855 = vpop.f32.mrf.mxu0
    %v3856 = vadd.f32 %v3843, %v3855
    %v3857 = vpop.f32.mrf.mxu0
    %3858 = vdwg.mxu0
    %3859 = vmatpush.bf16.msra.mxu0 %v2882
    %3860 = vmatpush.bf16.msra.mxu0 %v2881
    %3861 = vmatpush.bf16.msra.mxu0 %v2880
    %3862 = vmatpush.bf16.msra.mxu0 %v2879
    %3863 = vmatpush.bf16.msra.mxu0 %v2878
    %3864 = vmatpush.bf16.msra.mxu0 %v2877
    %3865 = vmatpush.bf16.msra.mxu0 %v2876
    %3866 = vmatpush.bf16.msra.mxu0 %v2875
    %3867 = vmatmul.bf16.gmra.mxu0 %v927
    %v3868 = vpop.f32.mrf.mxu0
    %v3869 = vadd.f32 %v3856, %v3868
    %v3870 = vpop.f32.mrf.mxu0
    %3871 = vdwg.mxu0
    %3872 = vmatpush.bf16.msra.mxu0 %v2890
    %3873 = vmatpush.bf16.msra.mxu0 %v2889
    %3874 = vmatpush.bf16.msra.mxu0 %v2888
    %3875 = vmatpush.bf16.msra.mxu0 %v2887
    %3876 = vmatpush.bf16.msra.mxu0 %v2886
    %3877 = vmatpush.bf16.msra.mxu0 %v2885
    %3878 = vmatpush.bf16.msra.mxu0 %v2884
    %3879 = vmatpush.bf16.msra.mxu0 %v2883
    %3880 = vmatmul.bf16.gmra.mxu0 %v928
    %v3881 = vpop.f32.mrf.mxu0
    %v3882 = vadd.f32 %v3869, %v3881
    %v3883 = vpop.f32.mrf.mxu0
    %3884 = vdwg.mxu0
    %3885 = vmatpush.bf16.msra.mxu0 %v2898
    %3886 = vmatpush.bf16.msra.mxu0 %v2897
    %3887 = vmatpush.bf16.msra.mxu0 %v2896
    %3888 = vmatpush.bf16.msra.mxu0 %v2895
    %3889 = vmatpush.bf16.msra.mxu0 %v2894
    %3890 = vmatpush.bf16.msra.mxu0 %v2893
    %3891 = vmatpush.bf16.msra.mxu0 %v2892
    %3892 = vmatpush.bf16.msra.mxu0 %v2891
    %3893 = vmatmul.bf16.gmra.mxu0 %v929
    %v3894 = vpop.f32.mrf.mxu0
    %v3895 = vadd.f32 %v3882, %v3894
    %v3896 = vpop.f32.mrf.mxu0
    %3897 = vdwg.mxu0
    %3898 = vmatpush.bf16.msra.mxu0 %v2906
    %3899 = vmatpush.bf16.msra.mxu0 %v2905
    %3900 = vmatpush.bf16.msra.mxu0 %v2904
    %3901 = vmatpush.bf16.msra.mxu0 %v2903
    %3902 = vmatpush.bf16.msra.mxu0 %v2902
    %3903 = vmatpush.bf16.msra.mxu0 %v2901
    %3904 = vmatpush.bf16.msra.mxu0 %v2900
    %3905 = vmatpush.bf16.msra.mxu0 %v2899
    %3906 = vmatmul.bf16.gmra.mxu0 %v930
    %v3907 = vpop.f32.mrf.mxu0
    %v3908 = vadd.f32 %v3895, %v3907
    %v3909 = vpop.f32.mrf.mxu0
    %3910 = vdwg.mxu0
    %3911 = vmatpush.bf16.msra.mxu0 %v2914
    %3912 = vmatpush.bf16.msra.mxu0 %v2913
    %3913 = vmatpush.bf16.msra.mxu0 %v2912
    %3914 = vmatpush.bf16.msra.mxu0 %v2911
    %3915 = vmatpush.bf16.msra.mxu0 %v2910
    %3916 = vmatpush.bf16.msra.mxu0 %v2909
    %3917 = vmatpush.bf16.msra.mxu0 %v2908
    %3918 = vmatpush.bf16.msra.mxu0 %v2907
    %3919 = vmatmul.bf16.gmra.mxu0 %v931
    %v3920 = vpop.f32.mrf.mxu0
    %v3921 = vadd.f32 %v3908, %v3920
    %v3922 = vpop.f32.mrf.mxu0
    %3923 = vdwg.mxu0
    %3924 = vmatpush.bf16.msra.mxu0 %v2922
    %3925 = vmatpush.bf16.msra.mxu0 %v2921
    %3926 = vmatpush.bf16.msra.mxu0 %v2920
    %3927 = vmatpush.bf16.msra.mxu0 %v2919
    %3928 = vmatpush.bf16.msra.mxu0 %v2918
    %3929 = vmatpush.bf16.msra.mxu0 %v2917
    %3930 = vmatpush.bf16.msra.mxu0 %v2916
    %3931 = vmatpush.bf16.msra.mxu0 %v2915
    %3932 = vmatmul.bf16.gmra.mxu0 %v932
    %v3933 = vpop.f32.mrf.mxu0
    %v3934 = vadd.f32 %v3921, %v3933
    %v3935 = vpop.f32.mrf.mxu0
    %3936 = vdwg.mxu0
    %3937 = vmatpush.bf16.msra.mxu0 %v2930
    %3938 = vmatpush.bf16.msra.mxu0 %v2929
    %3939 = vmatpush.bf16.msra.mxu0 %v2928
    %3940 = vmatpush.bf16.msra.mxu0 %v2927
    %3941 = vmatpush.bf16.msra.mxu0 %v2926
    %3942 = vmatpush.bf16.msra.mxu0 %v2925
    %3943 = vmatpush.bf16.msra.mxu0 %v2924
    %3944 = vmatpush.bf16.msra.mxu0 %v2923
    %3945 = vmatmul.bf16.gmra.mxu0 %v933
    %v3946 = vpop.f32.mrf.mxu0
    %v3947 = vadd.f32 %v3934, %v3946
    %v3948 = vpop.f32.mrf.mxu0
    %3949 = vdwg.mxu0
    %3950 = vmatpush.bf16.msra.mxu0 %v2938
    %3951 = vmatpush.bf16.msra.mxu0 %v2937
    %3952 = vmatpush.bf16.msra.mxu0 %v2936
    %3953 = vmatpush.bf16.msra.mxu0 %v2935
    %3954 = vmatpush.bf16.msra.mxu0 %v2934
    %3955 = vmatpush.bf16.msra.mxu0 %v2933
    %3956 = vmatpush.bf16.msra.mxu0 %v2932
    %3957 = vmatpush.bf16.msra.mxu0 %v2931
    %3958 = vmatmul.bf16.gmra.mxu0 %v934
    %v3959 = vpop.f32.mrf.mxu0
    %v3960 = vadd.f32 %v3947, %v3959
    %v3961 = vpop.f32.mrf.mxu0
    %3962 = vdwg.mxu0
    %3963 = vmatpush.bf16.msra.mxu0 %v2946
    %3964 = vmatpush.bf16.msra.mxu0 %v2945
    %3965 = vmatpush.bf16.msra.mxu0 %v2944
    %3966 = vmatpush.bf16.msra.mxu0 %v2943
    %3967 = vmatpush.bf16.msra.mxu0 %v2942
    %3968 = vmatpush.bf16.msra.mxu0 %v2941
    %3969 = vmatpush.bf16.msra.mxu0 %v2940
    %3970 = vmatpush.bf16.msra.mxu0 %v2939
    %3971 = vmatmul.bf16.gmra.mxu0 %v937
    %v3972 = vpop.f32.mrf.mxu0
    %v3973 = vadd.f32 %v3960, %v3972
    %v3974 = vpop.f32.mrf.mxu0
    %3975 = vdwg.mxu0
    %v3976 = vtanh.pop %v3973
    %v3977 = vpack.c.bf16 %v3976, %v3976
    %v3978 = vld [vmem:[#allocation7] sm:$0xf]
    %v3979 = vld [vmem:[#allocation7 + $0x4] sm:$0xf]
    %v3980 = vld [vmem:[#allocation7 + $0x8] sm:$0xf]
    %v3981 = vld [vmem:[#allocation7 + $0xc] sm:$0xf]
    %v3982 = vld [vmem:[#allocation7 + $0x10] sm:$0xf]
    %v3983 = vld [vmem:[#allocation7 + $0x14] sm:$0xf]
    %v3984 = vld [vmem:[#allocation7 + $0x18] sm:$0xf]
    %v3985 = vld [vmem:[#allocation7 + $0x1c] sm:$0xf]
    %v3986 = vld [vmem:[#allocation7 + $0x20] sm:$0xf]
    %v3987 = vld [vmem:[#allocation7 + $0x24] sm:$0xf]
    %v3988 = vld [vmem:[#allocation7 + $0x28] sm:$0xf]
    %v3989 = vld [vmem:[#allocation7 + $0x2c] sm:$0xf]
    %v3990 = vld [vmem:[#allocation7 + $0x30] sm:$0xf]
    %v3991 = vld [vmem:[#allocation7 + $0x34] sm:$0xf]
    %v3992 = vld [vmem:[#allocation7 + $0x38] sm:$0xf]
    %v3993 = vld [vmem:[#allocation7 + $0x3c] sm:$0xf]
    %v3994 = vld [vmem:[#allocation8] sm:$0x1]
    %v3996 = vperm.slane %v3994, 0
    %v4014 = vunpack.c.l.b16 %v3978
    %v4015 = vunpack.c.l.b16 %v3979
    %v4016 = vunpack.c.l.b16 %v3980
    %v4017 = vunpack.c.l.b16 %v3981
    %v4018 = vunpack.c.l.b16 %v3982
    %v4019 = vunpack.c.l.b16 %v3983
    %v4020 = vunpack.c.l.b16 %v3984
    %v4021 = vunpack.c.l.b16 %v3985
    %v4022 = vunpack.c.l.b16 %v3986
    %v4023 = vunpack.c.l.b16 %v3987
    %v4024 = vunpack.c.l.b16 %v3988
    %v4025 = vunpack.c.l.b16 %v3989
    %v4026 = vunpack.c.l.b16 %v3990
    %v4027 = vunpack.c.l.b16 %v3991
    %v4028 = vunpack.c.l.b16 %v3992
    %v4029 = vunpack.c.l.b16 %v3993
    %v4030 = vpack.c.b16 %v4015, %v4014
    %v4031 = vpack.c.b16 %v4017, %v4016
    %v4032 = vpack.c.b16 %v4019, %v4018
    %v4033 = vpack.c.b16 %v4021, %v4020
    %v4034 = vpack.c.b16 %v4023, %v4022
    %v4035 = vpack.c.b16 %v4025, %v4024
    %v4036 = vpack.c.b16 %v4027, %v4026
    %v4037 = vpack.c.b16 %v4029, %v4028
    %4046 = vmatpush.bf16.msra.mxu0 %v4037
    %4047 = vmatpush.bf16.msra.mxu0 %v4036
    %4048 = vmatpush.bf16.msra.mxu0 %v4035
    %4049 = vmatpush.bf16.msra.mxu0 %v4034
    %4050 = vmatpush.bf16.msra.mxu0 %v4033
    %4051 = vmatpush.bf16.msra.mxu0 %v4032
    %4052 = vmatpush.bf16.msra.mxu0 %v4031
    %4053 = vmatpush.bf16.msra.mxu0 %v4030
    %4054 = vmatmul.bf16.gmra.mxu0 %v3977
    %v4055 = vpop.f32.mrf.mxu0
    %v4056 = vadd.f32 %v3996, %v4055
    %v4057 = vpop.f32.mrf.mxu0
    %4058 = vdwg.mxu0
    %4059 = vst [vmem:[#allocation10] sm:$0x3] %v4056
    // Predicated region
    $region38: #{forward.3} parent=1 // pred_check
      _
    $region39: #{forward.3} parent=1 // pred_check_branch
      %4061 = sbr.rel (0) target = $region41
    $region40: #{forward.3} parent=1 // pred_region
      %4063 = vsyncadd [#allocation4], 0
      %s4065 = sshll.u32 [#allocation10], 4
      %s4066 = int_to_ptr.vmem [resolvable:$true] %s4065
      %s4067 = sshll.u32 %s5, 4
      %s4068 = int_to_ptr.hbm [resolvable:$true] %s4067
      %4070 = dma.vmem_to_hbm [thread:$0]  %s4066, 32, %s4068, [#allocation4]
    $region41: #{forward.3} parent=1 // pred_fallthru
      _
    // Predicated region
    $region42: #{forward.3} parent=1 // pred_check
      _
    $region43: #{forward.3} parent=1 // pred_check_branch
      %4072 = sbr.rel (0) target = $region45
    $region44: #{forward.3} parent=1 // pred_region
      %4074 = dma.done [#allocation4], 32
    $region45: #{forward.3} parent=1 // pred_fallthru
      _
    %4075 = vsyncpa [#allocation3], 1
    %4076 = vsyncpa [#allocation6], 1
    %4077 = vsyncpa [#allocation9], 1
    %4078 = vsyncpa [#allocation4], 1

</llo_original>
